<compile_context>
chip_gen: v6e
topology: v6e:2x2x1
jax: 0.10.0
libtpu: 0.0.40
codegen_flags: <defaults>
</compile_context>

<pallas_src>
import math

import jax
import jax.numpy as jnp
from jax import lax
from jax.experimental import pallas as pl
from jax.experimental.pallas import tpu as pltpu

D = 32           # embedding_dim
C = 8            # num_classes
R = 2            # num_relations
NUM_ITERS = 5    # num_iterations (matches RRN.forward default; compile-time unrolled)
EPS = 1e-12      # F.normalize eps


def _l2norm_rows(x):
    # F.normalize(p=2): x / max(||x||, eps) == x * rsqrt(max(||x||^2, eps^2))
    ss = jnp.sum(x * x, axis=-1, keepdims=True)
    return x * lax.rsqrt(jnp.maximum(ss, EPS * EPS))


# ----------------------------------------------------------------------------------
# Kernel 1: embedding generation (ClassUpdateLayer + RelationUpdateLayer iterations)
# ----------------------------------------------------------------------------------
def _embed_kernel_factory(num_iterations, use_facts):
    def kernel(s_col_ref, o_col_ref, r_col_ref, s_row_ref, o_row_ref,   # int32 (F,1)/(1,F)
               e0_ref, ci_ref,                                          # (N,D), (N,C)
               cVW_ref,                                                 # (D+C, 2D)
               sVW_ref, sw_ref, oVW_ref, ow_ref,                        # (R,2D,2D),(R,1,D) x2
               out_ref):                                                # (N,D)
        n = e0_ref.shape[0]
        f = s_col_ref.shape[0]

        ci = ci_ref[...]
        has_class = jnp.any(ci != 0.0, axis=1, keepdims=True)           # (N,1)
        cVW = cVW_ref[...]

        if use_facts:
            s_col = s_col_ref[...]
            o_col = o_col_ref[...]
            r_col = r_col_ref[...]
            s_row = s_row_ref[...]
            o_row = o_row_ref[...]

            # Gather matrices (iteration-invariant): e_s = onehot_s @ emb.
            iota_fn = lax.broadcasted_iota(jnp.int32, (f, n), 1)
            onehot_s = (s_col == iota_fn).astype(jnp.float32)            # (F,N)
            onehot_o = (o_col == iota_fn).astype(jnp.float32)

            # Last-write-wins scatter selection.  Write order per iteration is
            # subj_0, obj_0, subj_1, obj_1, ...  Priorities: subj f -> 2f+1, obj f -> 2f+2.
            iota_nf = lax.broadcasted_iota(jnp.int32, (n, f), 0)
            prio_s = (2 * lax.broadcasted_iota(jnp.int32, (n, f), 1) + 1).astype(jnp.float32)
            score_s = jnp.where(iota_nf == s_row, prio_s, 0.0)           # (N,F)
            score_o = jnp.where(iota_nf == o_row, prio_s + 1.0, 0.0)
            win = jnp.maximum(jnp.max(score_s, axis=1, keepdims=True),
                              jnp.max(score_o, axis=1, keepdims=True))   # (N,1)
            has_write = win > 0.0
            sel_s = ((score_s == win) & has_write).astype(jnp.float32)   # (N,F)
            sel_o = ((score_o == win) & has_write).astype(jnp.float32)

            # Hoist per-relation weights and rel masks out of the iteration loop.
            r_masks = [r_col == r for r in range(R)]                     # (F,1) bool
            sVW = [sVW_ref[r] for r in range(R)]                         # (2D,2D)
            oVW = [oVW_ref[r] for r in range(R)]
            sw = [sw_ref[r] for r in range(R)]                           # (1,D)
            ow = [ow_ref[r] for r in range(R)]

        emb = e0_ref[...]
        for _ in range(num_iterations):
            # ---- ClassUpdateLayer (fused V/W matmul), masked to rows with memberships ----
            cat_ec = jnp.concatenate([emb, ci], axis=1)                  # (N, D+C)
            z = jnp.dot(cat_ec, cVW, preferred_element_type=jnp.float32) # (N, 2D)
            g = jax.nn.sigmoid(z[:, :D])
            et = jax.nn.relu(z[:, D:])
            base = jnp.where(has_class, _l2norm_rows(emb + et * g), emb)

            if not use_facts:
                emb = base
                continue

            # ---- Batched RelationUpdateLayers (all reads from pre-iteration emb) ----
            e_s = jnp.dot(onehot_s, emb, preferred_element_type=jnp.float32)   # (F,D)
            e_o = jnp.dot(onehot_o, emb, preferred_element_type=jnp.float32)
            cat_so = jnp.concatenate([e_s, e_o], axis=1)                 # (F, 2D)
            cat_os = jnp.concatenate([e_o, e_s], axis=1)

            upd_s = jnp.zeros((f, D), jnp.float32)
            upd_o = jnp.zeros((f, D), jnp.float32)
            for r in range(R):                                           # static unroll
                zs = jnp.dot(cat_so, sVW[r], preferred_element_type=jnp.float32)
                bw_s = jnp.sum(e_o * sw[r], axis=1, keepdims=True)       # e_s * (e_o . w)
                cand_s = _l2norm_rows(
                    e_s + jax.nn.relu(zs[:, D:] + e_s * bw_s) * jax.nn.sigmoid(zs[:, :D]))
                upd_s = jnp.where(r_masks[r], cand_s, upd_s)

                zo = jnp.dot(cat_os, oVW[r], preferred_element_type=jnp.float32)
                bw_o = jnp.sum(e_s * ow[r], axis=1, keepdims=True)
                cand_o = _l2norm_rows(
                    e_o + jax.nn.relu(zo[:, D:] + e_o * bw_o) * jax.nn.sigmoid(zo[:, :D]))
                upd_o = jnp.where(r_masks[r], cand_o, upd_o)

            # Vectorized last-write-wins scatter back to the N rows.
            gathered = (jnp.dot(sel_s, upd_s, preferred_element_type=jnp.float32)
                        + jnp.dot(sel_o, upd_o, preferred_element_type=jnp.float32))
            emb = jnp.where(has_write, gathered, base)

        out_ref[...] = emb

    return kernel


def _embed_vmem_limit(n, f):
    def padded(r, c):
        return ((max(r, 1) + 7) // 8 * 8) * ((max(c, 1) + 127) // 128 * 128) * 4
    est = (3 * padded(n, D) + padded(n, C)
           + 5 * padded(f, 128)
           + padded(D + C, 2 * D) + 2 * R * padded(2 * D, 2 * D) + 2 * padded(R, D))
    est = 4 * est + (4 << 20)            # slack for compiler temporaries / spills
    return int(min(max(est, 8 << 20), 32 << 20))


def generate_embeddings(e0, ci, subj, rel, obj, p, num_iterations=NUM_ITERS):
    n = e0.shape[0]
    f = int(subj.shape[0])
    use_facts = f > 0
    if not use_facts:                    # fixed kernel signature; fact inputs ignored
        subj = rel = obj = jnp.zeros((1,), jnp.int32)
        f = 1
    s_col = subj.reshape(f, 1).astype(jnp.int32)
    o_col = obj.reshape(f, 1).astype(jnp.int32)
    r_col = rel.reshape(f, 1).astype(jnp.int32)
    s_row = subj.reshape(1, f).astype(jnp.int32)
    o_row = obj.reshape(1, f).astype(jnp.int32)

    vmem = pl.BlockSpec(memory_space=pltpu.MemorySpace.VMEM)
    kernel = _embed_kernel_factory(num_iterations, use_facts)
    # TODO(synk): for very large N, tile the class-update phase over N with a grid
    # (HBM-resident embeddings) instead of the single VMEM-resident block used here.
    return pl.pallas_call(
        kernel,
        out_shape=jax.ShapeDtypeStruct((n, D), jnp.float32),
        in_specs=[vmem] * 12,
        out_specs=vmem,
        compiler_params=pltpu.CompilerParams(
            vmem_limit_bytes=_embed_vmem_limit(n, f)),
    )(s_col, o_col, r_col, s_row, o_row, e0, ci,
      p['cVW'], p['sVW'], p['sw'], p['oVW'], p['ow'])


# ----------------------------------------------------------------------------------
# Kernel 2: ClassPredictionMLP (batched over class queries)
# ----------------------------------------------------------------------------------
def class_pred_kernel(e_ref, whT_ref, bh_ref, woT_ref, bo_ref, out_ref):
    h = jax.nn.relu(
        jnp.dot(e_ref[...], whT_ref[...], preferred_element_type=jnp.float32)
        + bh_ref[...])
    out_ref[...] = jax.nn.sigmoid(
        jnp.dot(h, woT_ref[...], preferred_element_type=jnp.float32) + bo_ref[...])


def class_predict(e_q, p):
    q = e_q.shape[0]
    vmem = pl.BlockSpec(memory_space=pltpu.MemorySpace.VMEM)
    return pl.pallas_call(
        class_pred_kernel,
        out_shape=jax.ShapeDtypeStruct((q, C), jnp.float32),
        in_specs=[vmem] * 5,
        out_specs=vmem,
    )(e_q, p['cp_whT'], p['cp_bh'], p['cp_woT'], p['cp_bo'])


# ----------------------------------------------------------------------------------
# Kernel 3: RelationPredictionMLPs (all R predictors; glue selects the queried one)
# ----------------------------------------------------------------------------------
def rel_pred_kernel(es_ref, eo_ref, whT_ref, bh_ref, wo_ref, bo_ref, out_ref):
    cat = jnp.concatenate([es_ref[...], eo_ref[...]], axis=1)            # (Q, 2D)
    cols = []
    for r in range(R):                                                   # static unroll
        h = jax.nn.relu(
            jnp.dot(cat, whT_ref[r], preferred_element_type=jnp.float32) + bh_ref[r])
        logit = jnp.sum(h * wo_ref[r], axis=1, keepdims=True) + bo_ref[r]  # (Q,1)
        cols.append(jax.nn.sigmoid(logit))
    out_ref[...] = jnp.concatenate(cols, axis=1)                         # one dense store


def relation_predict(es, eo, p):
    q = es.shape[0]
    vmem = pl.BlockSpec(memory_space=pltpu.MemorySpace.VMEM)
    return pl.pallas_call(
        rel_pred_kernel,
        out_shape=jax.ShapeDtypeStruct((q, R), jnp.float32),
        in_specs=[vmem] * 6,
        out_specs=vmem,
    )(es, eo, p['rp_whT'], p['rp_bh'], p['rp_wo'], p['rp_bo'])


# ----------------------------------------------------------------------------------
# Parameter initialization (deterministic; fused layouts built host-side)
# ----------------------------------------------------------------------------------
def init_params(key):
    keys = iter(jax.random.split(key, 24))

    def rn(shape, scale=1.0):
        return (scale * jax.random.normal(next(keys), shape)).astype(jnp.float32)

    # ClassUpdateLayer: V, W are (D+C, D); fused [V | W] -> (D+C, 2D), used as x @ cVW.
    cV = rn((D + C, D))
    cW = rn((D + C, D))
    cVW = jnp.concatenate([cV, cW], axis=1)

    # RelationUpdateLayers: fused [[V1|W1],[V2|W2]] -> (2D, 2D), used as [e_a|e_b] @ VW.
    sV1, sV2, sW1, sW2, sw = rn((R, D, D)), rn((R, D, D)), rn((R, D, D)), rn((R, D, D)), rn((R, D))
    oV1, oV2, oW1, oW2, ow = rn((R, D, D)), rn((R, D, D)), rn((R, D, D)), rn((R, D, D)), rn((R, D))
    sVW = jnp.concatenate([jnp.concatenate([sV1, sW1], axis=2),
                           jnp.concatenate([sV2, sW2], axis=2)], axis=1)
    oVW = jnp.concatenate([jnp.concatenate([oV1, oW1], axis=2),
                           jnp.concatenate([oV2, oW2], axis=2)], axis=1)

    # Prediction MLPs (PyTorch Linear weights (out, in); transposed for x @ W^T).
    lin = 1.0 / math.sqrt(D)
    lin2 = 1.0 / math.sqrt(2 * D)
    cp_wh = rn((D, D), lin)
    cp_bh = rn((1, D), lin)
    cp_wo = rn((C, D), lin)
    cp_bo = rn((1, C), lin)
    rp_wh = rn((R, D, 2 * D), lin2)
    rp_bh = rn((R, 1, D), lin2)
    rp_wo = rn((R, 1, D), lin)
    rp_bo = rn((R, 1, 1), lin)

    return dict(
        cVW=cVW,
        sVW=sVW, sw=sw.reshape(R, 1, D),
        oVW=oVW, ow=ow.reshape(R, 1, D),
        cp_whT=cp_wh.T, cp_bh=cp_bh, cp_woT=cp_wo.T, cp_bo=cp_bo,
        rp_whT=jnp.transpose(rp_wh, (0, 2, 1)), rp_bh=rp_bh, rp_wo=rp_wo, rp_bo=rp_bo,
    )


# ----------------------------------------------------------------------------------
# Forward pass (JAX glue around the Pallas kernels), mirroring RRN.forward(kb)
# ----------------------------------------------------------------------------------
def rrn_forward(kb, params, emb_key, num_iterations=NUM_ITERS):
    n = kb['num_individuals']
    facts = kb['facts']
    queries = kb['queries']

    # initialize_embeddings: randn then row-wise L2 normalize
    e0 = jax.random.normal(emb_key, (n, D), dtype=jnp.float32)
    e0 = e0 / jnp.maximum(jnp.linalg.norm(e0, axis=1, keepdims=True), EPS)

    ci = jnp.zeros((n, C), jnp.float32)
    for ind_idx, class_idx, value in kb['class_memberships']:
        ci = ci.at[ind_idx, class_idx].set(value)

    subj = jnp.array([f[0] for f in facts], dtype=jnp.int32)
    rel = jnp.array([f[1] for f in facts], dtype=jnp.int32)
    obj = jnp.array([f[2] for f in facts], dtype=jnp.int32)

    emb = generate_embeddings(e0, ci, subj, rel, obj, params, num_iterations)

    class_pos, class_q, rel_pos, rel_q = [], [], [], []
    for i, q in enumerate(queries):
        if q[0] == 'class':
            class_pos.append(i)
            class_q.append((q[1], q[2]))
        else:
            rel_pos.append(i)
            rel_q.append((q[1], q[2], q[3]))

    preds = jnp.zeros((len(queries),), jnp.float32)

    if class_q:
        inds = jnp.array([a for a, _ in class_q], jnp.int32)
        clsi = jnp.array([b for _, b in class_q], jnp.int32)
        probs = class_predict(emb[inds], params)                     # (Qc, C)
        vals = probs[jnp.arange(len(class_q)), clsi]
        for j, pos in enumerate(class_pos):
            preds = preds.at[pos].set(vals[j])

    if rel_q:
        sidx = jnp.array([a for a, _, _ in rel_q], jnp.int32)
        ridx = jnp.array([b for _, b, _ in rel_q], jnp.int32)
        oidx = jnp.array([c for _, _, c in rel_q], jnp.int32)
        probs = relation_predict(emb[sidx], emb[oidx], params)       # (Qr, R)
        vals = probs[jnp.arange(len(rel_q)), ridx]
        for j, pos in enumerate(rel_pos):
            preds = preds.at[pos].set(vals[j])

    return preds


if __name__ == "__main__":
    key = jax.random.PRNGKey(0)
    pkey, ekey = jax.random.split(key)
    params = init_params(pkey)

    kb = {
        'facts': [(0, 0, 1), (1, 1, 2), (3, 0, 4), (2, 1, 0)],
        'num_individuals': 8,
        'class_memberships': [(0, 1, 1.0), (2, 3, 1.0), (5, 0, 1.0)],
        'queries': [('class', 0, 1),
                    ('relation', 0, 0, 1),
                    ('class', 2, 3),
                    ('relation', 3, 1, 4)],
    }

    preds = rrn_forward(kb, params, ekey)
    preds = jax.block_until_ready(preds)
    assert preds.shape == (len(kb['queries']),)
    assert bool(jnp.all(jnp.isfinite(preds)))
    assert bool(jnp.all((preds >= 0.0) & (preds <= 1.0)))
    print("KERNEL_OK")
</pallas_src>

<mosaic_0001>
module attributes {stable_mosaic.version = 11 : i64} {
  func.func @kernel(%arg0: memref<4x1xi32, #tpu.memory_space<vmem>>, %arg1: memref<4x1xi32, #tpu.memory_space<vmem>>, %arg2: memref<4x1xi32, #tpu.memory_space<vmem>>, %arg3: memref<1x4xi32, #tpu.memory_space<vmem>>, %arg4: memref<1x4xi32, #tpu.memory_space<vmem>>, %arg5: memref<8x32xf32, #tpu.memory_space<vmem>>, %arg6: memref<8x8xf32, #tpu.memory_space<vmem>>, %arg7: memref<40x64xf32, #tpu.memory_space<vmem>>, %arg8: memref<2x64x64xf32, #tpu.memory_space<vmem>>, %arg9: memref<2x1x32xf32, #tpu.memory_space<vmem>>, %arg10: memref<2x64x64xf32, #tpu.memory_space<vmem>>, %arg11: memref<2x1x32xf32, #tpu.memory_space<vmem>>, %arg12: memref<8x32xf32, #tpu.memory_space<vmem>>) attributes {dimension_semantics = [], scalar_prefetch = 0 : i64, scratch_operands = 0 : i64, tpu.core_type = #tpu.core_type<tc>} {
    %c0 = arith.constant 0 : index
    %c0_0 = arith.constant 0 : index
    %0 = vector.load %arg6[%c0, %c0_0] : memref<8x8xf32, #tpu.memory_space<vmem>>, vector<8x8xf32>
    %cst = arith.constant 0.000000e+00 : f32
    %1 = vector.broadcast %cst : f32 to vector<8x8xf32>
    %2 = arith.cmpf one, %0, %1 : vector<8x8xf32>
    %cst_1 = arith.constant 1.000000e+00 : f32
    %cst_2 = arith.constant 0.000000e+00 : f32
    %3 = vector.broadcast %cst_1 : f32 to vector<8x8xf32>
    %4 = vector.broadcast %cst_2 : f32 to vector<8x8xf32>
    %5 = arith.select %2, %3, %4 : vector<8x8xi1>, vector<8x8xf32>
    %cst_3 = arith.constant dense<0xFF800000> : vector<8xf32>
    %6 = vector.multi_reduction <maximumf>, %5, %cst_3 [1] : vector<8x8xf32> to vector<8xf32>
    %cst_4 = arith.constant 0.000000e+00 : f32
    %7 = vector.broadcast %cst_4 : f32 to vector<8xf32>
    %8 = arith.cmpf ogt, %6, %7 : vector<8xf32>
    %9 = vector.shape_cast %8 : vector<8xi1> to vector<8x1xi1>
    %c0_5 = arith.constant 0 : index
    %c0_6 = arith.constant 0 : index
    %10 = vector.load %arg7[%c0_5, %c0_6] : memref<40x64xf32, #tpu.memory_space<vmem>>, vector<40x64xf32>
    %c0_7 = arith.constant 0 : index
    %c0_8 = arith.constant 0 : index
    %11 = vector.load %arg0[%c0_7, %c0_8] : memref<4x1xi32, #tpu.memory_space<vmem>>, vector<4x1xi32>
    %c0_9 = arith.constant 0 : index
    %c0_10 = arith.constant 0 : index
    %12 = vector.load %arg1[%c0_9, %c0_10] : memref<4x1xi32, #tpu.memory_space<vmem>>, vector<4x1xi32>
    %c0_11 = arith.constant 0 : index
    %c0_12 = arith.constant 0 : index
    %13 = vector.load %arg2[%c0_11, %c0_12] : memref<4x1xi32, #tpu.memory_space<vmem>>, vector<4x1xi32>
    %c0_13 = arith.constant 0 : index
    %c0_14 = arith.constant 0 : index
    %14 = vector.load %arg3[%c0_13, %c0_14] : memref<1x4xi32, #tpu.memory_space<vmem>>, vector<1x4xi32>
    %c0_15 = arith.constant 0 : index
    %c0_16 = arith.constant 0 : index
    %15 = vector.load %arg4[%c0_15, %c0_16] : memref<1x4xi32, #tpu.memory_space<vmem>>, vector<1x4xi32>
    %16 = tpu.iota {dimensions = array<i32: 1>} : vector<4x8xi32>
    %17 = vector.broadcast %11 : vector<4x1xi32> to vector<4x8xi32>
    %18 = arith.cmpi eq, %17, %16 : vector<4x8xi32>
    %19 = arith.extui %18 : vector<4x8xi1> to vector<4x8xi32>
    %20 = arith.sitofp %19 : vector<4x8xi32> to vector<4x8xf32>
    %21 = vector.broadcast %12 : vector<4x1xi32> to vector<4x8xi32>
    %22 = arith.cmpi eq, %21, %16 : vector<4x8xi32>
    %23 = arith.extui %22 : vector<4x8xi1> to vector<4x8xi32>
    %24 = arith.sitofp %23 : vector<4x8xi32> to vector<4x8xf32>
    %25 = tpu.iota {dimensions = array<i32: 0>} : vector<8x4xi32>
    %26 = tpu.iota {dimensions = array<i32: 1>} : vector<8x4xi32>
    %c2_i32 = arith.constant 2 : i32
    %27 = vector.broadcast %c2_i32 : i32 to vector<8x4xi32>
    %28 = arith.muli %27, %26 : vector<8x4xi32>
    %c1_i32 = arith.constant 1 : i32
    %29 = vector.broadcast %c1_i32 : i32 to vector<8x4xi32>
    %30 = arith.addi %28, %29 : vector<8x4xi32>
    %31 = arith.sitofp %30 : vector<8x4xi32> to vector<8x4xf32>
    %32 = vector.broadcast %14 : vector<1x4xi32> to vector<8x4xi32>
    %33 = arith.cmpi eq, %25, %32 : vector<8x4xi32>
    %cst_17 = arith.constant 0.000000e+00 : f32
    %34 = vector.broadcast %cst_17 : f32 to vector<8x4xf32>
    %35 = arith.select %33, %31, %34 : vector<8x4xi1>, vector<8x4xf32>
    %36 = vector.broadcast %15 : vector<1x4xi32> to vector<8x4xi32>
    %37 = arith.cmpi eq, %25, %36 : vector<8x4xi32>
    %cst_18 = arith.constant 1.000000e+00 : f32
    %38 = vector.broadcast %cst_18 : f32 to vector<8x4xf32>
    %39 = arith.addf %31, %38 : vector<8x4xf32>
    %cst_19 = arith.constant 0.000000e+00 : f32
    %40 = vector.broadcast %cst_19 : f32 to vector<8x4xf32>
    %41 = arith.select %37, %39, %40 : vector<8x4xi1>, vector<8x4xf32>
    %cst_20 = arith.constant dense<0xFF800000> : vector<8xf32>
    %42 = vector.multi_reduction <maximumf>, %35, %cst_20 [1] : vector<8x4xf32> to vector<8xf32>
    %43 = vector.shape_cast %42 : vector<8xf32> to vector<8x1xf32>
    %cst_21 = arith.constant dense<0xFF800000> : vector<8xf32>
    %44 = vector.multi_reduction <maximumf>, %41, %cst_21 [1] : vector<8x4xf32> to vector<8xf32>
    %45 = vector.shape_cast %44 : vector<8xf32> to vector<8x1xf32>
    %46 = arith.maximumf %43, %45 : vector<8x1xf32>
    %cst_22 = arith.constant 0.000000e+00 : f32
    %47 = vector.broadcast %cst_22 : f32 to vector<8x1xf32>
    %48 = arith.cmpf ogt, %46, %47 : vector<8x1xf32>
    %49 = vector.broadcast %46 : vector<8x1xf32> to vector<8x4xf32>
    %50 = arith.cmpf oeq, %35, %49 : vector<8x4xf32>
    %51 = vector.broadcast %48 : vector<8x1xi1> to vector<8x4xi1>
    %52 = arith.andi %50, %51 : vector<8x4xi1>
    %53 = arith.extui %52 : vector<8x4xi1> to vector<8x4xi32>
    %54 = arith.sitofp %53 : vector<8x4xi32> to vector<8x4xf32>
    %55 = vector.broadcast %46 : vector<8x1xf32> to vector<8x4xf32>
    %56 = arith.cmpf oeq, %41, %55 : vector<8x4xf32>
    %57 = vector.broadcast %48 : vector<8x1xi1> to vector<8x4xi1>
    %58 = arith.andi %56, %57 : vector<8x4xi1>
    %59 = arith.extui %58 : vector<8x4xi1> to vector<8x4xi32>
    %60 = arith.sitofp %59 : vector<8x4xi32> to vector<8x4xf32>
    %c0_i32 = arith.constant 0 : i32
    %61 = vector.broadcast %c0_i32 : i32 to vector<4x1xi32>
    %62 = arith.cmpi eq, %13, %61 : vector<4x1xi32>
    %c1_i32_23 = arith.constant 1 : i32
    %63 = vector.broadcast %c1_i32_23 : i32 to vector<4x1xi32>
    %64 = arith.cmpi eq, %13, %63 : vector<4x1xi32>
    %c0_24 = arith.constant 0 : index
    %c0_25 = arith.constant 0 : index
    %c0_26 = arith.constant 0 : index
    %65 = vector.load %arg8[%c0_24, %c0_25, %c0_26] : memref<2x64x64xf32, #tpu.memory_space<vmem>>, vector<1x64x64xf32>
    %66 = vector.shape_cast %65 : vector<1x64x64xf32> to vector<64x64xf32>
    %c1 = arith.constant 1 : index
    %c0_27 = arith.constant 0 : index
    %c0_28 = arith.constant 0 : index
    %67 = vector.load %arg8[%c1, %c0_27, %c0_28] : memref<2x64x64xf32, #tpu.memory_space<vmem>>, vector<1x64x64xf32>
    %68 = vector.shape_cast %67 : vector<1x64x64xf32> to vector<64x64xf32>
    %c0_29 = arith.constant 0 : index
    %c0_30 = arith.constant 0 : index
    %c0_31 = arith.constant 0 : index
    %69 = vector.load %arg10[%c0_29, %c0_30, %c0_31] : memref<2x64x64xf32, #tpu.memory_space<vmem>>, vector<1x64x64xf32>
    %70 = vector.shape_cast %69 : vector<1x64x64xf32> to vector<64x64xf32>
    %c1_32 = arith.constant 1 : index
    %c0_33 = arith.constant 0 : index
    %c0_34 = arith.constant 0 : index
    %71 = vector.load %arg10[%c1_32, %c0_33, %c0_34] : memref<2x64x64xf32, #tpu.memory_space<vmem>>, vector<1x64x64xf32>
    %72 = vector.shape_cast %71 : vector<1x64x64xf32> to vector<64x64xf32>
    %c0_35 = arith.constant 0 : index
    %c0_36 = arith.constant 0 : index
    %c0_37 = arith.constant 0 : index
    %73 = vector.load %arg9[%c0_35, %c0_36, %c0_37] : memref<2x1x32xf32, #tpu.memory_space<vmem>>, vector<1x1x32xf32>
    %74 = vector.shape_cast %73 : vector<1x1x32xf32> to vector<1x32xf32>
    %c1_38 = arith.constant 1 : index
    %c0_39 = arith.constant 0 : index
    %c0_40 = arith.constant 0 : index
    %75 = vector.load %arg9[%c1_38, %c0_39, %c0_40] : memref<2x1x32xf32, #tpu.memory_space<vmem>>, vector<1x1x32xf32>
    %76 = vector.shape_cast %75 : vector<1x1x32xf32> to vector<1x32xf32>
    %c0_41 = arith.constant 0 : index
    %c0_42 = arith.constant 0 : index
    %c0_43 = arith.constant 0 : index
    %77 = vector.load %arg11[%c0_41, %c0_42, %c0_43] : memref<2x1x32xf32, #tpu.memory_space<vmem>>, vector<1x1x32xf32>
    %78 = vector.shape_cast %77 : vector<1x1x32xf32> to vector<1x32xf32>
    %c1_44 = arith.constant 1 : index
    %c0_45 = arith.constant 0 : index
    %c0_46 = arith.constant 0 : index
    %79 = vector.load %arg11[%c1_44, %c0_45, %c0_46] : memref<2x1x32xf32, #tpu.memory_space<vmem>>, vector<1x1x32xf32>
    %80 = vector.shape_cast %79 : vector<1x1x32xf32> to vector<1x32xf32>
    %c0_47 = arith.constant 0 : index
    %c0_48 = arith.constant 0 : index
    %81 = vector.load %arg5[%c0_47, %c0_48] : memref<8x32xf32, #tpu.memory_space<vmem>>, vector<8x32xf32>
    %82 = tpu.concatenate %81, %0 in 1 : vector<8x32xf32>, vector<8x8xf32> -> vector<8x40xf32>
    %cst_49 = arith.constant dense<0.000000e+00> : vector<8x64xf32>
    %83 = tpu.matmul %82, %10, %cst_49 {dimension_numbers = #tpu.dot_dimension_numbers<[1], [0], [0], [1], [0, 0, 1, 1], [], []>} : vector<8x40xf32>, vector<40x64xf32>, vector<8x64xf32> -> vector<8x64xf32>
    %84 = vector.extract_strided_slice %83 {offsets = [0, 0], sizes = [8, 32], strides = [1, 1]} : vector<8x64xf32> to vector<8x32xf32>
    %85 = arith.negf %84 : vector<8x32xf32>
    %86 = math.exp %85 : vector<8x32xf32>
    %cst_50 = arith.constant 1.000000e+00 : f32
    %87 = vector.broadcast %cst_50 : f32 to vector<8x32xf32>
    %88 = arith.addf %87, %86 : vector<8x32xf32>
    %89 = arith.divf %87, %88 : vector<8x32xf32>
    %90 = vector.extract_strided_slice %83 {offsets = [0, 32], sizes = [8, 32], strides = [1, 1]} : vector<8x64xf32> to vector<8x32xf32>
    %cst_51 = arith.constant 0.000000e+00 : f32
    %91 = vector.broadcast %cst_51 : f32 to vector<8x32xf32>
    %92 = arith.maximumf %90, %91 : vector<8x32xf32>
    %93 = arith.mulf %92, %89 : vector<8x32xf32>
    %94 = arith.addf %81, %93 : vector<8x32xf32>
    %95 = arith.mulf %94, %94 : vector<8x32xf32>
    %cst_52 = arith.constant dense<0.000000e+00> : vector<8xf32>
    %96 = vector.multi_reduction <add>, %95, %cst_52 [1] : vector<8x32xf32> to vector<8xf32>
    %97 = vector.shape_cast %96 : vector<8xf32> to vector<8x1xf32>
    %cst_53 = arith.constant 1.000000e-24 : f32
    %98 = vector.broadcast %cst_53 : f32 to vector<8x1xf32>
    %99 = arith.maximumf %97, %98 : vector<8x1xf32>
    %100 = math.rsqrt %99 : vector<8x1xf32>
    %101 = vector.broadcast %100 : vector<8x1xf32> to vector<8x32xf32>
    %102 = arith.mulf %94, %101 : vector<8x32xf32>
    %103 = vector.shape_cast %9 : vector<8x1xi1> to vector<8x1xi1>
    %104 = vector.broadcast %103 : vector<8x1xi1> to vector<8x32xi1>
    %105 = arith.select %104, %102, %81 : vector<8x32xi1>, vector<8x32xf32>
    %cst_54 = arith.constant dense<0.000000e+00> : vector<4x32xf32>
    %106 = tpu.matmul %20, %81, %cst_54 {dimension_numbers = #tpu.dot_dimension_numbers<[1], [0], [0], [1], [0, 0, 1, 1], [], []>} : vector<4x8xf32>, vector<8x32xf32>, vector<4x32xf32> -> vector<4x32xf32>
    %cst_55 = arith.constant dense<0.000000e+00> : vector<4x32xf32>
    %107 = tpu.matmul %24, %81, %cst_55 {dimension_numbers = #tpu.dot_dimension_numbers<[1], [0], [0], [1], [0, 0, 1, 1], [], []>} : vector<4x8xf32>, vector<8x32xf32>, vector<4x32xf32> -> vector<4x32xf32>
    %108 = tpu.concatenate %106, %107 in 1 : vector<4x32xf32>, vector<4x32xf32> -> vector<4x64xf32>
    %109 = tpu.concatenate %107, %106 in 1 : vector<4x32xf32>, vector<4x32xf32> -> vector<4x64xf32>
    %cst_56 = arith.constant 0.000000e+00 : f32
    %110 = vector.broadcast %cst_56 : f32 to vector<4x32xf32>
    %cst_57 = arith.constant 0.000000e+00 : f32
    %111 = vector.broadcast %cst_57 : f32 to vector<4x32xf32>
    %cst_58 = arith.constant dense<0.000000e+00> : vector<4x64xf32>
    %112 = tpu.matmul %108, %66, %cst_58 {dimension_numbers = #tpu.dot_dimension_numbers<[1], [0], [0], [1], [0, 0, 1, 1], [], []>} : vector<4x64xf32>, vector<64x64xf32>, vector<4x64xf32> -> vector<4x64xf32>
    %113 = vector.broadcast %74 : vector<1x32xf32> to vector<4x32xf32>
    %114 = arith.mulf %107, %113 : vector<4x32xf32>
    %cst_59 = arith.constant dense<0.000000e+00> : vector<4xf32>
    %115 = vector.multi_reduction <add>, %114, %cst_59 [1] : vector<4x32xf32> to vector<4xf32>
    %116 = vector.shape_cast %115 : vector<4xf32> to vector<4x1xf32>
    %117 = vector.extract_strided_slice %112 {offsets = [0, 32], sizes = [4, 32], strides = [1, 1]} : vector<4x64xf32> to vector<4x32xf32>
    %118 = vector.broadcast %116 : vector<4x1xf32> to vector<4x32xf32>
    %119 = arith.mulf %106, %118 : vector<4x32xf32>
    %120 = arith.addf %117, %119 : vector<4x32xf32>
    %cst_60 = arith.constant 0.000000e+00 : f32
    %121 = vector.broadcast %cst_60 : f32 to vector<4x32xf32>
    %122 = arith.maximumf %120, %121 : vector<4x32xf32>
    %123 = vector.extract_strided_slice %112 {offsets = [0, 0], sizes = [4, 32], strides = [1, 1]} : vector<4x64xf32> to vector<4x32xf32>
    %124 = arith.negf %123 : vector<4x32xf32>
    %125 = math.exp %124 : vector<4x32xf32>
    %cst_61 = arith.constant 1.000000e+00 : f32
    %126 = vector.broadcast %cst_61 : f32 to vector<4x32xf32>
    %127 = arith.addf %126, %125 : vector<4x32xf32>
    %128 = arith.divf %126, %127 : vector<4x32xf32>
    %129 = arith.mulf %122, %128 : vector<4x32xf32>
    %130 = arith.addf %106, %129 : vector<4x32xf32>
    %131 = arith.mulf %130, %130 : vector<4x32xf32>
    %cst_62 = arith.constant dense<0.000000e+00> : vector<4xf32>
    %132 = vector.multi_reduction <add>, %131, %cst_62 [1] : vector<4x32xf32> to vector<4xf32>
    %133 = vector.shape_cast %132 : vector<4xf32> to vector<4x1xf32>
    %cst_63 = arith.constant 1.000000e-24 : f32
    %134 = vector.broadcast %cst_63 : f32 to vector<4x1xf32>
    %135 = arith.maximumf %133, %134 : vector<4x1xf32>
    %136 = math.rsqrt %135 : vector<4x1xf32>
    %137 = vector.broadcast %136 : vector<4x1xf32> to vector<4x32xf32>
    %138 = arith.mulf %130, %137 : vector<4x32xf32>
    %139 = vector.shape_cast %62 : vector<4x1xi1> to vector<4x1xi1>
    %140 = vector.broadcast %139 : vector<4x1xi1> to vector<4x32xi1>
    %141 = arith.select %140, %138, %110 : vector<4x32xi1>, vector<4x32xf32>
    %cst_64 = arith.constant dense<0.000000e+00> : vector<4x64xf32>
    %142 = tpu.matmul %109, %70, %cst_64 {dimension_numbers = #tpu.dot_dimension_numbers<[1], [0], [0], [1], [0, 0, 1, 1], [], []>} : vector<4x64xf32>, vector<64x64xf32>, vector<4x64xf32> -> vector<4x64xf32>
    %143 = vector.broadcast %78 : vector<1x32xf32> to vector<4x32xf32>
    %144 = arith.mulf %106, %143 : vector<4x32xf32>
    %cst_65 = arith.constant dense<0.000000e+00> : vector<4xf32>
    %145 = vector.multi_reduction <add>, %144, %cst_65 [1] : vector<4x32xf32> to vector<4xf32>
    %146 = vector.shape_cast %145 : vector<4xf32> to vector<4x1xf32>
    %147 = vector.extract_strided_slice %142 {offsets = [0, 32], sizes = [4, 32], strides = [1, 1]} : vector<4x64xf32> to vector<4x32xf32>
    %148 = vector.broadcast %146 : vector<4x1xf32> to vector<4x32xf32>
    %149 = arith.mulf %107, %148 : vector<4x32xf32>
    %150 = arith.addf %147, %149 : vector<4x32xf32>
    %cst_66 = arith.constant 0.000000e+00 : f32
    %151 = vector.broadcast %cst_66 : f32 to vector<4x32xf32>
    %152 = arith.maximumf %150, %151 : vector<4x32xf32>
    %153 = vector.extract_strided_slice %142 {offsets = [0, 0], sizes = [4, 32], strides = [1, 1]} : vector<4x64xf32> to vector<4x32xf32>
    %154 = arith.negf %153 : vector<4x32xf32>
    %155 = math.exp %154 : vector<4x32xf32>
    %cst_67 = arith.constant 1.000000e+00 : f32
    %156 = vector.broadcast %cst_67 : f32 to vector<4x32xf32>
    %157 = arith.addf %156, %155 : vector<4x32xf32>
    %158 = arith.divf %156, %157 : vector<4x32xf32>
    %159 = arith.mulf %152, %158 : vector<4x32xf32>
    %160 = arith.addf %107, %159 : vector<4x32xf32>
    %161 = arith.mulf %160, %160 : vector<4x32xf32>
    %cst_68 = arith.constant dense<0.000000e+00> : vector<4xf32>
    %162 = vector.multi_reduction <add>, %161, %cst_68 [1] : vector<4x32xf32> to vector<4xf32>
    %163 = vector.shape_cast %162 : vector<4xf32> to vector<4x1xf32>
    %cst_69 = arith.constant 1.000000e-24 : f32
    %164 = vector.broadcast %cst_69 : f32 to vector<4x1xf32>
    %165 = arith.maximumf %163, %164 : vector<4x1xf32>
    %166 = math.rsqrt %165 : vector<4x1xf32>
    %167 = vector.broadcast %166 : vector<4x1xf32> to vector<4x32xf32>
    %168 = arith.mulf %160, %167 : vector<4x32xf32>
    %169 = vector.shape_cast %62 : vector<4x1xi1> to vector<4x1xi1>
    %170 = vector.broadcast %169 : vector<4x1xi1> to vector<4x32xi1>
    %171 = arith.select %170, %168, %111 : vector<4x32xi1>, vector<4x32xf32>
    %cst_70 = arith.constant dense<0.000000e+00> : vector<4x64xf32>
    %172 = tpu.matmul %108, %68, %cst_70 {dimension_numbers = #tpu.dot_dimension_numbers<[1], [0], [0], [1], [0, 0, 1, 1], [], []>} : vector<4x64xf32>, vector<64x64xf32>, vector<4x64xf32> -> vector<4x64xf32>
    %173 = vector.broadcast %76 : vector<1x32xf32> to vector<4x32xf32>
    %174 = arith.mulf %107, %173 : vector<4x32xf32>
    %cst_71 = arith.constant dense<0.000000e+00> : vector<4xf32>
    %175 = vector.multi_reduction <add>, %174, %cst_71 [1] : vector<4x32xf32> to vector<4xf32>
    %176 = vector.shape_cast %175 : vector<4xf32> to vector<4x1xf32>
    %177 = vector.extract_strided_slice %172 {offsets = [0, 32], sizes = [4, 32], strides = [1, 1]} : vector<4x64xf32> to vector<4x32xf32>
    %178 = vector.broadcast %176 : vector<4x1xf32> to vector<4x32xf32>
    %179 = arith.mulf %106, %178 : vector<4x32xf32>
    %180 = arith.addf %177, %179 : vector<4x32xf32>
    %cst_72 = arith.constant 0.000000e+00 : f32
    %181 = vector.broadcast %cst_72 : f32 to vector<4x32xf32>
    %182 = arith.maximumf %180, %181 : vector<4x32xf32>
    %183 = vector.extract_strided_slice %172 {offsets = [0, 0], sizes = [4, 32], strides = [1, 1]} : vector<4x64xf32> to vector<4x32xf32>
    %184 = arith.negf %183 : vector<4x32xf32>
    %185 = math.exp %184 : vector<4x32xf32>
    %cst_73 = arith.constant 1.000000e+00 : f32
    %186 = vector.broadcast %cst_73 : f32 to vector<4x32xf32>
    %187 = arith.addf %186, %185 : vector<4x32xf32>
    %188 = arith.divf %186, %187 : vector<4x32xf32>
    %189 = arith.mulf %182, %188 : vector<4x32xf32>
    %190 = arith.addf %106, %189 : vector<4x32xf32>
    %191 = arith.mulf %190, %190 : vector<4x32xf32>
    %cst_74 = arith.constant dense<0.000000e+00> : vector<4xf32>
    %192 = vector.multi_reduction <add>, %191, %cst_74 [1] : vector<4x32xf32> to vector<4xf32>
    %193 = vector.shape_cast %192 : vector<4xf32> to vector<4x1xf32>
    %cst_75 = arith.constant 1.000000e-24 : f32
    %194 = vector.broadcast %cst_75 : f32 to vector<4x1xf32>
    %195 = arith.maximumf %193, %194 : vector<4x1xf32>
    %196 = math.rsqrt %195 : vector<4x1xf32>
    %197 = vector.broadcast %196 : vector<4x1xf32> to vector<4x32xf32>
    %198 = arith.mulf %190, %197 : vector<4x32xf32>
    %199 = vector.shape_cast %64 : vector<4x1xi1> to vector<4x1xi1>
    %200 = vector.broadcast %199 : vector<4x1xi1> to vector<4x32xi1>
    %201 = arith.select %200, %198, %141 : vector<4x32xi1>, vector<4x32xf32>
    %cst_76 = arith.constant dense<0.000000e+00> : vector<4x64xf32>
    %202 = tpu.matmul %109, %72, %cst_76 {dimension_numbers = #tpu.dot_dimension_numbers<[1], [0], [0], [1], [0, 0, 1, 1], [], []>} : vector<4x64xf32>, vector<64x64xf32>, vector<4x64xf32> -> vector<4x64xf32>
    %203 = vector.broadcast %80 : vector<1x32xf32> to vector<4x32xf32>
    %204 = arith.mulf %106, %203 : vector<4x32xf32>
    %cst_77 = arith.constant dense<0.000000e+00> : vector<4xf32>
    %205 = vector.multi_reduction <add>, %204, %cst_77 [1] : vector<4x32xf32> to vector<4xf32>
    %206 = vector.shape_cast %205 : vector<4xf32> to vector<4x1xf32>
    %207 = vector.extract_strided_slice %202 {offsets = [0, 32], sizes = [4, 32], strides = [1, 1]} : vector<4x64xf32> to vector<4x32xf32>
    %208 = vector.broadcast %206 : vector<4x1xf32> to vector<4x32xf32>
    %209 = arith.mulf %107, %208 : vector<4x32xf32>
    %210 = arith.addf %207, %209 : vector<4x32xf32>
    %cst_78 = arith.constant 0.000000e+00 : f32
    %211 = vector.broadcast %cst_78 : f32 to vector<4x32xf32>
    %212 = arith.maximumf %210, %211 : vector<4x32xf32>
    %213 = vector.extract_strided_slice %202 {offsets = [0, 0], sizes = [4, 32], strides = [1, 1]} : vector<4x64xf32> to vector<4x32xf32>
    %214 = arith.negf %213 : vector<4x32xf32>
    %215 = math.exp %214 : vector<4x32xf32>
    %cst_79 = arith.constant 1.000000e+00 : f32
    %216 = vector.broadcast %cst_79 : f32 to vector<4x32xf32>
    %217 = arith.addf %216, %215 : vector<4x32xf32>
    %218 = arith.divf %216, %217 : vector<4x32xf32>
    %219 = arith.mulf %212, %218 : vector<4x32xf32>
    %220 = arith.addf %107, %219 : vector<4x32xf32>
    %221 = arith.mulf %220, %220 : vector<4x32xf32>
    %cst_80 = arith.constant dense<0.000000e+00> : vector<4xf32>
    %222 = vector.multi_reduction <add>, %221, %cst_80 [1] : vector<4x32xf32> to vector<4xf32>
    %223 = vector.shape_cast %222 : vector<4xf32> to vector<4x1xf32>
    %cst_81 = arith.constant 1.000000e-24 : f32
    %224 = vector.broadcast %cst_81 : f32 to vector<4x1xf32>
    %225 = arith.maximumf %223, %224 : vector<4x1xf32>
    %226 = math.rsqrt %225 : vector<4x1xf32>
    %227 = vector.broadcast %226 : vector<4x1xf32> to vector<4x32xf32>
    %228 = arith.mulf %220, %227 : vector<4x32xf32>
    %229 = vector.shape_cast %64 : vector<4x1xi1> to vector<4x1xi1>
    %230 = vector.broadcast %229 : vector<4x1xi1> to vector<4x32xi1>
    %231 = arith.select %230, %228, %171 : vector<4x32xi1>, vector<4x32xf32>
    %cst_82 = arith.constant dense<0.000000e+00> : vector<8x32xf32>
    %232 = tpu.matmul %54, %201, %cst_82 {dimension_numbers = #tpu.dot_dimension_numbers<[1], [0], [0], [1], [0, 0, 1, 1], [], []>} : vector<8x4xf32>, vector<4x32xf32>, vector<8x32xf32> -> vector<8x32xf32>
    %cst_83 = arith.constant dense<0.000000e+00> : vector<8x32xf32>
    %233 = tpu.matmul %60, %231, %cst_83 {dimension_numbers = #tpu.dot_dimension_numbers<[1], [0], [0], [1], [0, 0, 1, 1], [], []>} : vector<8x4xf32>, vector<4x32xf32>, vector<8x32xf32> -> vector<8x32xf32>
    %234 = arith.addf %232, %233 : vector<8x32xf32>
    %235 = vector.shape_cast %48 : vector<8x1xi1> to vector<8x1xi1>
    %236 = vector.broadcast %235 : vector<8x1xi1> to vector<8x32xi1>
    %237 = arith.select %236, %234, %105 : vector<8x32xi1>, vector<8x32xf32>
    %238 = tpu.concatenate %237, %0 in 1 : vector<8x32xf32>, vector<8x8xf32> -> vector<8x40xf32>
    %cst_84 = arith.constant dense<0.000000e+00> : vector<8x64xf32>
    %239 = tpu.matmul %238, %10, %cst_84 {dimension_numbers = #tpu.dot_dimension_numbers<[1], [0], [0], [1], [0, 0, 1, 1], [], []>} : vector<8x40xf32>, vector<40x64xf32>, vector<8x64xf32> -> vector<8x64xf32>
    %240 = vector.extract_strided_slice %239 {offsets = [0, 0], sizes = [8, 32], strides = [1, 1]} : vector<8x64xf32> to vector<8x32xf32>
    %241 = arith.negf %240 : vector<8x32xf32>
    %242 = math.exp %241 : vector<8x32xf32>
    %cst_85 = arith.constant 1.000000e+00 : f32
    %243 = vector.broadcast %cst_85 : f32 to vector<8x32xf32>
    %244 = arith.addf %243, %242 : vector<8x32xf32>
    %245 = arith.divf %243, %244 : vector<8x32xf32>
    %246 = vector.extract_strided_slice %239 {offsets = [0, 32], sizes = [8, 32], strides = [1, 1]} : vector<8x64xf32> to vector<8x32xf32>
    %cst_86 = arith.constant 0.000000e+00 : f32
    %247 = vector.broadcast %cst_86 : f32 to vector<8x32xf32>
    %248 = arith.maximumf %246, %247 : vector<8x32xf32>
    %249 = arith.mulf %248, %245 : vector<8x32xf32>
    %250 = arith.addf %237, %249 : vector<8x32xf32>
    %251 = arith.mulf %250, %250 : vector<8x32xf32>
    %cst_87 = arith.constant dense<0.000000e+00> : vector<8xf32>
    %252 = vector.multi_reduction <add>, %251, %cst_87 [1] : vector<8x32xf32> to vector<8xf32>
    %253 = vector.shape_cast %252 : vector<8xf32> to vector<8x1xf32>
    %cst_88 = arith.constant 1.000000e-24 : f32
    %254 = vector.broadcast %cst_88 : f32 to vector<8x1xf32>
    %255 = arith.maximumf %253, %254 : vector<8x1xf32>
    %256 = math.rsqrt %255 : vector<8x1xf32>
    %257 = vector.broadcast %256 : vector<8x1xf32> to vector<8x32xf32>
    %258 = arith.mulf %250, %257 : vector<8x32xf32>
    %259 = vector.shape_cast %9 : vector<8x1xi1> to vector<8x1xi1>
    %260 = vector.broadcast %259 : vector<8x1xi1> to vector<8x32xi1>
    %261 = arith.select %260, %258, %237 : vector<8x32xi1>, vector<8x32xf32>
    %cst_89 = arith.constant dense<0.000000e+00> : vector<4x32xf32>
    %262 = tpu.matmul %20, %237, %cst_89 {dimension_numbers = #tpu.dot_dimension_numbers<[1], [0], [0], [1], [0, 0, 1, 1], [], []>} : vector<4x8xf32>, vector<8x32xf32>, vector<4x32xf32> -> vector<4x32xf32>
    %cst_90 = arith.constant dense<0.000000e+00> : vector<4x32xf32>
    %263 = tpu.matmul %24, %237, %cst_90 {dimension_numbers = #tpu.dot_dimension_numbers<[1], [0], [0], [1], [0, 0, 1, 1], [], []>} : vector<4x8xf32>, vector<8x32xf32>, vector<4x32xf32> -> vector<4x32xf32>
    %264 = tpu.concatenate %262, %263 in 1 : vector<4x32xf32>, vector<4x32xf32> -> vector<4x64xf32>
    %265 = tpu.concatenate %263, %262 in 1 : vector<4x32xf32>, vector<4x32xf32> -> vector<4x64xf32>
    %cst_91 = arith.constant 0.000000e+00 : f32
    %266 = vector.broadcast %cst_91 : f32 to vector<4x32xf32>
    %cst_92 = arith.constant 0.000000e+00 : f32
    %267 = vector.broadcast %cst_92 : f32 to vector<4x32xf32>
    %cst_93 = arith.constant dense<0.000000e+00> : vector<4x64xf32>
    %268 = tpu.matmul %264, %66, %cst_93 {dimension_numbers = #tpu.dot_dimension_numbers<[1], [0], [0], [1], [0, 0, 1, 1], [], []>} : vector<4x64xf32>, vector<64x64xf32>, vector<4x64xf32> -> vector<4x64xf32>
    %269 = vector.broadcast %74 : vector<1x32xf32> to vector<4x32xf32>
    %270 = arith.mulf %263, %269 : vector<4x32xf32>
    %cst_94 = arith.constant dense<0.000000e+00> : vector<4xf32>
    %271 = vector.multi_reduction <add>, %270, %cst_94 [1] : vector<4x32xf32> to vector<4xf32>
    %272 = vector.shape_cast %271 : vector<4xf32> to vector<4x1xf32>
    %273 = vector.extract_strided_slice %268 {offsets = [0, 32], sizes = [4, 32], strides = [1, 1]} : vector<4x64xf32> to vector<4x32xf32>
    %274 = vector.broadcast %272 : vector<4x1xf32> to vector<4x32xf32>
    %275 = arith.mulf %262, %274 : vector<4x32xf32>
    %276 = arith.addf %273, %275 : vector<4x32xf32>
    %cst_95 = arith.constant 0.000000e+00 : f32
    %277 = vector.broadcast %cst_95 : f32 to vector<4x32xf32>
    %278 = arith.maximumf %276, %277 : vector<4x32xf32>
    %279 = vector.extract_strided_slice %268 {offsets = [0, 0], sizes = [4, 32], strides = [1, 1]} : vector<4x64xf32> to vector<4x32xf32>
    %280 = arith.negf %279 : vector<4x32xf32>
    %281 = math.exp %280 : vector<4x32xf32>
    %cst_96 = arith.constant 1.000000e+00 : f32
    %282 = vector.broadcast %cst_96 : f32 to vector<4x32xf32>
    %283 = arith.addf %282, %281 : vector<4x32xf32>
    %284 = arith.divf %282, %283 : vector<4x32xf32>
    %285 = arith.mulf %278, %284 : vector<4x32xf32>
    %286 = arith.addf %262, %285 : vector<4x32xf32>
    %287 = arith.mulf %286, %286 : vector<4x32xf32>
    %cst_97 = arith.constant dense<0.000000e+00> : vector<4xf32>
    %288 = vector.multi_reduction <add>, %287, %cst_97 [1] : vector<4x32xf32> to vector<4xf32>
    %289 = vector.shape_cast %288 : vector<4xf32> to vector<4x1xf32>
    %cst_98 = arith.constant 1.000000e-24 : f32
    %290 = vector.broadcast %cst_98 : f32 to vector<4x1xf32>
    %291 = arith.maximumf %289, %290 : vector<4x1xf32>
    %292 = math.rsqrt %291 : vector<4x1xf32>
    %293 = vector.broadcast %292 : vector<4x1xf32> to vector<4x32xf32>
    %294 = arith.mulf %286, %293 : vector<4x32xf32>
    %295 = vector.shape_cast %62 : vector<4x1xi1> to vector<4x1xi1>
    %296 = vector.broadcast %295 : vector<4x1xi1> to vector<4x32xi1>
    %297 = arith.select %296, %294, %266 : vector<4x32xi1>, vector<4x32xf32>
    %cst_99 = arith.constant dense<0.000000e+00> : vector<4x64xf32>
    %298 = tpu.matmul %265, %70, %cst_99 {dimension_numbers = #tpu.dot_dimension_numbers<[1], [0], [0], [1], [0, 0, 1, 1], [], []>} : vector<4x64xf32>, vector<64x64xf32>, vector<4x64xf32> -> vector<4x64xf32>
    %299 = vector.broadcast %78 : vector<1x32xf32> to vector<4x32xf32>
    %300 = arith.mulf %262, %299 : vector<4x32xf32>
    %cst_100 = arith.constant dense<0.000000e+00> : vector<4xf32>
    %301 = vector.multi_reduction <add>, %300, %cst_100 [1] : vector<4x32xf32> to vector<4xf32>
    %302 = vector.shape_cast %301 : vector<4xf32> to vector<4x1xf32>
    %303 = vector.extract_strided_slice %298 {offsets = [0, 32], sizes = [4, 32], strides = [1, 1]} : vector<4x64xf32> to vector<4x32xf32>
    %304 = vector.broadcast %302 : vector<4x1xf32> to vector<4x32xf32>
    %305 = arith.mulf %263, %304 : vector<4x32xf32>
    %306 = arith.addf %303, %305 : vector<4x32xf32>
    %cst_101 = arith.constant 0.000000e+00 : f32
    %307 = vector.broadcast %cst_101 : f32 to vector<4x32xf32>
    %308 = arith.maximumf %306, %307 : vector<4x32xf32>
    %309 = vector.extract_strided_slice %298 {offsets = [0, 0], sizes = [4, 32], strides = [1, 1]} : vector<4x64xf32> to vector<4x32xf32>
    %310 = arith.negf %309 : vector<4x32xf32>
    %311 = math.exp %310 : vector<4x32xf32>
    %cst_102 = arith.constant 1.000000e+00 : f32
    %312 = vector.broadcast %cst_102 : f32 to vector<4x32xf32>
    %313 = arith.addf %312, %311 : vector<4x32xf32>
    %314 = arith.divf %312, %313 : vector<4x32xf32>
    %315 = arith.mulf %308, %314 : vector<4x32xf32>
    %316 = arith.addf %263, %315 : vector<4x32xf32>
    %317 = arith.mulf %316, %316 : vector<4x32xf32>
    %cst_103 = arith.constant dense<0.000000e+00> : vector<4xf32>
    %318 = vector.multi_reduction <add>, %317, %cst_103 [1] : vector<4x32xf32> to vector<4xf32>
    %319 = vector.shape_cast %318 : vector<4xf32> to vector<4x1xf32>
    %cst_104 = arith.constant 1.000000e-24 : f32
    %320 = vector.broadcast %cst_104 : f32 to vector<4x1xf32>
    %321 = arith.maximumf %319, %320 : vector<4x1xf32>
    %322 = math.rsqrt %321 : vector<4x1xf32>
    %323 = vector.broadcast %322 : vector<4x1xf32> to vector<4x32xf32>
    %324 = arith.mulf %316, %323 : vector<4x32xf32>
    %325 = vector.shape_cast %62 : vector<4x1xi1> to vector<4x1xi1>
    %326 = vector.broadcast %325 : vector<4x1xi1> to vector<4x32xi1>
    %327 = arith.select %326, %324, %267 : vector<4x32xi1>, vector<4x32xf32>
    %cst_105 = arith.constant dense<0.000000e+00> : vector<4x64xf32>
    %328 = tpu.matmul %264, %68, %cst_105 {dimension_numbers = #tpu.dot_dimension_numbers<[1], [0], [0], [1], [0, 0, 1, 1], [], []>} : vector<4x64xf32>, vector<64x64xf32>, vector<4x64xf32> -> vector<4x64xf32>
    %329 = vector.broadcast %76 : vector<1x32xf32> to vector<4x32xf32>
    %330 = arith.mulf %263, %329 : vector<4x32xf32>
    %cst_106 = arith.constant dense<0.000000e+00> : vector<4xf32>
    %331 = vector.multi_reduction <add>, %330, %cst_106 [1] : vector<4x32xf32> to vector<4xf32>
    %332 = vector.shape_cast %331 : vector<4xf32> to vector<4x1xf32>
    %333 = vector.extract_strided_slice %328 {offsets = [0, 32], sizes = [4, 32], strides = [1, 1]} : vector<4x64xf32> to vector<4x32xf32>
    %334 = vector.broadcast %332 : vector<4x1xf32> to vector<4x32xf32>
    %335 = arith.mulf %262, %334 : vector<4x32xf32>
    %336 = arith.addf %333, %335 : vector<4x32xf32>
    %cst_107 = arith.constant 0.000000e+00 : f32
    %337 = vector.broadcast %cst_107 : f32 to vector<4x32xf32>
    %338 = arith.maximumf %336, %337 : vector<4x32xf32>
    %339 = vector.extract_strided_slice %328 {offsets = [0, 0], sizes = [4, 32], strides = [1, 1]} : vector<4x64xf32> to vector<4x32xf32>
    %340 = arith.negf %339 : vector<4x32xf32>
    %341 = math.exp %340 : vector<4x32xf32>
    %cst_108 = arith.constant 1.000000e+00 : f32
    %342 = vector.broadcast %cst_108 : f32 to vector<4x32xf32>
    %343 = arith.addf %342, %341 : vector<4x32xf32>
    %344 = arith.divf %342, %343 : vector<4x32xf32>
    %345 = arith.mulf %338, %344 : vector<4x32xf32>
    %346 = arith.addf %262, %345 : vector<4x32xf32>
    %347 = arith.mulf %346, %346 : vector<4x32xf32>
    %cst_109 = arith.constant dense<0.000000e+00> : vector<4xf32>
    %348 = vector.multi_reduction <add>, %347, %cst_109 [1] : vector<4x32xf32> to vector<4xf32>
    %349 = vector.shape_cast %348 : vector<4xf32> to vector<4x1xf32>
    %cst_110 = arith.constant 1.000000e-24 : f32
    %350 = vector.broadcast %cst_110 : f32 to vector<4x1xf32>
    %351 = arith.maximumf %349, %350 : vector<4x1xf32>
    %352 = math.rsqrt %351 : vector<4x1xf32>
    %353 = vector.broadcast %352 : vector<4x1xf32> to vector<4x32xf32>
    %354 = arith.mulf %346, %353 : vector<4x32xf32>
    %355 = vector.shape_cast %64 : vector<4x1xi1> to vector<4x1xi1>
    %356 = vector.broadcast %355 : vector<4x1xi1> to vector<4x32xi1>
    %357 = arith.select %356, %354, %297 : vector<4x32xi1>, vector<4x32xf32>
    %cst_111 = arith.constant dense<0.000000e+00> : vector<4x64xf32>
    %358 = tpu.matmul %265, %72, %cst_111 {dimension_numbers = #tpu.dot_dimension_numbers<[1], [0], [0], [1], [0, 0, 1, 1], [], []>} : vector<4x64xf32>, vector<64x64xf32>, vector<4x64xf32> -> vector<4x64xf32>
    %359 = vector.broadcast %80 : vector<1x32xf32> to vector<4x32xf32>
    %360 = arith.mulf %262, %359 : vector<4x32xf32>
    %cst_112 = arith.constant dense<0.000000e+00> : vector<4xf32>
    %361 = vector.multi_reduction <add>, %360, %cst_112 [1] : vector<4x32xf32> to vector<4xf32>
    %362 = vector.shape_cast %361 : vector<4xf32> to vector<4x1xf32>
    %363 = vector.extract_strided_slice %358 {offsets = [0, 32], sizes = [4, 32], strides = [1, 1]} : vector<4x64xf32> to vector<4x32xf32>
    %364 = vector.broadcast %362 : vector<4x1xf32> to vector<4x32xf32>
    %365 = arith.mulf %263, %364 : vector<4x32xf32>
    %366 = arith.addf %363, %365 : vector<4x32xf32>
    %cst_113 = arith.constant 0.000000e+00 : f32
    %367 = vector.broadcast %cst_113 : f32 to vector<4x32xf32>
    %368 = arith.maximumf %366, %367 : vector<4x32xf32>
    %369 = vector.extract_strided_slice %358 {offsets = [0, 0], sizes = [4, 32], strides = [1, 1]} : vector<4x64xf32> to vector<4x32xf32>
    %370 = arith.negf %369 : vector<4x32xf32>
    %371 = math.exp %370 : vector<4x32xf32>
    %cst_114 = arith.constant 1.000000e+00 : f32
    %372 = vector.broadcast %cst_114 : f32 to vector<4x32xf32>
    %373 = arith.addf %372, %371 : vector<4x32xf32>
    %374 = arith.divf %372, %373 : vector<4x32xf32>
    %375 = arith.mulf %368, %374 : vector<4x32xf32>
    %376 = arith.addf %263, %375 : vector<4x32xf32>
    %377 = arith.mulf %376, %376 : vector<4x32xf32>
    %cst_115 = arith.constant dense<0.000000e+00> : vector<4xf32>
    %378 = vector.multi_reduction <add>, %377, %cst_115 [1] : vector<4x32xf32> to vector<4xf32>
    %379 = vector.shape_cast %378 : vector<4xf32> to vector<4x1xf32>
    %cst_116 = arith.constant 1.000000e-24 : f32
    %380 = vector.broadcast %cst_116 : f32 to vector<4x1xf32>
    %381 = arith.maximumf %379, %380 : vector<4x1xf32>
    %382 = math.rsqrt %381 : vector<4x1xf32>
    %383 = vector.broadcast %382 : vector<4x1xf32> to vector<4x32xf32>
    %384 = arith.mulf %376, %383 : vector<4x32xf32>
    %385 = vector.shape_cast %64 : vector<4x1xi1> to vector<4x1xi1>
    %386 = vector.broadcast %385 : vector<4x1xi1> to vector<4x32xi1>
    %387 = arith.select %386, %384, %327 : vector<4x32xi1>, vector<4x32xf32>
    %cst_117 = arith.constant dense<0.000000e+00> : vector<8x32xf32>
    %388 = tpu.matmul %54, %357, %cst_117 {dimension_numbers = #tpu.dot_dimension_numbers<[1], [0], [0], [1], [0, 0, 1, 1], [], []>} : vector<8x4xf32>, vector<4x32xf32>, vector<8x32xf32> -> vector<8x32xf32>
    %cst_118 = arith.constant dense<0.000000e+00> : vector<8x32xf32>
    %389 = tpu.matmul %60, %387, %cst_118 {dimension_numbers = #tpu.dot_dimension_numbers<[1], [0], [0], [1], [0, 0, 1, 1], [], []>} : vector<8x4xf32>, vector<4x32xf32>, vector<8x32xf32> -> vector<8x32xf32>
    %390 = arith.addf %388, %389 : vector<8x32xf32>
    %391 = vector.shape_cast %48 : vector<8x1xi1> to vector<8x1xi1>
    %392 = vector.broadcast %391 : vector<8x1xi1> to vector<8x32xi1>
    %393 = arith.select %392, %390, %261 : vector<8x32xi1>, vector<8x32xf32>
    %394 = tpu.concatenate %393, %0 in 1 : vector<8x32xf32>, vector<8x8xf32> -> vector<8x40xf32>
    %cst_119 = arith.constant dense<0.000000e+00> : vector<8x64xf32>
    %395 = tpu.matmul %394, %10, %cst_119 {dimension_numbers = #tpu.dot_dimension_numbers<[1], [0], [0], [1], [0, 0, 1, 1], [], []>} : vector<8x40xf32>, vector<40x64xf32>, vector<8x64xf32> -> vector<8x64xf32>
    %396 = vector.extract_strided_slice %395 {offsets = [0, 0], sizes = [8, 32], strides = [1, 1]} : vector<8x64xf32> to vector<8x32xf32>
    %397 = arith.negf %396 : vector<8x32xf32>
    %398 = math.exp %397 : vector<8x32xf32>
    %cst_120 = arith.constant 1.000000e+00 : f32
    %399 = vector.broadcast %cst_120 : f32 to vector<8x32xf32>
    %400 = arith.addf %399, %398 : vector<8x32xf32>
    %401 = arith.divf %399, %400 : vector<8x32xf32>
    %402 = vector.extract_strided_slice %395 {offsets = [0, 32], sizes = [8, 32], strides = [1, 1]} : vector<8x64xf32> to vector<8x32xf32>
    %cst_121 = arith.constant 0.000000e+00 : f32
    %403 = vector.broadcast %cst_121 : f32 to vector<8x32xf32>
    %404 = arith.maximumf %402, %403 : vector<8x32xf32>
    %405 = arith.mulf %404, %401 : vector<8x32xf32>
    %406 = arith.addf %393, %405 : vector<8x32xf32>
    %407 = arith.mulf %406, %406 : vector<8x32xf32>
    %cst_122 = arith.constant dense<0.000000e+00> : vector<8xf32>
    %408 = vector.multi_reduction <add>, %407, %cst_122 [1] : vector<8x32xf32> to vector<8xf32>
    %409 = vector.shape_cast %408 : vector<8xf32> to vector<8x1xf32>
    %cst_123 = arith.constant 1.000000e-24 : f32
    %410 = vector.broadcast %cst_123 : f32 to vector<8x1xf32>
    %411 = arith.maximumf %409, %410 : vector<8x1xf32>
    %412 = math.rsqrt %411 : vector<8x1xf32>
    %413 = vector.broadcast %412 : vector<8x1xf32> to vector<8x32xf32>
    %414 = arith.mulf %406, %413 : vector<8x32xf32>
    %415 = vector.shape_cast %9 : vector<8x1xi1> to vector<8x1xi1>
    %416 = vector.broadcast %415 : vector<8x1xi1> to vector<8x32xi1>
    %417 = arith.select %416, %414, %393 : vector<8x32xi1>, vector<8x32xf32>
    %cst_124 = arith.constant dense<0.000000e+00> : vector<4x32xf32>
    %418 = tpu.matmul %20, %393, %cst_124 {dimension_numbers = #tpu.dot_dimension_numbers<[1], [0], [0], [1], [0, 0, 1, 1], [], []>} : vector<4x8xf32>, vector<8x32xf32>, vector<4x32xf32> -> vector<4x32xf32>
    %cst_125 = arith.constant dense<0.000000e+00> : vector<4x32xf32>
    %419 = tpu.matmul %24, %393, %cst_125 {dimension_numbers = #tpu.dot_dimension_numbers<[1], [0], [0], [1], [0, 0, 1, 1], [], []>} : vector<4x8xf32>, vector<8x32xf32>, vector<4x32xf32> -> vector<4x32xf32>
    %420 = tpu.concatenate %418, %419 in 1 : vector<4x32xf32>, vector<4x32xf32> -> vector<4x64xf32>
    %421 = tpu.concatenate %419, %418 in 1 : vector<4x32xf32>, vector<4x32xf32> -> vector<4x64xf32>
    %cst_126 = arith.constant 0.000000e+00 : f32
    %422 = vector.broadcast %cst_126 : f32 to vector<4x32xf32>
    %cst_127 = arith.constant 0.000000e+00 : f32
    %423 = vector.broadcast %cst_127 : f32 to vector<4x32xf32>
    %cst_128 = arith.constant dense<0.000000e+00> : vector<4x64xf32>
    %424 = tpu.matmul %420, %66, %cst_128 {dimension_numbers = #tpu.dot_dimension_numbers<[1], [0], [0], [1], [0, 0, 1, 1], [], []>} : vector<4x64xf32>, vector<64x64xf32>, vector<4x64xf32> -> vector<4x64xf32>
    %425 = vector.broadcast %74 : vector<1x32xf32> to vector<4x32xf32>
    %426 = arith.mulf %419, %425 : vector<4x32xf32>
    %cst_129 = arith.constant dense<0.000000e+00> : vector<4xf32>
    %427 = vector.multi_reduction <add>, %426, %cst_129 [1] : vector<4x32xf32> to vector<4xf32>
    %428 = vector.shape_cast %427 : vector<4xf32> to vector<4x1xf32>
    %429 = vector.extract_strided_slice %424 {offsets = [0, 32], sizes = [4, 32], strides = [1, 1]} : vector<4x64xf32> to vector<4x32xf32>
    %430 = vector.broadcast %428 : vector<4x1xf32> to vector<4x32xf32>
    %431 = arith.mulf %418, %430 : vector<4x32xf32>
    %432 = arith.addf %429, %431 : vector<4x32xf32>
    %cst_130 = arith.constant 0.000000e+00 : f32
    %433 = vector.broadcast %cst_130 : f32 to vector<4x32xf32>
    %434 = arith.maximumf %432, %433 : vector<4x32xf32>
    %435 = vector.extract_strided_slice %424 {offsets = [0, 0], sizes = [4, 32], strides = [1, 1]} : vector<4x64xf32> to vector<4x32xf32>
    %436 = arith.negf %435 : vector<4x32xf32>
    %437 = math.exp %436 : vector<4x32xf32>
    %cst_131 = arith.constant 1.000000e+00 : f32
    %438 = vector.broadcast %cst_131 : f32 to vector<4x32xf32>
    %439 = arith.addf %438, %437 : vector<4x32xf32>
    %440 = arith.divf %438, %439 : vector<4x32xf32>
    %441 = arith.mulf %434, %440 : vector<4x32xf32>
    %442 = arith.addf %418, %441 : vector<4x32xf32>
    %443 = arith.mulf %442, %442 : vector<4x32xf32>
    %cst_132 = arith.constant dense<0.000000e+00> : vector<4xf32>
    %444 = vector.multi_reduction <add>, %443, %cst_132 [1] : vector<4x32xf32> to vector<4xf32>
    %445 = vector.shape_cast %444 : vector<4xf32> to vector<4x1xf32>
    %cst_133 = arith.constant 1.000000e-24 : f32
    %446 = vector.broadcast %cst_133 : f32 to vector<4x1xf32>
    %447 = arith.maximumf %445, %446 : vector<4x1xf32>
    %448 = math.rsqrt %447 : vector<4x1xf32>
    %449 = vector.broadcast %448 : vector<4x1xf32> to vector<4x32xf32>
    %450 = arith.mulf %442, %449 : vector<4x32xf32>
    %451 = vector.shape_cast %62 : vector<4x1xi1> to vector<4x1xi1>
    %452 = vector.broadcast %451 : vector<4x1xi1> to vector<4x32xi1>
    %453 = arith.select %452, %450, %422 : vector<4x32xi1>, vector<4x32xf32>
    %cst_134 = arith.constant dense<0.000000e+00> : vector<4x64xf32>
    %454 = tpu.matmul %421, %70, %cst_134 {dimension_numbers = #tpu.dot_dimension_numbers<[1], [0], [0], [1], [0, 0, 1, 1], [], []>} : vector<4x64xf32>, vector<64x64xf32>, vector<4x64xf32> -> vector<4x64xf32>
    %455 = vector.broadcast %78 : vector<1x32xf32> to vector<4x32xf32>
    %456 = arith.mulf %418, %455 : vector<4x32xf32>
    %cst_135 = arith.constant dense<0.000000e+00> : vector<4xf32>
    %457 = vector.multi_reduction <add>, %456, %cst_135 [1] : vector<4x32xf32> to vector<4xf32>
    %458 = vector.shape_cast %457 : vector<4xf32> to vector<4x1xf32>
    %459 = vector.extract_strided_slice %454 {offsets = [0, 32], sizes = [4, 32], strides = [1, 1]} : vector<4x64xf32> to vector<4x32xf32>
    %460 = vector.broadcast %458 : vector<4x1xf32> to vector<4x32xf32>
    %461 = arith.mulf %419, %460 : vector<4x32xf32>
    %462 = arith.addf %459, %461 : vector<4x32xf32>
    %cst_136 = arith.constant 0.000000e+00 : f32
    %463 = vector.broadcast %cst_136 : f32 to vector<4x32xf32>
    %464 = arith.maximumf %462, %463 : vector<4x32xf32>
    %465 = vector.extract_strided_slice %454 {offsets = [0, 0], sizes = [4, 32], strides = [1, 1]} : vector<4x64xf32> to vector<4x32xf32>
    %466 = arith.negf %465 : vector<4x32xf32>
    %467 = math.exp %466 : vector<4x32xf32>
    %cst_137 = arith.constant 1.000000e+00 : f32
    %468 = vector.broadcast %cst_137 : f32 to vector<4x32xf32>
    %469 = arith.addf %468, %467 : vector<4x32xf32>
    %470 = arith.divf %468, %469 : vector<4x32xf32>
    %471 = arith.mulf %464, %470 : vector<4x32xf32>
    %472 = arith.addf %419, %471 : vector<4x32xf32>
    %473 = arith.mulf %472, %472 : vector<4x32xf32>
    %cst_138 = arith.constant dense<0.000000e+00> : vector<4xf32>
    %474 = vector.multi_reduction <add>, %473, %cst_138 [1] : vector<4x32xf32> to vector<4xf32>
    %475 = vector.shape_cast %474 : vector<4xf32> to vector<4x1xf32>
    %cst_139 = arith.constant 1.000000e-24 : f32
    %476 = vector.broadcast %cst_139 : f32 to vector<4x1xf32>
    %477 = arith.maximumf %475, %476 : vector<4x1xf32>
    %478 = math.rsqrt %477 : vector<4x1xf32>
    %479 = vector.broadcast %478 : vector<4x1xf32> to vector<4x32xf32>
    %480 = arith.mulf %472, %479 : vector<4x32xf32>
    %481 = vector.shape_cast %62 : vector<4x1xi1> to vector<4x1xi1>
    %482 = vector.broadcast %481 : vector<4x1xi1> to vector<4x32xi1>
    %483 = arith.select %482, %480, %423 : vector<4x32xi1>, vector<4x32xf32>
    %cst_140 = arith.constant dense<0.000000e+00> : vector<4x64xf32>
    %484 = tpu.matmul %420, %68, %cst_140 {dimension_numbers = #tpu.dot_dimension_numbers<[1], [0], [0], [1], [0, 0, 1, 1], [], []>} : vector<4x64xf32>, vector<64x64xf32>, vector<4x64xf32> -> vector<4x64xf32>
    %485 = vector.broadcast %76 : vector<1x32xf32> to vector<4x32xf32>
    %486 = arith.mulf %419, %485 : vector<4x32xf32>
    %cst_141 = arith.constant dense<0.000000e+00> : vector<4xf32>
    %487 = vector.multi_reduction <add>, %486, %cst_141 [1] : vector<4x32xf32> to vector<4xf32>
    %488 = vector.shape_cast %487 : vector<4xf32> to vector<4x1xf32>
    %489 = vector.extract_strided_slice %484 {offsets = [0, 32], sizes = [4, 32], strides = [1, 1]} : vector<4x64xf32> to vector<4x32xf32>
    %490 = vector.broadcast %488 : vector<4x1xf32> to vector<4x32xf32>
    %491 = arith.mulf %418, %490 : vector<4x32xf32>
    %492 = arith.addf %489, %491 : vector<4x32xf32>
    %cst_142 = arith.constant 0.000000e+00 : f32
    %493 = vector.broadcast %cst_142 : f32 to vector<4x32xf32>
    %494 = arith.maximumf %492, %493 : vector<4x32xf32>
    %495 = vector.extract_strided_slice %484 {offsets = [0, 0], sizes = [4, 32], strides = [1, 1]} : vector<4x64xf32> to vector<4x32xf32>
    %496 = arith.negf %495 : vector<4x32xf32>
    %497 = math.exp %496 : vector<4x32xf32>
    %cst_143 = arith.constant 1.000000e+00 : f32
    %498 = vector.broadcast %cst_143 : f32 to vector<4x32xf32>
    %499 = arith.addf %498, %497 : vector<4x32xf32>
    %500 = arith.divf %498, %499 : vector<4x32xf32>
    %501 = arith.mulf %494, %500 : vector<4x32xf32>
    %502 = arith.addf %418, %501 : vector<4x32xf32>
    %503 = arith.mulf %502, %502 : vector<4x32xf32>
    %cst_144 = arith.constant dense<0.000000e+00> : vector<4xf32>
    %504 = vector.multi_reduction <add>, %503, %cst_144 [1] : vector<4x32xf32> to vector<4xf32>
    %505 = vector.shape_cast %504 : vector<4xf32> to vector<4x1xf32>
    %cst_145 = arith.constant 1.000000e-24 : f32
    %506 = vector.broadcast %cst_145 : f32 to vector<4x1xf32>
    %507 = arith.maximumf %505, %506 : vector<4x1xf32>
    %508 = math.rsqrt %507 : vector<4x1xf32>
    %509 = vector.broadcast %508 : vector<4x1xf32> to vector<4x32xf32>
    %510 = arith.mulf %502, %509 : vector<4x32xf32>
    %511 = vector.shape_cast %64 : vector<4x1xi1> to vector<4x1xi1>
    %512 = vector.broadcast %511 : vector<4x1xi1> to vector<4x32xi1>
    %513 = arith.select %512, %510, %453 : vector<4x32xi1>, vector<4x32xf32>
    %cst_146 = arith.constant dense<0.000000e+00> : vector<4x64xf32>
    %514 = tpu.matmul %421, %72, %cst_146 {dimension_numbers = #tpu.dot_dimension_numbers<[1], [0], [0], [1], [0, 0, 1, 1], [], []>} : vector<4x64xf32>, vector<64x64xf32>, vector<4x64xf32> -> vector<4x64xf32>
    %515 = vector.broadcast %80 : vector<1x32xf32> to vector<4x32xf32>
    %516 = arith.mulf %418, %515 : vector<4x32xf32>
    %cst_147 = arith.constant dense<0.000000e+00> : vector<4xf32>
    %517 = vector.multi_reduction <add>, %516, %cst_147 [1] : vector<4x32xf32> to vector<4xf32>
    %518 = vector.shape_cast %517 : vector<4xf32> to vector<4x1xf32>
    %519 = vector.extract_strided_slice %514 {offsets = [0, 32], sizes = [4, 32], strides = [1, 1]} : vector<4x64xf32> to vector<4x32xf32>
    %520 = vector.broadcast %518 : vector<4x1xf32> to vector<4x32xf32>
    %521 = arith.mulf %419, %520 : vector<4x32xf32>
    %522 = arith.addf %519, %521 : vector<4x32xf32>
    %cst_148 = arith.constant 0.000000e+00 : f32
    %523 = vector.broadcast %cst_148 : f32 to vector<4x32xf32>
    %524 = arith.maximumf %522, %523 : vector<4x32xf32>
    %525 = vector.extract_strided_slice %514 {offsets = [0, 0], sizes = [4, 32], strides = [1, 1]} : vector<4x64xf32> to vector<4x32xf32>
    %526 = arith.negf %525 : vector<4x32xf32>
    %527 = math.exp %526 : vector<4x32xf32>
    %cst_149 = arith.constant 1.000000e+00 : f32
    %528 = vector.broadcast %cst_149 : f32 to vector<4x32xf32>
    %529 = arith.addf %528, %527 : vector<4x32xf32>
    %530 = arith.divf %528, %529 : vector<4x32xf32>
    %531 = arith.mulf %524, %530 : vector<4x32xf32>
    %532 = arith.addf %419, %531 : vector<4x32xf32>
    %533 = arith.mulf %532, %532 : vector<4x32xf32>
    %cst_150 = arith.constant dense<0.000000e+00> : vector<4xf32>
    %534 = vector.multi_reduction <add>, %533, %cst_150 [1] : vector<4x32xf32> to vector<4xf32>
    %535 = vector.shape_cast %534 : vector<4xf32> to vector<4x1xf32>
    %cst_151 = arith.constant 1.000000e-24 : f32
    %536 = vector.broadcast %cst_151 : f32 to vector<4x1xf32>
    %537 = arith.maximumf %535, %536 : vector<4x1xf32>
    %538 = math.rsqrt %537 : vector<4x1xf32>
    %539 = vector.broadcast %538 : vector<4x1xf32> to vector<4x32xf32>
    %540 = arith.mulf %532, %539 : vector<4x32xf32>
    %541 = vector.shape_cast %64 : vector<4x1xi1> to vector<4x1xi1>
    %542 = vector.broadcast %541 : vector<4x1xi1> to vector<4x32xi1>
    %543 = arith.select %542, %540, %483 : vector<4x32xi1>, vector<4x32xf32>
    %cst_152 = arith.constant dense<0.000000e+00> : vector<8x32xf32>
    %544 = tpu.matmul %54, %513, %cst_152 {dimension_numbers = #tpu.dot_dimension_numbers<[1], [0], [0], [1], [0, 0, 1, 1], [], []>} : vector<8x4xf32>, vector<4x32xf32>, vector<8x32xf32> -> vector<8x32xf32>
    %cst_153 = arith.constant dense<0.000000e+00> : vector<8x32xf32>
    %545 = tpu.matmul %60, %543, %cst_153 {dimension_numbers = #tpu.dot_dimension_numbers<[1], [0], [0], [1], [0, 0, 1, 1], [], []>} : vector<8x4xf32>, vector<4x32xf32>, vector<8x32xf32> -> vector<8x32xf32>
    %546 = arith.addf %544, %545 : vector<8x32xf32>
    %547 = vector.shape_cast %48 : vector<8x1xi1> to vector<8x1xi1>
    %548 = vector.broadcast %547 : vector<8x1xi1> to vector<8x32xi1>
    %549 = arith.select %548, %546, %417 : vector<8x32xi1>, vector<8x32xf32>
    %550 = tpu.concatenate %549, %0 in 1 : vector<8x32xf32>, vector<8x8xf32> -> vector<8x40xf32>
    %cst_154 = arith.constant dense<0.000000e+00> : vector<8x64xf32>
    %551 = tpu.matmul %550, %10, %cst_154 {dimension_numbers = #tpu.dot_dimension_numbers<[1], [0], [0], [1], [0, 0, 1, 1], [], []>} : vector<8x40xf32>, vector<40x64xf32>, vector<8x64xf32> -> vector<8x64xf32>
    %552 = vector.extract_strided_slice %551 {offsets = [0, 0], sizes = [8, 32], strides = [1, 1]} : vector<8x64xf32> to vector<8x32xf32>
    %553 = arith.negf %552 : vector<8x32xf32>
    %554 = math.exp %553 : vector<8x32xf32>
    %cst_155 = arith.constant 1.000000e+00 : f32
    %555 = vector.broadcast %cst_155 : f32 to vector<8x32xf32>
    %556 = arith.addf %555, %554 : vector<8x32xf32>
    %557 = arith.divf %555, %556 : vector<8x32xf32>
    %558 = vector.extract_strided_slice %551 {offsets = [0, 32], sizes = [8, 32], strides = [1, 1]} : vector<8x64xf32> to vector<8x32xf32>
    %cst_156 = arith.constant 0.000000e+00 : f32
    %559 = vector.broadcast %cst_156 : f32 to vector<8x32xf32>
    %560 = arith.maximumf %558, %559 : vector<8x32xf32>
    %561 = arith.mulf %560, %557 : vector<8x32xf32>
    %562 = arith.addf %549, %561 : vector<8x32xf32>
    %563 = arith.mulf %562, %562 : vector<8x32xf32>
    %cst_157 = arith.constant dense<0.000000e+00> : vector<8xf32>
    %564 = vector.multi_reduction <add>, %563, %cst_157 [1] : vector<8x32xf32> to vector<8xf32>
    %565 = vector.shape_cast %564 : vector<8xf32> to vector<8x1xf32>
    %cst_158 = arith.constant 1.000000e-24 : f32
    %566 = vector.broadcast %cst_158 : f32 to vector<8x1xf32>
    %567 = arith.maximumf %565, %566 : vector<8x1xf32>
    %568 = math.rsqrt %567 : vector<8x1xf32>
    %569 = vector.broadcast %568 : vector<8x1xf32> to vector<8x32xf32>
    %570 = arith.mulf %562, %569 : vector<8x32xf32>
    %571 = vector.shape_cast %9 : vector<8x1xi1> to vector<8x1xi1>
    %572 = vector.broadcast %571 : vector<8x1xi1> to vector<8x32xi1>
    %573 = arith.select %572, %570, %549 : vector<8x32xi1>, vector<8x32xf32>
    %cst_159 = arith.constant dense<0.000000e+00> : vector<4x32xf32>
    %574 = tpu.matmul %20, %549, %cst_159 {dimension_numbers = #tpu.dot_dimension_numbers<[1], [0], [0], [1], [0, 0, 1, 1], [], []>} : vector<4x8xf32>, vector<8x32xf32>, vector<4x32xf32> -> vector<4x32xf32>
    %cst_160 = arith.constant dense<0.000000e+00> : vector<4x32xf32>
    %575 = tpu.matmul %24, %549, %cst_160 {dimension_numbers = #tpu.dot_dimension_numbers<[1], [0], [0], [1], [0, 0, 1, 1], [], []>} : vector<4x8xf32>, vector<8x32xf32>, vector<4x32xf32> -> vector<4x32xf32>
    %576 = tpu.concatenate %574, %575 in 1 : vector<4x32xf32>, vector<4x32xf32> -> vector<4x64xf32>
    %577 = tpu.concatenate %575, %574 in 1 : vector<4x32xf32>, vector<4x32xf32> -> vector<4x64xf32>
    %cst_161 = arith.constant 0.000000e+00 : f32
    %578 = vector.broadcast %cst_161 : f32 to vector<4x32xf32>
    %cst_162 = arith.constant 0.000000e+00 : f32
    %579 = vector.broadcast %cst_162 : f32 to vector<4x32xf32>
    %cst_163 = arith.constant dense<0.000000e+00> : vector<4x64xf32>
    %580 = tpu.matmul %576, %66, %cst_163 {dimension_numbers = #tpu.dot_dimension_numbers<[1], [0], [0], [1], [0, 0, 1, 1], [], []>} : vector<4x64xf32>, vector<64x64xf32>, vector<4x64xf32> -> vector<4x64xf32>
    %581 = vector.broadcast %74 : vector<1x32xf32> to vector<4x32xf32>
    %582 = arith.mulf %575, %581 : vector<4x32xf32>
    %cst_164 = arith.constant dense<0.000000e+00> : vector<4xf32>
    %583 = vector.multi_reduction <add>, %582, %cst_164 [1] : vector<4x32xf32> to vector<4xf32>
    %584 = vector.shape_cast %583 : vector<4xf32> to vector<4x1xf32>
    %585 = vector.extract_strided_slice %580 {offsets = [0, 32], sizes = [4, 32], strides = [1, 1]} : vector<4x64xf32> to vector<4x32xf32>
    %586 = vector.broadcast %584 : vector<4x1xf32> to vector<4x32xf32>
    %587 = arith.mulf %574, %586 : vector<4x32xf32>
    %588 = arith.addf %585, %587 : vector<4x32xf32>
    %cst_165 = arith.constant 0.000000e+00 : f32
    %589 = vector.broadcast %cst_165 : f32 to vector<4x32xf32>
    %590 = arith.maximumf %588, %589 : vector<4x32xf32>
    %591 = vector.extract_strided_slice %580 {offsets = [0, 0], sizes = [4, 32], strides = [1, 1]} : vector<4x64xf32> to vector<4x32xf32>
    %592 = arith.negf %591 : vector<4x32xf32>
    %593 = math.exp %592 : vector<4x32xf32>
    %cst_166 = arith.constant 1.000000e+00 : f32
    %594 = vector.broadcast %cst_166 : f32 to vector<4x32xf32>
    %595 = arith.addf %594, %593 : vector<4x32xf32>
    %596 = arith.divf %594, %595 : vector<4x32xf32>
    %597 = arith.mulf %590, %596 : vector<4x32xf32>
    %598 = arith.addf %574, %597 : vector<4x32xf32>
    %599 = arith.mulf %598, %598 : vector<4x32xf32>
    %cst_167 = arith.constant dense<0.000000e+00> : vector<4xf32>
    %600 = vector.multi_reduction <add>, %599, %cst_167 [1] : vector<4x32xf32> to vector<4xf32>
    %601 = vector.shape_cast %600 : vector<4xf32> to vector<4x1xf32>
    %cst_168 = arith.constant 1.000000e-24 : f32
    %602 = vector.broadcast %cst_168 : f32 to vector<4x1xf32>
    %603 = arith.maximumf %601, %602 : vector<4x1xf32>
    %604 = math.rsqrt %603 : vector<4x1xf32>
    %605 = vector.broadcast %604 : vector<4x1xf32> to vector<4x32xf32>
    %606 = arith.mulf %598, %605 : vector<4x32xf32>
    %607 = vector.shape_cast %62 : vector<4x1xi1> to vector<4x1xi1>
    %608 = vector.broadcast %607 : vector<4x1xi1> to vector<4x32xi1>
    %609 = arith.select %608, %606, %578 : vector<4x32xi1>, vector<4x32xf32>
    %cst_169 = arith.constant dense<0.000000e+00> : vector<4x64xf32>
    %610 = tpu.matmul %577, %70, %cst_169 {dimension_numbers = #tpu.dot_dimension_numbers<[1], [0], [0], [1], [0, 0, 1, 1], [], []>} : vector<4x64xf32>, vector<64x64xf32>, vector<4x64xf32> -> vector<4x64xf32>
    %611 = vector.broadcast %78 : vector<1x32xf32> to vector<4x32xf32>
    %612 = arith.mulf %574, %611 : vector<4x32xf32>
    %cst_170 = arith.constant dense<0.000000e+00> : vector<4xf32>
    %613 = vector.multi_reduction <add>, %612, %cst_170 [1] : vector<4x32xf32> to vector<4xf32>
    %614 = vector.shape_cast %613 : vector<4xf32> to vector<4x1xf32>
    %615 = vector.extract_strided_slice %610 {offsets = [0, 32], sizes = [4, 32], strides = [1, 1]} : vector<4x64xf32> to vector<4x32xf32>
    %616 = vector.broadcast %614 : vector<4x1xf32> to vector<4x32xf32>
    %617 = arith.mulf %575, %616 : vector<4x32xf32>
    %618 = arith.addf %615, %617 : vector<4x32xf32>
    %cst_171 = arith.constant 0.000000e+00 : f32
    %619 = vector.broadcast %cst_171 : f32 to vector<4x32xf32>
    %620 = arith.maximumf %618, %619 : vector<4x32xf32>
    %621 = vector.extract_strided_slice %610 {offsets = [0, 0], sizes = [4, 32], strides = [1, 1]} : vector<4x64xf32> to vector<4x32xf32>
    %622 = arith.negf %621 : vector<4x32xf32>
    %623 = math.exp %622 : vector<4x32xf32>
    %cst_172 = arith.constant 1.000000e+00 : f32
    %624 = vector.broadcast %cst_172 : f32 to vector<4x32xf32>
    %625 = arith.addf %624, %623 : vector<4x32xf32>
    %626 = arith.divf %624, %625 : vector<4x32xf32>
    %627 = arith.mulf %620, %626 : vector<4x32xf32>
    %628 = arith.addf %575, %627 : vector<4x32xf32>
    %629 = arith.mulf %628, %628 : vector<4x32xf32>
    %cst_173 = arith.constant dense<0.000000e+00> : vector<4xf32>
    %630 = vector.multi_reduction <add>, %629, %cst_173 [1] : vector<4x32xf32> to vector<4xf32>
    %631 = vector.shape_cast %630 : vector<4xf32> to vector<4x1xf32>
    %cst_174 = arith.constant 1.000000e-24 : f32
    %632 = vector.broadcast %cst_174 : f32 to vector<4x1xf32>
    %633 = arith.maximumf %631, %632 : vector<4x1xf32>
    %634 = math.rsqrt %633 : vector<4x1xf32>
    %635 = vector.broadcast %634 : vector<4x1xf32> to vector<4x32xf32>
    %636 = arith.mulf %628, %635 : vector<4x32xf32>
    %637 = vector.shape_cast %62 : vector<4x1xi1> to vector<4x1xi1>
    %638 = vector.broadcast %637 : vector<4x1xi1> to vector<4x32xi1>
    %639 = arith.select %638, %636, %579 : vector<4x32xi1>, vector<4x32xf32>
    %cst_175 = arith.constant dense<0.000000e+00> : vector<4x64xf32>
    %640 = tpu.matmul %576, %68, %cst_175 {dimension_numbers = #tpu.dot_dimension_numbers<[1], [0], [0], [1], [0, 0, 1, 1], [], []>} : vector<4x64xf32>, vector<64x64xf32>, vector<4x64xf32> -> vector<4x64xf32>
    %641 = vector.broadcast %76 : vector<1x32xf32> to vector<4x32xf32>
    %642 = arith.mulf %575, %641 : vector<4x32xf32>
    %cst_176 = arith.constant dense<0.000000e+00> : vector<4xf32>
    %643 = vector.multi_reduction <add>, %642, %cst_176 [1] : vector<4x32xf32> to vector<4xf32>
    %644 = vector.shape_cast %643 : vector<4xf32> to vector<4x1xf32>
    %645 = vector.extract_strided_slice %640 {offsets = [0, 32], sizes = [4, 32], strides = [1, 1]} : vector<4x64xf32> to vector<4x32xf32>
    %646 = vector.broadcast %644 : vector<4x1xf32> to vector<4x32xf32>
    %647 = arith.mulf %574, %646 : vector<4x32xf32>
    %648 = arith.addf %645, %647 : vector<4x32xf32>
    %cst_177 = arith.constant 0.000000e+00 : f32
    %649 = vector.broadcast %cst_177 : f32 to vector<4x32xf32>
    %650 = arith.maximumf %648, %649 : vector<4x32xf32>
    %651 = vector.extract_strided_slice %640 {offsets = [0, 0], sizes = [4, 32], strides = [1, 1]} : vector<4x64xf32> to vector<4x32xf32>
    %652 = arith.negf %651 : vector<4x32xf32>
    %653 = math.exp %652 : vector<4x32xf32>
    %cst_178 = arith.constant 1.000000e+00 : f32
    %654 = vector.broadcast %cst_178 : f32 to vector<4x32xf32>
    %655 = arith.addf %654, %653 : vector<4x32xf32>
    %656 = arith.divf %654, %655 : vector<4x32xf32>
    %657 = arith.mulf %650, %656 : vector<4x32xf32>
    %658 = arith.addf %574, %657 : vector<4x32xf32>
    %659 = arith.mulf %658, %658 : vector<4x32xf32>
    %cst_179 = arith.constant dense<0.000000e+00> : vector<4xf32>
    %660 = vector.multi_reduction <add>, %659, %cst_179 [1] : vector<4x32xf32> to vector<4xf32>
    %661 = vector.shape_cast %660 : vector<4xf32> to vector<4x1xf32>
    %cst_180 = arith.constant 1.000000e-24 : f32
    %662 = vector.broadcast %cst_180 : f32 to vector<4x1xf32>
    %663 = arith.maximumf %661, %662 : vector<4x1xf32>
    %664 = math.rsqrt %663 : vector<4x1xf32>
    %665 = vector.broadcast %664 : vector<4x1xf32> to vector<4x32xf32>
    %666 = arith.mulf %658, %665 : vector<4x32xf32>
    %667 = vector.shape_cast %64 : vector<4x1xi1> to vector<4x1xi1>
    %668 = vector.broadcast %667 : vector<4x1xi1> to vector<4x32xi1>
    %669 = arith.select %668, %666, %609 : vector<4x32xi1>, vector<4x32xf32>
    %cst_181 = arith.constant dense<0.000000e+00> : vector<4x64xf32>
    %670 = tpu.matmul %577, %72, %cst_181 {dimension_numbers = #tpu.dot_dimension_numbers<[1], [0], [0], [1], [0, 0, 1, 1], [], []>} : vector<4x64xf32>, vector<64x64xf32>, vector<4x64xf32> -> vector<4x64xf32>
    %671 = vector.broadcast %80 : vector<1x32xf32> to vector<4x32xf32>
    %672 = arith.mulf %574, %671 : vector<4x32xf32>
    %cst_182 = arith.constant dense<0.000000e+00> : vector<4xf32>
    %673 = vector.multi_reduction <add>, %672, %cst_182 [1] : vector<4x32xf32> to vector<4xf32>
    %674 = vector.shape_cast %673 : vector<4xf32> to vector<4x1xf32>
    %675 = vector.extract_strided_slice %670 {offsets = [0, 32], sizes = [4, 32], strides = [1, 1]} : vector<4x64xf32> to vector<4x32xf32>
    %676 = vector.broadcast %674 : vector<4x1xf32> to vector<4x32xf32>
    %677 = arith.mulf %575, %676 : vector<4x32xf32>
    %678 = arith.addf %675, %677 : vector<4x32xf32>
    %cst_183 = arith.constant 0.000000e+00 : f32
    %679 = vector.broadcast %cst_183 : f32 to vector<4x32xf32>
    %680 = arith.maximumf %678, %679 : vector<4x32xf32>
    %681 = vector.extract_strided_slice %670 {offsets = [0, 0], sizes = [4, 32], strides = [1, 1]} : vector<4x64xf32> to vector<4x32xf32>
    %682 = arith.negf %681 : vector<4x32xf32>
    %683 = math.exp %682 : vector<4x32xf32>
    %cst_184 = arith.constant 1.000000e+00 : f32
    %684 = vector.broadcast %cst_184 : f32 to vector<4x32xf32>
    %685 = arith.addf %684, %683 : vector<4x32xf32>
    %686 = arith.divf %684, %685 : vector<4x32xf32>
    %687 = arith.mulf %680, %686 : vector<4x32xf32>
    %688 = arith.addf %575, %687 : vector<4x32xf32>
    %689 = arith.mulf %688, %688 : vector<4x32xf32>
    %cst_185 = arith.constant dense<0.000000e+00> : vector<4xf32>
    %690 = vector.multi_reduction <add>, %689, %cst_185 [1] : vector<4x32xf32> to vector<4xf32>
    %691 = vector.shape_cast %690 : vector<4xf32> to vector<4x1xf32>
    %cst_186 = arith.constant 1.000000e-24 : f32
    %692 = vector.broadcast %cst_186 : f32 to vector<4x1xf32>
    %693 = arith.maximumf %691, %692 : vector<4x1xf32>
    %694 = math.rsqrt %693 : vector<4x1xf32>
    %695 = vector.broadcast %694 : vector<4x1xf32> to vector<4x32xf32>
    %696 = arith.mulf %688, %695 : vector<4x32xf32>
    %697 = vector.shape_cast %64 : vector<4x1xi1> to vector<4x1xi1>
    %698 = vector.broadcast %697 : vector<4x1xi1> to vector<4x32xi1>
    %699 = arith.select %698, %696, %639 : vector<4x32xi1>, vector<4x32xf32>
    %cst_187 = arith.constant dense<0.000000e+00> : vector<8x32xf32>
    %700 = tpu.matmul %54, %669, %cst_187 {dimension_numbers = #tpu.dot_dimension_numbers<[1], [0], [0], [1], [0, 0, 1, 1], [], []>} : vector<8x4xf32>, vector<4x32xf32>, vector<8x32xf32> -> vector<8x32xf32>
    %cst_188 = arith.constant dense<0.000000e+00> : vector<8x32xf32>
    %701 = tpu.matmul %60, %699, %cst_188 {dimension_numbers = #tpu.dot_dimension_numbers<[1], [0], [0], [1], [0, 0, 1, 1], [], []>} : vector<8x4xf32>, vector<4x32xf32>, vector<8x32xf32> -> vector<8x32xf32>
    %702 = arith.addf %700, %701 : vector<8x32xf32>
    %703 = vector.shape_cast %48 : vector<8x1xi1> to vector<8x1xi1>
    %704 = vector.broadcast %703 : vector<8x1xi1> to vector<8x32xi1>
    %705 = arith.select %704, %702, %573 : vector<8x32xi1>, vector<8x32xf32>
    %706 = tpu.concatenate %705, %0 in 1 : vector<8x32xf32>, vector<8x8xf32> -> vector<8x40xf32>
    %cst_189 = arith.constant dense<0.000000e+00> : vector<8x64xf32>
    %707 = tpu.matmul %706, %10, %cst_189 {dimension_numbers = #tpu.dot_dimension_numbers<[1], [0], [0], [1], [0, 0, 1, 1], [], []>} : vector<8x40xf32>, vector<40x64xf32>, vector<8x64xf32> -> vector<8x64xf32>
    %708 = vector.extract_strided_slice %707 {offsets = [0, 0], sizes = [8, 32], strides = [1, 1]} : vector<8x64xf32> to vector<8x32xf32>
    %709 = arith.negf %708 : vector<8x32xf32>
    %710 = math.exp %709 : vector<8x32xf32>
    %cst_190 = arith.constant 1.000000e+00 : f32
    %711 = vector.broadcast %cst_190 : f32 to vector<8x32xf32>
    %712 = arith.addf %711, %710 : vector<8x32xf32>
    %713 = arith.divf %711, %712 : vector<8x32xf32>
    %714 = vector.extract_strided_slice %707 {offsets = [0, 32], sizes = [8, 32], strides = [1, 1]} : vector<8x64xf32> to vector<8x32xf32>
    %cst_191 = arith.constant 0.000000e+00 : f32
    %715 = vector.broadcast %cst_191 : f32 to vector<8x32xf32>
    %716 = arith.maximumf %714, %715 : vector<8x32xf32>
    %717 = arith.mulf %716, %713 : vector<8x32xf32>
    %718 = arith.addf %705, %717 : vector<8x32xf32>
    %719 = arith.mulf %718, %718 : vector<8x32xf32>
    %cst_192 = arith.constant dense<0.000000e+00> : vector<8xf32>
    %720 = vector.multi_reduction <add>, %719, %cst_192 [1] : vector<8x32xf32> to vector<8xf32>
    %721 = vector.shape_cast %720 : vector<8xf32> to vector<8x1xf32>
    %cst_193 = arith.constant 1.000000e-24 : f32
    %722 = vector.broadcast %cst_193 : f32 to vector<8x1xf32>
    %723 = arith.maximumf %721, %722 : vector<8x1xf32>
    %724 = math.rsqrt %723 : vector<8x1xf32>
    %725 = vector.broadcast %724 : vector<8x1xf32> to vector<8x32xf32>
    %726 = arith.mulf %718, %725 : vector<8x32xf32>
    %727 = vector.shape_cast %9 : vector<8x1xi1> to vector<8x1xi1>
    %728 = vector.broadcast %727 : vector<8x1xi1> to vector<8x32xi1>
    %729 = arith.select %728, %726, %705 : vector<8x32xi1>, vector<8x32xf32>
    %cst_194 = arith.constant dense<0.000000e+00> : vector<4x32xf32>
    %730 = tpu.matmul %20, %705, %cst_194 {dimension_numbers = #tpu.dot_dimension_numbers<[1], [0], [0], [1], [0, 0, 1, 1], [], []>} : vector<4x8xf32>, vector<8x32xf32>, vector<4x32xf32> -> vector<4x32xf32>
    %cst_195 = arith.constant dense<0.000000e+00> : vector<4x32xf32>
    %731 = tpu.matmul %24, %705, %cst_195 {dimension_numbers = #tpu.dot_dimension_numbers<[1], [0], [0], [1], [0, 0, 1, 1], [], []>} : vector<4x8xf32>, vector<8x32xf32>, vector<4x32xf32> -> vector<4x32xf32>
    %732 = tpu.concatenate %730, %731 in 1 : vector<4x32xf32>, vector<4x32xf32> -> vector<4x64xf32>
    %733 = tpu.concatenate %731, %730 in 1 : vector<4x32xf32>, vector<4x32xf32> -> vector<4x64xf32>
    %cst_196 = arith.constant 0.000000e+00 : f32
    %734 = vector.broadcast %cst_196 : f32 to vector<4x32xf32>
    %cst_197 = arith.constant 0.000000e+00 : f32
    %735 = vector.broadcast %cst_197 : f32 to vector<4x32xf32>
    %cst_198 = arith.constant dense<0.000000e+00> : vector<4x64xf32>
    %736 = tpu.matmul %732, %66, %cst_198 {dimension_numbers = #tpu.dot_dimension_numbers<[1], [0], [0], [1], [0, 0, 1, 1], [], []>} : vector<4x64xf32>, vector<64x64xf32>, vector<4x64xf32> -> vector<4x64xf32>
    %737 = vector.broadcast %74 : vector<1x32xf32> to vector<4x32xf32>
    %738 = arith.mulf %731, %737 : vector<4x32xf32>
    %cst_199 = arith.constant dense<0.000000e+00> : vector<4xf32>
    %739 = vector.multi_reduction <add>, %738, %cst_199 [1] : vector<4x32xf32> to vector<4xf32>
    %740 = vector.shape_cast %739 : vector<4xf32> to vector<4x1xf32>
    %741 = vector.extract_strided_slice %736 {offsets = [0, 32], sizes = [4, 32], strides = [1, 1]} : vector<4x64xf32> to vector<4x32xf32>
    %742 = vector.broadcast %740 : vector<4x1xf32> to vector<4x32xf32>
    %743 = arith.mulf %730, %742 : vector<4x32xf32>
    %744 = arith.addf %741, %743 : vector<4x32xf32>
    %cst_200 = arith.constant 0.000000e+00 : f32
    %745 = vector.broadcast %cst_200 : f32 to vector<4x32xf32>
    %746 = arith.maximumf %744, %745 : vector<4x32xf32>
    %747 = vector.extract_strided_slice %736 {offsets = [0, 0], sizes = [4, 32], strides = [1, 1]} : vector<4x64xf32> to vector<4x32xf32>
    %748 = arith.negf %747 : vector<4x32xf32>
    %749 = math.exp %748 : vector<4x32xf32>
    %cst_201 = arith.constant 1.000000e+00 : f32
    %750 = vector.broadcast %cst_201 : f32 to vector<4x32xf32>
    %751 = arith.addf %750, %749 : vector<4x32xf32>
    %752 = arith.divf %750, %751 : vector<4x32xf32>
    %753 = arith.mulf %746, %752 : vector<4x32xf32>
    %754 = arith.addf %730, %753 : vector<4x32xf32>
    %755 = arith.mulf %754, %754 : vector<4x32xf32>
    %cst_202 = arith.constant dense<0.000000e+00> : vector<4xf32>
    %756 = vector.multi_reduction <add>, %755, %cst_202 [1] : vector<4x32xf32> to vector<4xf32>
    %757 = vector.shape_cast %756 : vector<4xf32> to vector<4x1xf32>
    %cst_203 = arith.constant 1.000000e-24 : f32
    %758 = vector.broadcast %cst_203 : f32 to vector<4x1xf32>
    %759 = arith.maximumf %757, %758 : vector<4x1xf32>
    %760 = math.rsqrt %759 : vector<4x1xf32>
    %761 = vector.broadcast %760 : vector<4x1xf32> to vector<4x32xf32>
    %762 = arith.mulf %754, %761 : vector<4x32xf32>
    %763 = vector.shape_cast %62 : vector<4x1xi1> to vector<4x1xi1>
    %764 = vector.broadcast %763 : vector<4x1xi1> to vector<4x32xi1>
    %765 = arith.select %764, %762, %734 : vector<4x32xi1>, vector<4x32xf32>
    %cst_204 = arith.constant dense<0.000000e+00> : vector<4x64xf32>
    %766 = tpu.matmul %733, %70, %cst_204 {dimension_numbers = #tpu.dot_dimension_numbers<[1], [0], [0], [1], [0, 0, 1, 1], [], []>} : vector<4x64xf32>, vector<64x64xf32>, vector<4x64xf32> -> vector<4x64xf32>
    %767 = vector.broadcast %78 : vector<1x32xf32> to vector<4x32xf32>
    %768 = arith.mulf %730, %767 : vector<4x32xf32>
    %cst_205 = arith.constant dense<0.000000e+00> : vector<4xf32>
    %769 = vector.multi_reduction <add>, %768, %cst_205 [1] : vector<4x32xf32> to vector<4xf32>
    %770 = vector.shape_cast %769 : vector<4xf32> to vector<4x1xf32>
    %771 = vector.extract_strided_slice %766 {offsets = [0, 32], sizes = [4, 32], strides = [1, 1]} : vector<4x64xf32> to vector<4x32xf32>
    %772 = vector.broadcast %770 : vector<4x1xf32> to vector<4x32xf32>
    %773 = arith.mulf %731, %772 : vector<4x32xf32>
    %774 = arith.addf %771, %773 : vector<4x32xf32>
    %cst_206 = arith.constant 0.000000e+00 : f32
    %775 = vector.broadcast %cst_206 : f32 to vector<4x32xf32>
    %776 = arith.maximumf %774, %775 : vector<4x32xf32>
    %777 = vector.extract_strided_slice %766 {offsets = [0, 0], sizes = [4, 32], strides = [1, 1]} : vector<4x64xf32> to vector<4x32xf32>
    %778 = arith.negf %777 : vector<4x32xf32>
    %779 = math.exp %778 : vector<4x32xf32>
    %cst_207 = arith.constant 1.000000e+00 : f32
    %780 = vector.broadcast %cst_207 : f32 to vector<4x32xf32>
    %781 = arith.addf %780, %779 : vector<4x32xf32>
    %782 = arith.divf %780, %781 : vector<4x32xf32>
    %783 = arith.mulf %776, %782 : vector<4x32xf32>
    %784 = arith.addf %731, %783 : vector<4x32xf32>
    %785 = arith.mulf %784, %784 : vector<4x32xf32>
    %cst_208 = arith.constant dense<0.000000e+00> : vector<4xf32>
    %786 = vector.multi_reduction <add>, %785, %cst_208 [1] : vector<4x32xf32> to vector<4xf32>
    %787 = vector.shape_cast %786 : vector<4xf32> to vector<4x1xf32>
    %cst_209 = arith.constant 1.000000e-24 : f32
    %788 = vector.broadcast %cst_209 : f32 to vector<4x1xf32>
    %789 = arith.maximumf %787, %788 : vector<4x1xf32>
    %790 = math.rsqrt %789 : vector<4x1xf32>
    %791 = vector.broadcast %790 : vector<4x1xf32> to vector<4x32xf32>
    %792 = arith.mulf %784, %791 : vector<4x32xf32>
    %793 = vector.shape_cast %62 : vector<4x1xi1> to vector<4x1xi1>
    %794 = vector.broadcast %793 : vector<4x1xi1> to vector<4x32xi1>
    %795 = arith.select %794, %792, %735 : vector<4x32xi1>, vector<4x32xf32>
    %cst_210 = arith.constant dense<0.000000e+00> : vector<4x64xf32>
    %796 = tpu.matmul %732, %68, %cst_210 {dimension_numbers = #tpu.dot_dimension_numbers<[1], [0], [0], [1], [0, 0, 1, 1], [], []>} : vector<4x64xf32>, vector<64x64xf32>, vector<4x64xf32> -> vector<4x64xf32>
    %797 = vector.broadcast %76 : vector<1x32xf32> to vector<4x32xf32>
    %798 = arith.mulf %731, %797 : vector<4x32xf32>
    %cst_211 = arith.constant dense<0.000000e+00> : vector<4xf32>
    %799 = vector.multi_reduction <add>, %798, %cst_211 [1] : vector<4x32xf32> to vector<4xf32>
    %800 = vector.shape_cast %799 : vector<4xf32> to vector<4x1xf32>
    %801 = vector.extract_strided_slice %796 {offsets = [0, 32], sizes = [4, 32], strides = [1, 1]} : vector<4x64xf32> to vector<4x32xf32>
    %802 = vector.broadcast %800 : vector<4x1xf32> to vector<4x32xf32>
    %803 = arith.mulf %730, %802 : vector<4x32xf32>
    %804 = arith.addf %801, %803 : vector<4x32xf32>
    %cst_212 = arith.constant 0.000000e+00 : f32
    %805 = vector.broadcast %cst_212 : f32 to vector<4x32xf32>
    %806 = arith.maximumf %804, %805 : vector<4x32xf32>
    %807 = vector.extract_strided_slice %796 {offsets = [0, 0], sizes = [4, 32], strides = [1, 1]} : vector<4x64xf32> to vector<4x32xf32>
    %808 = arith.negf %807 : vector<4x32xf32>
    %809 = math.exp %808 : vector<4x32xf32>
    %cst_213 = arith.constant 1.000000e+00 : f32
    %810 = vector.broadcast %cst_213 : f32 to vector<4x32xf32>
    %811 = arith.addf %810, %809 : vector<4x32xf32>
    %812 = arith.divf %810, %811 : vector<4x32xf32>
    %813 = arith.mulf %806, %812 : vector<4x32xf32>
    %814 = arith.addf %730, %813 : vector<4x32xf32>
    %815 = arith.mulf %814, %814 : vector<4x32xf32>
    %cst_214 = arith.constant dense<0.000000e+00> : vector<4xf32>
    %816 = vector.multi_reduction <add>, %815, %cst_214 [1] : vector<4x32xf32> to vector<4xf32>
    %817 = vector.shape_cast %816 : vector<4xf32> to vector<4x1xf32>
    %cst_215 = arith.constant 1.000000e-24 : f32
    %818 = vector.broadcast %cst_215 : f32 to vector<4x1xf32>
    %819 = arith.maximumf %817, %818 : vector<4x1xf32>
    %820 = math.rsqrt %819 : vector<4x1xf32>
    %821 = vector.broadcast %820 : vector<4x1xf32> to vector<4x32xf32>
    %822 = arith.mulf %814, %821 : vector<4x32xf32>
    %823 = vector.shape_cast %64 : vector<4x1xi1> to vector<4x1xi1>
    %824 = vector.broadcast %823 : vector<4x1xi1> to vector<4x32xi1>
    %825 = arith.select %824, %822, %765 : vector<4x32xi1>, vector<4x32xf32>
    %cst_216 = arith.constant dense<0.000000e+00> : vector<4x64xf32>
    %826 = tpu.matmul %733, %72, %cst_216 {dimension_numbers = #tpu.dot_dimension_numbers<[1], [0], [0], [1], [0, 0, 1, 1], [], []>} : vector<4x64xf32>, vector<64x64xf32>, vector<4x64xf32> -> vector<4x64xf32>
    %827 = vector.broadcast %80 : vector<1x32xf32> to vector<4x32xf32>
    %828 = arith.mulf %730, %827 : vector<4x32xf32>
    %cst_217 = arith.constant dense<0.000000e+00> : vector<4xf32>
    %829 = vector.multi_reduction <add>, %828, %cst_217 [1] : vector<4x32xf32> to vector<4xf32>
    %830 = vector.shape_cast %829 : vector<4xf32> to vector<4x1xf32>
    %831 = vector.extract_strided_slice %826 {offsets = [0, 32], sizes = [4, 32], strides = [1, 1]} : vector<4x64xf32> to vector<4x32xf32>
    %832 = vector.broadcast %830 : vector<4x1xf32> to vector<4x32xf32>
    %833 = arith.mulf %731, %832 : vector<4x32xf32>
    %834 = arith.addf %831, %833 : vector<4x32xf32>
    %cst_218 = arith.constant 0.000000e+00 : f32
    %835 = vector.broadcast %cst_218 : f32 to vector<4x32xf32>
    %836 = arith.maximumf %834, %835 : vector<4x32xf32>
    %837 = vector.extract_strided_slice %826 {offsets = [0, 0], sizes = [4, 32], strides = [1, 1]} : vector<4x64xf32> to vector<4x32xf32>
    %838 = arith.negf %837 : vector<4x32xf32>
    %839 = math.exp %838 : vector<4x32xf32>
    %cst_219 = arith.constant 1.000000e+00 : f32
    %840 = vector.broadcast %cst_219 : f32 to vector<4x32xf32>
    %841 = arith.addf %840, %839 : vector<4x32xf32>
    %842 = arith.divf %840, %841 : vector<4x32xf32>
    %843 = arith.mulf %836, %842 : vector<4x32xf32>
    %844 = arith.addf %731, %843 : vector<4x32xf32>
    %845 = arith.mulf %844, %844 : vector<4x32xf32>
    %cst_220 = arith.constant dense<0.000000e+00> : vector<4xf32>
    %846 = vector.multi_reduction <add>, %845, %cst_220 [1] : vector<4x32xf32> to vector<4xf32>
    %847 = vector.shape_cast %846 : vector<4xf32> to vector<4x1xf32>
    %cst_221 = arith.constant 1.000000e-24 : f32
    %848 = vector.broadcast %cst_221 : f32 to vector<4x1xf32>
    %849 = arith.maximumf %847, %848 : vector<4x1xf32>
    %850 = math.rsqrt %849 : vector<4x1xf32>
    %851 = vector.broadcast %850 : vector<4x1xf32> to vector<4x32xf32>
    %852 = arith.mulf %844, %851 : vector<4x32xf32>
    %853 = vector.shape_cast %64 : vector<4x1xi1> to vector<4x1xi1>
    %854 = vector.broadcast %853 : vector<4x1xi1> to vector<4x32xi1>
    %855 = arith.select %854, %852, %795 : vector<4x32xi1>, vector<4x32xf32>
    %cst_222 = arith.constant dense<0.000000e+00> : vector<8x32xf32>
    %856 = tpu.matmul %54, %825, %cst_222 {dimension_numbers = #tpu.dot_dimension_numbers<[1], [0], [0], [1], [0, 0, 1, 1], [], []>} : vector<8x4xf32>, vector<4x32xf32>, vector<8x32xf32> -> vector<8x32xf32>
    %cst_223 = arith.constant dense<0.000000e+00> : vector<8x32xf32>
    %857 = tpu.matmul %60, %855, %cst_223 {dimension_numbers = #tpu.dot_dimension_numbers<[1], [0], [0], [1], [0, 0, 1, 1], [], []>} : vector<8x4xf32>, vector<4x32xf32>, vector<8x32xf32> -> vector<8x32xf32>
    %858 = arith.addf %856, %857 : vector<8x32xf32>
    %859 = vector.shape_cast %48 : vector<8x1xi1> to vector<8x1xi1>
    %860 = vector.broadcast %859 : vector<8x1xi1> to vector<8x32xi1>
    %861 = arith.select %860, %858, %729 : vector<8x32xi1>, vector<8x32xf32>
    %c0_224 = arith.constant 0 : index
    %c0_225 = arith.constant 0 : index
    %862 = vector.load %arg12[%c0_224, %c0_225] : memref<8x32xf32, #tpu.memory_space<vmem>>, vector<8x32xf32>
    tpu.vector_store %arg12[%c0_224, %c0_225], %861 {strides = array<i32>} : memref<8x32xf32, #tpu.memory_space<vmem>>, vector<8x32xf32>,
    return
  }
}

</mosaic_0001>

<llo_original>
// kernel: tpu_custom_call.1
$region0: #{tpu_custom_call.1}
  #allocation0 [shape = 'u32[]', space=smem, size = 0x4, offset = 0x4, fixed_abs, tag = 'smem constant byte address 0x4 - core index']
  #allocation1 [shape = 'u32[144,128]{1,0:T(1,128)}', space=vmem, size = 0x12000, scoped, tag = 'internal scratch']
  %s0 = inlined_call_operand.vmem [shape: s32[4,1], index: 0, kind: input, shape index: {}]
  %s1 = inlined_call_operand.vmem [shape: s32[4,1], index: 1, kind: input, shape index: {}]
  %s2 = inlined_call_operand.vmem [shape: s32[4,1], index: 2, kind: input, shape index: {}]
  %s3 = inlined_call_operand.hbm [shape: s32[1,4], index: 3, kind: input, shape index: {}]
  %s4 = inlined_call_operand.vmem [shape: s32[1,4], index: 4, kind: input, shape index: {}]
  %s5 = inlined_call_operand.vmem [shape: f32[8,32], index: 5, kind: input, shape index: {}]
  %s6 = inlined_call_operand.vmem [shape: f32[8,8], index: 6, kind: input, shape index: {}]
  %s7 = inlined_call_operand.hbm [shape: f32[40,64], index: 7, kind: input, shape index: {}]
  %s8 = inlined_call_operand.hbm [shape: f32[2,64,64], index: 8, kind: input, shape index: {}]
  %s9 = inlined_call_operand.vmem [shape: f32[2,1,32], index: 9, kind: input, shape index: {}]
  %s10 = inlined_call_operand.hbm [shape: f32[2,64,64], index: 10, kind: input, shape index: {}]
  %s11 = inlined_call_operand.vmem [shape: f32[2,1,32], index: 11, kind: input, shape index: {}]
  %s12 = inlined_call_operand.hbm [shape: f32[8,32], index: 12, kind: output, shape index: {}]
  %s13 = sld [smem:[#allocation0]]
  $region74: #{tpu_custom_call.1} parent=0
    _
  %s15 = ssub.s32 1, %s13
  %s16 = scalar_select 0, %s15, %s13
  $region1: #{tpu_custom_call.1} parent=0
    #allocation2 [shape = 'u8[512]{0}', space=vmem, size = 0x400, scoped, tag = 'input window, operand 3, single buffered']
    #allocation3 [shape = 's32[1]{0}', space=sflag, size = 0x4, scoped, tag = 'scoped memory for tpu_custom_call.1']
    #allocation4 [shape = 's32[1]{0}', space=sflag, size = 0x4, scoped, tag = 'scoped memory for tpu_custom_call.1']
    #allocation5 [shape = 'u8[20480]{0}', space=vmem, size = 0x5000, scoped, tag = 'input window, operand 7, single buffered']
    #allocation6 [shape = 's32[1]{0}', space=sflag, size = 0x4, scoped, tag = 'scoped memory for tpu_custom_call.1']
    #allocation7 [shape = 'u8[65536]{0}', space=vmem, size = 0x10000, scoped, tag = 'input window, operand 8, single buffered']
    #allocation8 [shape = 'u8[65536]{0}', space=vmem, size = 0x10000, scoped, tag = 'input window, operand 10, single buffered']
    #allocation9 [shape = 's32[1]{0}', space=sflag, size = 0x4, scoped, tag = 'scoped memory for tpu_custom_call.1']
    #allocation10 [shape = 'u8[4096]{0}', space=vmem, size = 0x1000, scoped, tag = 'output window, operand 0, single buffered']
    %17 = vsyncpa [#allocation3], 0
    %18 = vsyncpa [#allocation6], 0
    %19 = vsyncpa [#allocation9], 0
    %20 = vsyncpa [#allocation4], 0
    // Predicated region
    $region2: #{tpu_custom_call.1} parent=1 // pred_check
      _
    $region3: #{tpu_custom_call.1} parent=1 // pred_check_branch
      %22 = sbr.rel (0) target = $region5
    $region4: #{tpu_custom_call.1} parent=1 // pred_region
      _
    $region5: #{tpu_custom_call.1} parent=1 // pred_fallthru
      _
    // Predicated region
    $region6: #{tpu_custom_call.1} parent=1 // pred_check
      _
    $region7: #{tpu_custom_call.1} parent=1 // pred_check_branch
      %24 = sbr.rel (0) target = $region9
    $region8: #{tpu_custom_call.1} parent=1 // pred_region
      _
    $region9: #{tpu_custom_call.1} parent=1 // pred_fallthru
      _
    // Predicated region
    $region10: #{tpu_custom_call.1} parent=1 // pred_check
      _
    $region11: #{tpu_custom_call.1} parent=1 // pred_check_branch
      %26 = sbr.rel (0) target = $region13
    $region12: #{tpu_custom_call.1} parent=1 // pred_region
      _
    $region13: #{tpu_custom_call.1} parent=1 // pred_fallthru
      _
    // Predicated region
    $region14: #{tpu_custom_call.1} parent=1 // pred_check
      _
    $region15: #{tpu_custom_call.1} parent=1 // pred_check_branch
      %28 = sbr.rel (0) target = $region17
    $region16: #{tpu_custom_call.1} parent=1 // pred_region
      %s30 = ssub.s32 16, 16
      %31 = vsyncadd [#allocation3], %s30
      %s33 = sshll.u32 [#allocation2], 4
      %s34 = int_to_ptr.vmem [resolvable:$true] %s33
      %36 = dma.hbm_to_vmem [thread:$0]  %s3, 16, %s34, [#allocation3]
    $region17: #{tpu_custom_call.1} parent=1 // pred_fallthru
      _
    // Predicated region
    $region18: #{tpu_custom_call.1} parent=1 // pred_check
      _
    $region19: #{tpu_custom_call.1} parent=1 // pred_check_branch
      %38 = sbr.rel (0) target = $region21
    $region20: #{tpu_custom_call.1} parent=1 // pred_region
      _
    $region21: #{tpu_custom_call.1} parent=1 // pred_fallthru
      _
    // Predicated region
    $region22: #{tpu_custom_call.1} parent=1 // pred_check
      _
    $region23: #{tpu_custom_call.1} parent=1 // pred_check_branch
      %40 = sbr.rel (0) target = $region25
    $region24: #{tpu_custom_call.1} parent=1 // pred_region
      _
    $region25: #{tpu_custom_call.1} parent=1 // pred_fallthru
      _
    // Predicated region
    $region26: #{tpu_custom_call.1} parent=1 // pred_check
      _
    $region27: #{tpu_custom_call.1} parent=1 // pred_check_branch
      %42 = sbr.rel (0) target = $region29
    $region28: #{tpu_custom_call.1} parent=1 // pred_region
      _
    $region29: #{tpu_custom_call.1} parent=1 // pred_fallthru
      _
    // Predicated region
    $region30: #{tpu_custom_call.1} parent=1 // pred_check
      _
    $region31: #{tpu_custom_call.1} parent=1 // pred_check_branch
      %44 = sbr.rel (0) target = $region33
    $region32: #{tpu_custom_call.1} parent=1 // pred_region
      %s46 = ssub.s32 640, 640
      %47 = vsyncadd [#allocation6], %s46
      %s48 = sshll.u32 [#allocation5], 4
      %s49 = int_to_ptr.vmem [resolvable:$true] %s48
      %54 = dma.hbm_to_vmem [thread:$0]  %s7, 640, %s49, [#allocation6], 128, 128, 8
    $region33: #{tpu_custom_call.1} parent=1 // pred_fallthru
      _
    // Predicated region
    $region34: #{tpu_custom_call.1} parent=1 // pred_check
      _
    $region35: #{tpu_custom_call.1} parent=1 // pred_check_branch
      %56 = sbr.rel (0) target = $region37
    $region36: #{tpu_custom_call.1} parent=1 // pred_region
      %s58 = ssub.s32 2048, 2048
      %59 = vsyncadd [#allocation6], %s58
      %s60 = sshll.u32 [#allocation7], 4
      %s61 = int_to_ptr.vmem [resolvable:$true] %s60
      %66 = dma.hbm_to_vmem [thread:$0]  %s8, 2048, %s61, [#allocation6], 128, 128, 8
    $region37: #{tpu_custom_call.1} parent=1 // pred_fallthru
      _
    // Predicated region
    $region38: #{tpu_custom_call.1} parent=1 // pred_check
      _
    $region39: #{tpu_custom_call.1} parent=1 // pred_check_branch
      %68 = sbr.rel (0) target = $region41
    $region40: #{tpu_custom_call.1} parent=1 // pred_region
      _
    $region41: #{tpu_custom_call.1} parent=1 // pred_fallthru
      _
    // Predicated region
    $region42: #{tpu_custom_call.1} parent=1 // pred_check
      _
    $region43: #{tpu_custom_call.1} parent=1 // pred_check_branch
      %70 = sbr.rel (0) target = $region45
    $region44: #{tpu_custom_call.1} parent=1 // pred_region
      %s72 = ssub.s32 2048, 2048
      %73 = vsyncadd [#allocation9], %s72
      %s74 = sshll.u32 [#allocation8], 4
      %s75 = int_to_ptr.vmem [resolvable:$true] %s74
      %80 = dma.hbm_to_vmem [thread:$0]  %s10, 2048, %s75, [#allocation9], 128, 128, 8
    $region45: #{tpu_custom_call.1} parent=1 // pred_fallthru
      _
    // Predicated region
    $region46: #{tpu_custom_call.1} parent=1 // pred_check
      _
    $region47: #{tpu_custom_call.1} parent=1 // pred_check_branch
      %82 = sbr.rel (0) target = $region49
    $region48: #{tpu_custom_call.1} parent=1 // pred_region
      _
    $region49: #{tpu_custom_call.1} parent=1 // pred_fallthru
      _
    // Predicated region
    $region50: #{tpu_custom_call.1} parent=1 // pred_check
      _
    $region51: #{tpu_custom_call.1} parent=1 // pred_check_branch
      %84 = sbr.rel (0) target = $region53
    $region52: #{tpu_custom_call.1} parent=1 // pred_region
      %85 = dma.done [#allocation3], 16
    $region53: #{tpu_custom_call.1} parent=1 // pred_fallthru
      _
    // Predicated region
    $region54: #{tpu_custom_call.1} parent=1 // pred_check
      _
    $region55: #{tpu_custom_call.1} parent=1 // pred_check_branch
      %87 = sbr.rel (0) target = $region57
    $region56: #{tpu_custom_call.1} parent=1 // pred_region
      %88 = dma.done [#allocation6], 640
    $region57: #{tpu_custom_call.1} parent=1 // pred_fallthru
      _
    // Predicated region
    $region58: #{tpu_custom_call.1} parent=1 // pred_check
      _
    $region59: #{tpu_custom_call.1} parent=1 // pred_check_branch
      %90 = sbr.rel (0) target = $region61
    $region60: #{tpu_custom_call.1} parent=1 // pred_region
      %91 = dma.done [#allocation6], 2048
    $region61: #{tpu_custom_call.1} parent=1 // pred_fallthru
      _
    // Predicated region
    $region62: #{tpu_custom_call.1} parent=1 // pred_check
      _
    $region63: #{tpu_custom_call.1} parent=1 // pred_check_branch
      %93 = sbr.rel (0) target = $region65
    $region64: #{tpu_custom_call.1} parent=1 // pred_region
      %94 = dma.done [#allocation9], 2048
    $region65: #{tpu_custom_call.1} parent=1 // pred_fallthru
      _
    %v95 = vld [vmem:[%s6] sm:$0xff]
    %vm96 = vcmp.ne.f32.partialorder %v95, 0.0
    %v97 = vsel %vm96, 1.0, 0.0
    %vm98 = vcmask 64512
    %v99 = vsel %vm98, %v97, -inf
    %100 = vmax.xlane.f32.xlu0 %v99
    %v101 = vpop.xlane.xlu0 %100
    %vm102 = vcmp.gt.f32.partialorder %v101, 0.0
    %v103 = vld [vmem:[#allocation5] sm:$0xff]
    %v104 = vld [vmem:[#allocation5 + $0x8] sm:$0xff]
    %v105 = vld [vmem:[#allocation5 + $0x10] sm:$0xff]
    %v106 = vld [vmem:[#allocation5 + $0x18] sm:$0xff]
    %v107 = vld [vmem:[#allocation5 + $0x20] sm:$0xff]
    %v108 = vld [vmem:[%s0] sm:$0xf]
    %v109 = vld [vmem:[%s1] sm:$0xf]
    %v110 = vld [vmem:[%s2] sm:$0xf]
    %v111 = vld [vmem:[#allocation2] sm:$0x1]
    %v112 = vld [vmem:[%s4] sm:$0x1]
    %v113 = vlaneseq
    %v114 = vand.u32 %v113, 127
    %115 = vset.pattern.permute.xlu0 0
    %116 = vperm.xlu0 %115, %v108
    %v117 = vpop.permute.xlu0 %116
    %vm118 = vcmp.eq.s32.totalorder %v117, %v114
    %v119 = vsel %vm118, 1, 0
    %v120 = vcvt.s32.f32 %v119
    %121 = vset.pattern.permute.xlu0 0
    %122 = vperm.xlu0 %121, %v109
    %v123 = vpop.permute.xlu0 %122
    %vm124 = vcmp.eq.s32.totalorder %v123, %v114
    %v125 = vsel %vm124, 1, 0
    %v126 = vcvt.s32.f32 %v125
    %v127 = vlaneseq
    %v128 = vshrl.u32 %v127, 7
    %v129 = vmul.u32 %v114, 2
    %v130 = vadd.s32 %v129, 1
    %v131 = vcvt.s32.f32 %v130
    %v132 = vlaneseq
    %v133 = vshrl.u32 %v132, 7
    %v134 = vsub.s32 0, %v133
    %v135 = vrot.slane %v111, %v134
    %vm136 = vcmp.eq.s32.totalorder %v128, %v135
    %v137 = vsel %vm136, %v131, 0.0
    %v138 = vlaneseq
    %v139 = vshrl.u32 %v138, 7
    %v140 = vsub.s32 0, %v139
    %v141 = vrot.slane %v112, %v140
    %vm142 = vcmp.eq.s32.totalorder %v128, %v141
    %v143 = vadd.f32 %v131, 1.0
    %v144 = vsel %vm142, %v143, 0.0
    %vm145 = vcmask 31744
    %v146 = vsel %vm145, %v137, -inf
    %147 = vmax.xlane.f32.xlu0 %v146
    %v148 = vpop.xlane.xlu0 %147
    %v149 = vsel %vm145, %v144, -inf
    %150 = vmax.xlane.f32.xlu0 %v149
    %v151 = vpop.xlane.xlu0 %150
    %v152 = vmax.f32 %v148, %v151
    %vm153 = vcmp.gt.f32.partialorder %v152, 0.0
    %vm154 = vcmp.eq.f32.partialorder %v137, %v152
    %v155 = vsel %vm153, 1, 0
    %vm156 = vcmp.eq.s32.totalorder %v155, 1
    %vm157 = vmand %vm154, %vm156
    %v158 = vsel %vm157, 1, 0
    %v159 = vcvt.s32.f32 %v158
    %vm160 = vcmp.eq.f32.partialorder %v144, %v152
    %vm161 = vmand %vm160, %vm156
    %v162 = vsel %vm161, 1, 0
    %v163 = vcvt.s32.f32 %v162
    %vm164 = vcmp.eq.s32.totalorder %v110, 0
    %vm165 = vcmp.eq.s32.totalorder %v110, 1
    %v166 = vld [vmem:[#allocation7] sm:$0xff]
    %v167 = vld [vmem:[#allocation7 + $0x8] sm:$0xff]
    %v168 = vld [vmem:[#allocation7 + $0x10] sm:$0xff]
    %v169 = vld [vmem:[#allocation7 + $0x18] sm:$0xff]
    %v170 = vld [vmem:[#allocation7 + $0x20] sm:$0xff]
    %v171 = vld [vmem:[#allocation7 + $0x28] sm:$0xff]
    %v172 = vld [vmem:[#allocation7 + $0x30] sm:$0xff]
    %v173 = vld [vmem:[#allocation7 + $0x38] sm:$0xff]
    %s174 = scalar_lea.vmem [#allocation7], 64
    %v175 = vld [vmem:[%s174] sm:$0xff]
    %v176 = vld [vmem:[%s174 + $0x8] sm:$0xff]
    %v177 = vld [vmem:[%s174 + $0x10] sm:$0xff]
    %v178 = vld [vmem:[%s174 + $0x18] sm:$0xff]
    %v179 = vld [vmem:[%s174 + $0x20] sm:$0xff]
    %v180 = vld [vmem:[%s174 + $0x28] sm:$0xff]
    %v181 = vld [vmem:[%s174 + $0x30] sm:$0xff]
    %v182 = vld [vmem:[%s174 + $0x38] sm:$0xff]
    %v183 = vld [vmem:[#allocation8] sm:$0xff]
    %v184 = vld [vmem:[#allocation8 + $0x8] sm:$0xff]
    %v185 = vld [vmem:[#allocation8 + $0x10] sm:$0xff]
    %v186 = vld [vmem:[#allocation8 + $0x18] sm:$0xff]
    %v187 = vld [vmem:[#allocation8 + $0x20] sm:$0xff]
    %v188 = vld [vmem:[#allocation8 + $0x28] sm:$0xff]
    %v189 = vld [vmem:[#allocation8 + $0x30] sm:$0xff]
    %v190 = vld [vmem:[#allocation8 + $0x38] sm:$0xff]
    %s191 = scalar_lea.vmem [#allocation8], 64
    %v192 = vld [vmem:[%s191] sm:$0xff]
    %v193 = vld [vmem:[%s191 + $0x8] sm:$0xff]
    %v194 = vld [vmem:[%s191 + $0x10] sm:$0xff]
    %v195 = vld [vmem:[%s191 + $0x18] sm:$0xff]
    %v196 = vld [vmem:[%s191 + $0x20] sm:$0xff]
    %v197 = vld [vmem:[%s191 + $0x28] sm:$0xff]
    %v198 = vld [vmem:[%s191 + $0x30] sm:$0xff]
    %v199 = vld [vmem:[%s191 + $0x38] sm:$0xff]
    %v200 = vld [vmem:[%s9] sm:$0x1]
    %s201 = scalar_lea.vmem %s9, 1
    %v202 = vld [vmem:[%s201] sm:$0x1]
    %v203 = vld [vmem:[%s11] sm:$0x1]
    %s204 = scalar_lea.vmem %s11, 1
    %v205 = vld [vmem:[%s204] sm:$0x1]
    %v206 = vld [vmem:[%s5] sm:$0xff]
    %208 = vrot.lane.b32.xlu0 %v95, 32
    %v209 = vpop.permute.xlu0 %208
    %vm211 = vcmask 261120
    %v212 = vsel %vm211, %v206, %v209
    %vm213 = vcmask 326656
    %v215 = vsel %vm213, %v212, 0
    %217 = vmatprep.subr.mxu0 0.0
    %218 = vmatpush1.msra.mxu0 0.0
    %219 = vmatprep.subr.mxu0 0.0
    %220 = vmatpush1.msra.mxu0 0.0
    %221 = vmatprep.subr.mxu0 0.0
    %222 = vmatpush1.msra.mxu0 0.0
    %223 = vmatprep.subr.mxu0 0.0
    %224 = vmatpush1.msra.mxu0 0.0
    %225 = vmatprep.subr.mxu0 0.0
    %226 = vmatpush1.msra.mxu0 0.0
    %227 = vmatprep.subr.mxu0 0.0
    %228 = vmatpush1.msra.mxu0 0.0
    %229 = vmatprep.subr.mxu0 0.0
    %230 = vmatpush1.msra.mxu0 0.0
    %231 = vmatprep.subr.mxu0 0.0
    %232 = vmatpush1.msra.mxu0 0.0
    %233 = vmatprep.subr.mxu0 0.0
    %234 = vmatpush1.msra.mxu0 0.0
    %235 = vmatprep.subr.mxu0 0.0
    %236 = vmatpush1.msra.mxu0 0.0
    %237 = vmatprep.subr.mxu0 0.0
    %238 = vmatpush1.msra.mxu0 0.0
    %239 = vmatprep.subr.mxu0 0.0
    %240 = vmatpush1.msra.mxu0 %v107
    %241 = vmatprep.subr.mxu0 0.0
    %242 = vmatpush1.msra.mxu0 %v106
    %243 = vmatprep.subr.mxu0 0.0
    %244 = vmatpush1.msra.mxu0 %v105
    %245 = vmatprep.subr.mxu0 0.0
    %246 = vmatpush1.msra.mxu0 %v104
    %247 = vmatprep.subr.mxu0 0.0
    %248 = vmatpush1.msra.mxu0 %v103
    %249 = vmatprep.subr.mxu0 0.0
    %250 = vmatpush2.msra.mxu0 0.0
    %251 = vmatprep.subr.mxu0 0.0
    %252 = vmatpush2.msra.mxu0 0.0
    %253 = vmatprep.subr.mxu0 0.0
    %254 = vmatpush2.msra.mxu0 0.0
    %255 = vmatprep.subr.mxu0 0.0
    %256 = vmatpush2.msra.mxu0 0.0
    %257 = vmatprep.subr.mxu0 0.0
    %258 = vmatpush2.msra.mxu0 0.0
    %259 = vmatprep.subr.mxu0 0.0
    %260 = vmatpush2.msra.mxu0 0.0
    %261 = vmatprep.subr.mxu0 0.0
    %262 = vmatpush2.msra.mxu0 0.0
    %263 = vmatprep.subr.mxu0 0.0
    %264 = vmatpush2.msra.mxu0 0.0
    %265 = vmatprep.subr.mxu0 0.0
    %266 = vmatpush2.msra.mxu0 0.0
    %267 = vmatprep.subr.mxu0 0.0
    %268 = vmatpush2.msra.mxu0 0.0
    %269 = vmatprep.subr.mxu0 0.0
    %270 = vmatpush2.msra.mxu0 0.0
    %271 = vmatprep.subr.mxu0 0.0
    %272 = vmatpush2.msra.mxu0 0.0
    %273 = vmatprep.subr.mxu0 0.0
    %274 = vmatpush2.msra.mxu0 0.0
    %275 = vmatprep.subr.mxu0 0.0
    %276 = vmatpush2.msra.mxu0 0.0
    %277 = vmatprep.subr.mxu0 0.0
    %278 = vmatpush2.msra.mxu0 0.0
    %279 = vmatprep.subr.mxu0 0.0
    %280 = vmatpush2.msra.mxu0 0.0
    %281 = vmatprep.mubr.f32.mxu0 0.0
    %282 = vmatmul.mubr.f32.gmra.mxu0 %v215
    %v283 = vpop.f32.mrf.mxu0
    %v284 = vadd.f32 0.0, %v283
    %v285 = vpop.f32.mrf.mxu0
    %286 = vdwg.mxu0
    %v287 = vxor.u32 %v284, 2147483648
    %v288 = vmul.f32 %v287, 1.442695
    %v289 = vpow.pop %v288
    %v290 = vadd.f32 %v289, 1.0
    %v291 = vrcp.pop %v290
    %v292 = vmul.f32 1.0, %v291
    %v293 = vmax.f32 %v284, 0.0
    %295 = vrot.lane.b32.xlu0 %v292, 32
    %v296 = vpop.permute.xlu0 %295
    %v298 = vmul.f32 %v293, %v296
    %300 = vrot.lane.b32.xlu0 %v298, 96
    %v301 = vpop.permute.xlu0 %300
    %v303 = vadd.f32 %v206, %v301
    %v304 = vmul.f32 %v303, %v303
    %v305 = vsel %vm211, %v304, 0.0
    %306 = vadd.xlane.f32.xlu0 %v305
    %v307 = vpop.xlane.xlu0 %306
    %v308 = vmax.f32 %v307, 1e-24
    %v309 = vrsqrt.pop %v308
    %v310 = vmul.f32 %v303, %v309
    %v311 = vsel %vm102, 1, 0
    %vm312 = vcmp.eq.s32.totalorder %v311, 1
    %v313 = vsel %vm312, %v310, %v206
    %v315 = vsel %vm98, %v120, 0
    %317 = vmatprep.subr.mxu0 0.0
    %318 = vmatpush1.msra.mxu0 0.0
    %319 = vmatprep.subr.mxu0 0.0
    %320 = vmatpush1.msra.mxu0 0.0
    %321 = vmatprep.subr.mxu0 0.0
    %322 = vmatpush1.msra.mxu0 0.0
    %323 = vmatprep.subr.mxu0 0.0
    %324 = vmatpush1.msra.mxu0 0.0
    %325 = vmatprep.subr.mxu0 0.0
    %326 = vmatpush1.msra.mxu0 0.0
    %327 = vmatprep.subr.mxu0 0.0
    %328 = vmatpush1.msra.mxu0 0.0
    %329 = vmatprep.subr.mxu0 0.0
    %330 = vmatpush1.msra.mxu0 0.0
    %331 = vmatprep.subr.mxu0 0.0
    %332 = vmatpush1.msra.mxu0 0.0
    %333 = vmatprep.subr.mxu0 0.0
    %334 = vmatpush1.msra.mxu0 0.0
    %335 = vmatprep.subr.mxu0 0.0
    %336 = vmatpush1.msra.mxu0 0.0
    %337 = vmatprep.subr.mxu0 0.0
    %338 = vmatpush1.msra.mxu0 0.0
    %339 = vmatprep.subr.mxu0 0.0
    %340 = vmatpush1.msra.mxu0 0.0
    %341 = vmatprep.subr.mxu0 0.0
    %342 = vmatpush1.msra.mxu0 0.0
    %343 = vmatprep.subr.mxu0 0.0
    %344 = vmatpush1.msra.mxu0 0.0
    %345 = vmatprep.subr.mxu0 0.0
    %346 = vmatpush1.msra.mxu0 0.0
    %347 = vmatprep.subr.mxu0 0.0
    %348 = vmatpush1.msra.mxu0 %v206
    %349 = vmatprep.subr.mxu0 0.0
    %350 = vmatpush2.msra.mxu0 0.0
    %351 = vmatprep.subr.mxu0 0.0
    %352 = vmatpush2.msra.mxu0 0.0
    %353 = vmatprep.subr.mxu0 0.0
    %354 = vmatpush2.msra.mxu0 0.0
    %355 = vmatprep.subr.mxu0 0.0
    %356 = vmatpush2.msra.mxu0 0.0
    %357 = vmatprep.subr.mxu0 0.0
    %358 = vmatpush2.msra.mxu0 0.0
    %359 = vmatprep.subr.mxu0 0.0
    %360 = vmatpush2.msra.mxu0 0.0
    %361 = vmatprep.subr.mxu0 0.0
    %362 = vmatpush2.msra.mxu0 0.0
    %363 = vmatprep.subr.mxu0 0.0
    %364 = vmatpush2.msra.mxu0 0.0
    %365 = vmatprep.subr.mxu0 0.0
    %366 = vmatpush2.msra.mxu0 0.0
    %367 = vmatprep.subr.mxu0 0.0
    %368 = vmatpush2.msra.mxu0 0.0
    %369 = vmatprep.subr.mxu0 0.0
    %370 = vmatpush2.msra.mxu0 0.0
    %371 = vmatprep.subr.mxu0 0.0
    %372 = vmatpush2.msra.mxu0 0.0
    %373 = vmatprep.subr.mxu0 0.0
    %374 = vmatpush2.msra.mxu0 0.0
    %375 = vmatprep.subr.mxu0 0.0
    %376 = vmatpush2.msra.mxu0 0.0
    %377 = vmatprep.subr.mxu0 0.0
    %378 = vmatpush2.msra.mxu0 0.0
    %379 = vmatprep.subr.mxu0 0.0
    %380 = vmatpush2.msra.mxu0 0.0
    %381 = vmatprep.mubr.f32.mxu0 0.0
    %382 = vmatmul.mubr.f32.gmra.mxu0 %v315
    %v383 = vpop.f32.mrf.mxu0
    %v384 = vadd.f32 0.0, %v383
    %v385 = vpop.f32.mrf.mxu0
    %386 = vdwg.mxu0
    %v388 = vsel %vm98, %v126, 0
    %390 = vmatprep.subr.mxu0 0.0
    %391 = vmatpush1.msra.mxu0 0.0
    %392 = vmatprep.subr.mxu0 0.0
    %393 = vmatpush1.msra.mxu0 0.0
    %394 = vmatprep.subr.mxu0 0.0
    %395 = vmatpush1.msra.mxu0 0.0
    %396 = vmatprep.subr.mxu0 0.0
    %397 = vmatpush1.msra.mxu0 0.0
    %398 = vmatprep.subr.mxu0 0.0
    %399 = vmatpush1.msra.mxu0 0.0
    %400 = vmatprep.subr.mxu0 0.0
    %401 = vmatpush1.msra.mxu0 0.0
    %402 = vmatprep.subr.mxu0 0.0
    %403 = vmatpush1.msra.mxu0 0.0
    %404 = vmatprep.subr.mxu0 0.0
    %405 = vmatpush1.msra.mxu0 0.0
    %406 = vmatprep.subr.mxu0 0.0
    %407 = vmatpush1.msra.mxu0 0.0
    %408 = vmatprep.subr.mxu0 0.0
    %409 = vmatpush1.msra.mxu0 0.0
    %410 = vmatprep.subr.mxu0 0.0
    %411 = vmatpush1.msra.mxu0 0.0
    %412 = vmatprep.subr.mxu0 0.0
    %413 = vmatpush1.msra.mxu0 0.0
    %414 = vmatprep.subr.mxu0 0.0
    %415 = vmatpush1.msra.mxu0 0.0
    %416 = vmatprep.subr.mxu0 0.0
    %417 = vmatpush1.msra.mxu0 0.0
    %418 = vmatprep.subr.mxu0 0.0
    %419 = vmatpush1.msra.mxu0 0.0
    %420 = vmatprep.subr.mxu0 0.0
    %421 = vmatpush1.msra.mxu0 %v206
    %422 = vmatprep.subr.mxu0 0.0
    %423 = vmatpush2.msra.mxu0 0.0
    %424 = vmatprep.subr.mxu0 0.0
    %425 = vmatpush2.msra.mxu0 0.0
    %426 = vmatprep.subr.mxu0 0.0
    %427 = vmatpush2.msra.mxu0 0.0
    %428 = vmatprep.subr.mxu0 0.0
    %429 = vmatpush2.msra.mxu0 0.0
    %430 = vmatprep.subr.mxu0 0.0
    %431 = vmatpush2.msra.mxu0 0.0
    %432 = vmatprep.subr.mxu0 0.0
    %433 = vmatpush2.msra.mxu0 0.0
    %434 = vmatprep.subr.mxu0 0.0
    %435 = vmatpush2.msra.mxu0 0.0
    %436 = vmatprep.subr.mxu0 0.0
    %437 = vmatpush2.msra.mxu0 0.0
    %438 = vmatprep.subr.mxu0 0.0
    %439 = vmatpush2.msra.mxu0 0.0
    %440 = vmatprep.subr.mxu0 0.0
    %441 = vmatpush2.msra.mxu0 0.0
    %442 = vmatprep.subr.mxu0 0.0
    %443 = vmatpush2.msra.mxu0 0.0
    %444 = vmatprep.subr.mxu0 0.0
    %445 = vmatpush2.msra.mxu0 0.0
    %446 = vmatprep.subr.mxu0 0.0
    %447 = vmatpush2.msra.mxu0 0.0
    %448 = vmatprep.subr.mxu0 0.0
    %449 = vmatpush2.msra.mxu0 0.0
    %450 = vmatprep.subr.mxu0 0.0
    %451 = vmatpush2.msra.mxu0 0.0
    %452 = vmatprep.subr.mxu0 0.0
    %453 = vmatpush2.msra.mxu0 0.0
    %454 = vmatprep.mubr.f32.mxu0 0.0
    %455 = vmatmul.mubr.f32.gmra.mxu0 %v388
    %v456 = vpop.f32.mrf.mxu0
    %v457 = vadd.f32 0.0, %v456
    %v458 = vpop.f32.mrf.mxu0
    %459 = vdwg.mxu0
    %461 = vrot.lane.b32.xlu0 %v457, 32
    %v462 = vpop.permute.xlu0 %461
    %v464 = vsel %vm211, %v384, %v462
    %466 = vrot.lane.b32.xlu0 %v384, 32
    %v467 = vpop.permute.xlu0 %466
    %v469 = vsel %vm211, %v457, %v467
    %vm470 = vcmask 523264
    %v472 = vsel %vm470, %v464, 0
    %474 = vmatprep.subr.mxu0 0.0
    %475 = vmatpush1.msra.mxu0 0.0
    %476 = vmatprep.subr.mxu0 0.0
    %477 = vmatpush1.msra.mxu0 0.0
    %478 = vmatprep.subr.mxu0 0.0
    %479 = vmatpush1.msra.mxu0 0.0
    %480 = vmatprep.subr.mxu0 0.0
    %481 = vmatpush1.msra.mxu0 0.0
    %482 = vmatprep.subr.mxu0 0.0
    %483 = vmatpush1.msra.mxu0 0.0
    %484 = vmatprep.subr.mxu0 0.0
    %485 = vmatpush1.msra.mxu0 0.0
    %486 = vmatprep.subr.mxu0 0.0
    %487 = vmatpush1.msra.mxu0 0.0
    %488 = vmatprep.subr.mxu0 0.0
    %489 = vmatpush1.msra.mxu0 0.0
    %490 = vmatprep.subr.mxu0 0.0
    %491 = vmatpush1.msra.mxu0 %v173
    %492 = vmatprep.subr.mxu0 0.0
    %493 = vmatpush1.msra.mxu0 %v172
    %494 = vmatprep.subr.mxu0 0.0
    %495 = vmatpush1.msra.mxu0 %v171
    %496 = vmatprep.subr.mxu0 0.0
    %497 = vmatpush1.msra.mxu0 %v170
    %498 = vmatprep.subr.mxu0 0.0
    %499 = vmatpush1.msra.mxu0 %v169
    %500 = vmatprep.subr.mxu0 0.0
    %501 = vmatpush1.msra.mxu0 %v168
    %502 = vmatprep.subr.mxu0 0.0
    %503 = vmatpush1.msra.mxu0 %v167
    %504 = vmatprep.subr.mxu0 0.0
    %505 = vmatpush1.msra.mxu0 %v166
    %506 = vmatprep.subr.mxu0 0.0
    %507 = vmatpush2.msra.mxu0 0.0
    %508 = vmatprep.subr.mxu0 0.0
    %509 = vmatpush2.msra.mxu0 0.0
    %510 = vmatprep.subr.mxu0 0.0
    %511 = vmatpush2.msra.mxu0 0.0
    %512 = vmatprep.subr.mxu0 0.0
    %513 = vmatpush2.msra.mxu0 0.0
    %514 = vmatprep.subr.mxu0 0.0
    %515 = vmatpush2.msra.mxu0 0.0
    %516 = vmatprep.subr.mxu0 0.0
    %517 = vmatpush2.msra.mxu0 0.0
    %518 = vmatprep.subr.mxu0 0.0
    %519 = vmatpush2.msra.mxu0 0.0
    %520 = vmatprep.subr.mxu0 0.0
    %521 = vmatpush2.msra.mxu0 0.0
    %522 = vmatprep.subr.mxu0 0.0
    %523 = vmatpush2.msra.mxu0 0.0
    %524 = vmatprep.subr.mxu0 0.0
    %525 = vmatpush2.msra.mxu0 0.0
    %526 = vmatprep.subr.mxu0 0.0
    %527 = vmatpush2.msra.mxu0 0.0
    %528 = vmatprep.subr.mxu0 0.0
    %529 = vmatpush2.msra.mxu0 0.0
    %530 = vmatprep.subr.mxu0 0.0
    %531 = vmatpush2.msra.mxu0 0.0
    %532 = vmatprep.subr.mxu0 0.0
    %533 = vmatpush2.msra.mxu0 0.0
    %534 = vmatprep.subr.mxu0 0.0
    %535 = vmatpush2.msra.mxu0 0.0
    %536 = vmatprep.subr.mxu0 0.0
    %537 = vmatpush2.msra.mxu0 0.0
    %538 = vmatprep.mubr.f32.mxu0 0.0
    %539 = vmatmul.mubr.f32.gmra.mxu0 %v472
    %v540 = vpop.f32.mrf.mxu0
    %v541 = vadd.f32 0.0, %v540
    %v542 = vpop.f32.mrf.mxu0
    %543 = vdwg.mxu0
    %v545 = vlaneseq
    %v546 = vshrl.u32 %v545, 7
    %v547 = vsub.s32 0, %v546
    %v548 = vrot.slane %v200, %v547
    %v550 = vmul.f32 %v457, %v548
    %vm551 = vcmask 257024
    %v552 = vsel %vm551, %v550, 0.0
    %553 = vadd.xlane.f32.xlu0 %v552
    %v554 = vpop.xlane.xlu0 %553
    %v555 = vmul.f32 %v384, %v554
    %557 = vrot.lane.b32.xlu0 %v555, 32
    %v558 = vpop.permute.xlu0 %557
    %v560 = vadd.f32 %v541, %v558
    %v561 = vmax.f32 %v560, 0.0
    %v562 = vxor.u32 %v541, 2147483648
    %v563 = vmul.f32 %v562, 1.442695
    %v564 = vpow.pop %v563
    %v565 = vadd.f32 %v564, 1.0
    %v566 = vrcp.pop %v565
    %v567 = vmul.f32 1.0, %v566
    %569 = vrot.lane.b32.xlu0 %v567, 32
    %v570 = vpop.permute.xlu0 %569
    %v572 = vmul.f32 %v561, %v570
    %574 = vrot.lane.b32.xlu0 %v572, 96
    %v575 = vpop.permute.xlu0 %574
    %v577 = vadd.f32 %v384, %v575
    %v578 = vmul.f32 %v577, %v577
    %v579 = vsel %vm551, %v578, 0.0
    %580 = vadd.xlane.f32.xlu0 %v579
    %v581 = vpop.xlane.xlu0 %580
    %v582 = vmax.f32 %v581, 1e-24
    %v583 = vrsqrt.pop %v582
    %v584 = vmul.f32 %v577, %v583
    %v585 = vsel %vm164, 1, 0
    %586 = vset.pattern.permute.xlu0 0
    %587 = vperm.xlu0 %586, %v585
    %v588 = vpop.permute.xlu0 %587
    %vm589 = vcmp.eq.s32.totalorder %v588, 1
    %v590 = vsel %vm589, %v584, 0.0
    %v592 = vsel %vm470, %v469, 0
    %594 = vmatprep.subr.mxu0 0.0
    %595 = vmatpush1.msra.mxu0 0.0
    %596 = vmatprep.subr.mxu0 0.0
    %597 = vmatpush1.msra.mxu0 0.0
    %598 = vmatprep.subr.mxu0 0.0
    %599 = vmatpush1.msra.mxu0 0.0
    %600 = vmatprep.subr.mxu0 0.0
    %601 = vmatpush1.msra.mxu0 0.0
    %602 = vmatprep.subr.mxu0 0.0
    %603 = vmatpush1.msra.mxu0 0.0
    %604 = vmatprep.subr.mxu0 0.0
    %605 = vmatpush1.msra.mxu0 0.0
    %606 = vmatprep.subr.mxu0 0.0
    %607 = vmatpush1.msra.mxu0 0.0
    %608 = vmatprep.subr.mxu0 0.0
    %609 = vmatpush1.msra.mxu0 0.0
    %610 = vmatprep.subr.mxu0 0.0
    %611 = vmatpush1.msra.mxu0 %v190
    %612 = vmatprep.subr.mxu0 0.0
    %613 = vmatpush1.msra.mxu0 %v189
    %614 = vmatprep.subr.mxu0 0.0
    %615 = vmatpush1.msra.mxu0 %v188
    %616 = vmatprep.subr.mxu0 0.0
    %617 = vmatpush1.msra.mxu0 %v187
    %618 = vmatprep.subr.mxu0 0.0
    %619 = vmatpush1.msra.mxu0 %v186
    %620 = vmatprep.subr.mxu0 0.0
    %621 = vmatpush1.msra.mxu0 %v185
    %622 = vmatprep.subr.mxu0 0.0
    %623 = vmatpush1.msra.mxu0 %v184
    %624 = vmatprep.subr.mxu0 0.0
    %625 = vmatpush1.msra.mxu0 %v183
    %626 = vmatprep.subr.mxu0 0.0
    %627 = vmatpush2.msra.mxu0 0.0
    %628 = vmatprep.subr.mxu0 0.0
    %629 = vmatpush2.msra.mxu0 0.0
    %630 = vmatprep.subr.mxu0 0.0
    %631 = vmatpush2.msra.mxu0 0.0
    %632 = vmatprep.subr.mxu0 0.0
    %633 = vmatpush2.msra.mxu0 0.0
    %634 = vmatprep.subr.mxu0 0.0
    %635 = vmatpush2.msra.mxu0 0.0
    %636 = vmatprep.subr.mxu0 0.0
    %637 = vmatpush2.msra.mxu0 0.0
    %638 = vmatprep.subr.mxu0 0.0
    %639 = vmatpush2.msra.mxu0 0.0
    %640 = vmatprep.subr.mxu0 0.0
    %641 = vmatpush2.msra.mxu0 0.0
    %642 = vmatprep.subr.mxu0 0.0
    %643 = vmatpush2.msra.mxu0 0.0
    %644 = vmatprep.subr.mxu0 0.0
    %645 = vmatpush2.msra.mxu0 0.0
    %646 = vmatprep.subr.mxu0 0.0
    %647 = vmatpush2.msra.mxu0 0.0
    %648 = vmatprep.subr.mxu0 0.0
    %649 = vmatpush2.msra.mxu0 0.0
    %650 = vmatprep.subr.mxu0 0.0
    %651 = vmatpush2.msra.mxu0 0.0
    %652 = vmatprep.subr.mxu0 0.0
    %653 = vmatpush2.msra.mxu0 0.0
    %654 = vmatprep.subr.mxu0 0.0
    %655 = vmatpush2.msra.mxu0 0.0
    %656 = vmatprep.subr.mxu0 0.0
    %657 = vmatpush2.msra.mxu0 0.0
    %658 = vmatprep.mubr.f32.mxu0 0.0
    %659 = vmatmul.mubr.f32.gmra.mxu0 %v592
    %v660 = vpop.f32.mrf.mxu0
    %v661 = vadd.f32 0.0, %v660
    %v662 = vpop.f32.mrf.mxu0
    %663 = vdwg.mxu0
    %v665 = vlaneseq
    %v666 = vshrl.u32 %v665, 7
    %v667 = vsub.s32 0, %v666
    %v668 = vrot.slane %v203, %v667
    %v670 = vmul.f32 %v384, %v668
    %v671 = vsel %vm551, %v670, 0.0
    %672 = vadd.xlane.f32.xlu0 %v671
    %v673 = vpop.xlane.xlu0 %672
    %v674 = vmul.f32 %v457, %v673
    %676 = vrot.lane.b32.xlu0 %v674, 32
    %v677 = vpop.permute.xlu0 %676
    %v679 = vadd.f32 %v661, %v677
    %v680 = vmax.f32 %v679, 0.0
    %v681 = vxor.u32 %v661, 2147483648
    %v682 = vmul.f32 %v681, 1.442695
    %v683 = vpow.pop %v682
    %v684 = vadd.f32 %v683, 1.0
    %v685 = vrcp.pop %v684
    %v686 = vmul.f32 1.0, %v685
    %688 = vrot.lane.b32.xlu0 %v686, 32
    %v689 = vpop.permute.xlu0 %688
    %v691 = vmul.f32 %v680, %v689
    %693 = vrot.lane.b32.xlu0 %v691, 96
    %v694 = vpop.permute.xlu0 %693
    %v696 = vadd.f32 %v457, %v694
    %v697 = vmul.f32 %v696, %v696
    %v698 = vsel %vm551, %v697, 0.0
    %699 = vadd.xlane.f32.xlu0 %v698
    %v700 = vpop.xlane.xlu0 %699
    %v701 = vmax.f32 %v700, 1e-24
    %v702 = vrsqrt.pop %v701
    %v703 = vmul.f32 %v696, %v702
    %v704 = vsel %vm589, %v703, 0.0
    %705 = vmatprep.subr.mxu0 0.0
    %706 = vmatpush1.msra.mxu0 0.0
    %707 = vmatprep.subr.mxu0 0.0
    %708 = vmatpush1.msra.mxu0 0.0
    %709 = vmatprep.subr.mxu0 0.0
    %710 = vmatpush1.msra.mxu0 0.0
    %711 = vmatprep.subr.mxu0 0.0
    %712 = vmatpush1.msra.mxu0 0.0
    %713 = vmatprep.subr.mxu0 0.0
    %714 = vmatpush1.msra.mxu0 0.0
    %715 = vmatprep.subr.mxu0 0.0
    %716 = vmatpush1.msra.mxu0 0.0
    %717 = vmatprep.subr.mxu0 0.0
    %718 = vmatpush1.msra.mxu0 0.0
    %719 = vmatprep.subr.mxu0 0.0
    %720 = vmatpush1.msra.mxu0 0.0
    %721 = vmatprep.subr.mxu0 0.0
    %722 = vmatpush1.msra.mxu0 %v182
    %723 = vmatprep.subr.mxu0 0.0
    %724 = vmatpush1.msra.mxu0 %v181
    %725 = vmatprep.subr.mxu0 0.0
    %726 = vmatpush1.msra.mxu0 %v180
    %727 = vmatprep.subr.mxu0 0.0
    %728 = vmatpush1.msra.mxu0 %v179
    %729 = vmatprep.subr.mxu0 0.0
    %730 = vmatpush1.msra.mxu0 %v178
    %731 = vmatprep.subr.mxu0 0.0
    %732 = vmatpush1.msra.mxu0 %v177
    %733 = vmatprep.subr.mxu0 0.0
    %734 = vmatpush1.msra.mxu0 %v176
    %735 = vmatprep.subr.mxu0 0.0
    %736 = vmatpush1.msra.mxu0 %v175
    %737 = vmatprep.subr.mxu0 0.0
    %738 = vmatpush2.msra.mxu0 0.0
    %739 = vmatprep.subr.mxu0 0.0
    %740 = vmatpush2.msra.mxu0 0.0
    %741 = vmatprep.subr.mxu0 0.0
    %742 = vmatpush2.msra.mxu0 0.0
    %743 = vmatprep.subr.mxu0 0.0
    %744 = vmatpush2.msra.mxu0 0.0
    %745 = vmatprep.subr.mxu0 0.0
    %746 = vmatpush2.msra.mxu0 0.0
    %747 = vmatprep.subr.mxu0 0.0
    %748 = vmatpush2.msra.mxu0 0.0
    %749 = vmatprep.subr.mxu0 0.0
    %750 = vmatpush2.msra.mxu0 0.0
    %751 = vmatprep.subr.mxu0 0.0
    %752 = vmatpush2.msra.mxu0 0.0
    %753 = vmatprep.subr.mxu0 0.0
    %754 = vmatpush2.msra.mxu0 0.0
    %755 = vmatprep.subr.mxu0 0.0
    %756 = vmatpush2.msra.mxu0 0.0
    %757 = vmatprep.subr.mxu0 0.0
    %758 = vmatpush2.msra.mxu0 0.0
    %759 = vmatprep.subr.mxu0 0.0
    %760 = vmatpush2.msra.mxu0 0.0
    %761 = vmatprep.subr.mxu0 0.0
    %762 = vmatpush2.msra.mxu0 0.0
    %763 = vmatprep.subr.mxu0 0.0
    %764 = vmatpush2.msra.mxu0 0.0
    %765 = vmatprep.subr.mxu0 0.0
    %766 = vmatpush2.msra.mxu0 0.0
    %767 = vmatprep.subr.mxu0 0.0
    %768 = vmatpush2.msra.mxu0 0.0
    %769 = vmatprep.mubr.f32.mxu0 0.0
    %770 = vmatmul.mubr.f32.gmra.mxu0 %v472
    %v771 = vpop.f32.mrf.mxu0
    %v772 = vadd.f32 0.0, %v771
    %v773 = vpop.f32.mrf.mxu0
    %774 = vdwg.mxu0
    %v776 = vlaneseq
    %v777 = vshrl.u32 %v776, 7
    %v778 = vsub.s32 0, %v777
    %v779 = vrot.slane %v202, %v778
    %v781 = vmul.f32 %v457, %v779
    %v782 = vsel %vm551, %v781, 0.0
    %783 = vadd.xlane.f32.xlu0 %v782
    %v784 = vpop.xlane.xlu0 %783
    %v785 = vmul.f32 %v384, %v784
    %787 = vrot.lane.b32.xlu0 %v785, 32
    %v788 = vpop.permute.xlu0 %787
    %v790 = vadd.f32 %v772, %v788
    %v791 = vmax.f32 %v790, 0.0
    %v792 = vxor.u32 %v772, 2147483648
    %v793 = vmul.f32 %v792, 1.442695
    %v794 = vpow.pop %v793
    %v795 = vadd.f32 %v794, 1.0
    %v796 = vrcp.pop %v795
    %v797 = vmul.f32 1.0, %v796
    %799 = vrot.lane.b32.xlu0 %v797, 32
    %v800 = vpop.permute.xlu0 %799
    %v802 = vmul.f32 %v791, %v800
    %804 = vrot.lane.b32.xlu0 %v802, 96
    %v805 = vpop.permute.xlu0 %804
    %v807 = vadd.f32 %v384, %v805
    %v808 = vmul.f32 %v807, %v807
    %v809 = vsel %vm551, %v808, 0.0
    %810 = vadd.xlane.f32.xlu0 %v809
    %v811 = vpop.xlane.xlu0 %810
    %v812 = vmax.f32 %v811, 1e-24
    %v813 = vrsqrt.pop %v812
    %v814 = vmul.f32 %v807, %v813
    %v815 = vsel %vm165, 1, 0
    %816 = vset.pattern.permute.xlu0 0
    %817 = vperm.xlu0 %816, %v815
    %v818 = vpop.permute.xlu0 %817
    %vm819 = vcmp.eq.s32.totalorder %v818, 1
    %v820 = vsel %vm819, %v814, %v590
    %821 = vmatprep.subr.mxu0 0.0
    %822 = vmatpush1.msra.mxu0 0.0
    %823 = vmatprep.subr.mxu0 0.0
    %824 = vmatpush1.msra.mxu0 0.0
    %825 = vmatprep.subr.mxu0 0.0
    %826 = vmatpush1.msra.mxu0 0.0
    %827 = vmatprep.subr.mxu0 0.0
    %828 = vmatpush1.msra.mxu0 0.0
    %829 = vmatprep.subr.mxu0 0.0
    %830 = vmatpush1.msra.mxu0 0.0
    %831 = vmatprep.subr.mxu0 0.0
    %832 = vmatpush1.msra.mxu0 0.0
    %833 = vmatprep.subr.mxu0 0.0
    %834 = vmatpush1.msra.mxu0 0.0
    %835 = vmatprep.subr.mxu0 0.0
    %836 = vmatpush1.msra.mxu0 0.0
    %837 = vmatprep.subr.mxu0 0.0
    %838 = vmatpush1.msra.mxu0 %v199
    %839 = vmatprep.subr.mxu0 0.0
    %840 = vmatpush1.msra.mxu0 %v198
    %841 = vmatprep.subr.mxu0 0.0
    %842 = vmatpush1.msra.mxu0 %v197
    %843 = vmatprep.subr.mxu0 0.0
    %844 = vmatpush1.msra.mxu0 %v196
    %845 = vmatprep.subr.mxu0 0.0
    %846 = vmatpush1.msra.mxu0 %v195
    %847 = vmatprep.subr.mxu0 0.0
    %848 = vmatpush1.msra.mxu0 %v194
    %849 = vmatprep.subr.mxu0 0.0
    %850 = vmatpush1.msra.mxu0 %v193
    %851 = vmatprep.subr.mxu0 0.0
    %852 = vmatpush1.msra.mxu0 %v192
    %853 = vmatprep.subr.mxu0 0.0
    %854 = vmatpush2.msra.mxu0 0.0
    %855 = vmatprep.subr.mxu0 0.0
    %856 = vmatpush2.msra.mxu0 0.0
    %857 = vmatprep.subr.mxu0 0.0
    %858 = vmatpush2.msra.mxu0 0.0
    %859 = vmatprep.subr.mxu0 0.0
    %860 = vmatpush2.msra.mxu0 0.0
    %861 = vmatprep.subr.mxu0 0.0
    %862 = vmatpush2.msra.mxu0 0.0
    %863 = vmatprep.subr.mxu0 0.0
    %864 = vmatpush2.msra.mxu0 0.0
    %865 = vmatprep.subr.mxu0 0.0
    %866 = vmatpush2.msra.mxu0 0.0
    %867 = vmatprep.subr.mxu0 0.0
    %868 = vmatpush2.msra.mxu0 0.0
    %869 = vmatprep.subr.mxu0 0.0
    %870 = vmatpush2.msra.mxu0 0.0
    %871 = vmatprep.subr.mxu0 0.0
    %872 = vmatpush2.msra.mxu0 0.0
    %873 = vmatprep.subr.mxu0 0.0
    %874 = vmatpush2.msra.mxu0 0.0
    %875 = vmatprep.subr.mxu0 0.0
    %876 = vmatpush2.msra.mxu0 0.0
    %877 = vmatprep.subr.mxu0 0.0
    %878 = vmatpush2.msra.mxu0 0.0
    %879 = vmatprep.subr.mxu0 0.0
    %880 = vmatpush2.msra.mxu0 0.0
    %881 = vmatprep.subr.mxu0 0.0
    %882 = vmatpush2.msra.mxu0 0.0
    %883 = vmatprep.subr.mxu0 0.0
    %884 = vmatpush2.msra.mxu0 0.0
    %885 = vmatprep.mubr.f32.mxu0 0.0
    %886 = vmatmul.mubr.f32.gmra.mxu0 %v592
    %v887 = vpop.f32.mrf.mxu0
    %v888 = vadd.f32 0.0, %v887
    %v889 = vpop.f32.mrf.mxu0
    %890 = vdwg.mxu0
    %v892 = vlaneseq
    %v893 = vshrl.u32 %v892, 7
    %v894 = vsub.s32 0, %v893
    %v895 = vrot.slane %v205, %v894
    %v897 = vmul.f32 %v384, %v895
    %v898 = vsel %vm551, %v897, 0.0
    %899 = vadd.xlane.f32.xlu0 %v898
    %v900 = vpop.xlane.xlu0 %899
    %v901 = vmul.f32 %v457, %v900
    %903 = vrot.lane.b32.xlu0 %v901, 32
    %v904 = vpop.permute.xlu0 %903
    %v906 = vadd.f32 %v888, %v904
    %v907 = vmax.f32 %v906, 0.0
    %v908 = vxor.u32 %v888, 2147483648
    %v909 = vmul.f32 %v908, 1.442695
    %v910 = vpow.pop %v909
    %v911 = vadd.f32 %v910, 1.0
    %v912 = vrcp.pop %v911
    %v913 = vmul.f32 1.0, %v912
    %915 = vrot.lane.b32.xlu0 %v913, 32
    %v916 = vpop.permute.xlu0 %915
    %v918 = vmul.f32 %v907, %v916
    %920 = vrot.lane.b32.xlu0 %v918, 96
    %v921 = vpop.permute.xlu0 %920
    %v923 = vadd.f32 %v457, %v921
    %v924 = vmul.f32 %v923, %v923
    %v925 = vsel %vm551, %v924, 0.0
    %926 = vadd.xlane.f32.xlu0 %v925
    %v927 = vpop.xlane.xlu0 %926
    %v928 = vmax.f32 %v927, 1e-24
    %v929 = vrsqrt.pop %v928
    %v930 = vmul.f32 %v923, %v929
    %v931 = vsel %vm819, %v930, %v704
    %v933 = vsel %vm145, %v163, 0
    %vm935 = vcmask 1043456
    %v937 = vsel %vm935, %v931, 0
    %939 = vmatprep.subr.mxu0 0.0
    %940 = vmatpush1.msra.mxu0 0.0
    %941 = vmatprep.subr.mxu0 0.0
    %942 = vmatpush1.msra.mxu0 0.0
    %943 = vmatprep.subr.mxu0 0.0
    %944 = vmatpush1.msra.mxu0 0.0
    %945 = vmatprep.subr.mxu0 0.0
    %946 = vmatpush1.msra.mxu0 0.0
    %947 = vmatprep.subr.mxu0 0.0
    %948 = vmatpush1.msra.mxu0 0.0
    %949 = vmatprep.subr.mxu0 0.0
    %950 = vmatpush1.msra.mxu0 0.0
    %951 = vmatprep.subr.mxu0 0.0
    %952 = vmatpush1.msra.mxu0 0.0
    %953 = vmatprep.subr.mxu0 0.0
    %954 = vmatpush1.msra.mxu0 0.0
    %955 = vmatprep.subr.mxu0 0.0
    %956 = vmatpush1.msra.mxu0 0.0
    %957 = vmatprep.subr.mxu0 0.0
    %958 = vmatpush1.msra.mxu0 0.0
    %959 = vmatprep.subr.mxu0 0.0
    %960 = vmatpush1.msra.mxu0 0.0
    %961 = vmatprep.subr.mxu0 0.0
    %962 = vmatpush1.msra.mxu0 0.0
    %963 = vmatprep.subr.mxu0 0.0
    %964 = vmatpush1.msra.mxu0 0.0
    %965 = vmatprep.subr.mxu0 0.0
    %966 = vmatpush1.msra.mxu0 0.0
    %967 = vmatprep.subr.mxu0 0.0
    %968 = vmatpush1.msra.mxu0 0.0
    %969 = vmatprep.subr.mxu0 0.0
    %970 = vmatpush1.msra.mxu0 %v937
    %971 = vmatprep.subr.mxu0 0.0
    %972 = vmatpush2.msra.mxu0 0.0
    %973 = vmatprep.subr.mxu0 0.0
    %974 = vmatpush2.msra.mxu0 0.0
    %975 = vmatprep.subr.mxu0 0.0
    %976 = vmatpush2.msra.mxu0 0.0
    %977 = vmatprep.subr.mxu0 0.0
    %978 = vmatpush2.msra.mxu0 0.0
    %979 = vmatprep.subr.mxu0 0.0
    %980 = vmatpush2.msra.mxu0 0.0
    %981 = vmatprep.subr.mxu0 0.0
    %982 = vmatpush2.msra.mxu0 0.0
    %983 = vmatprep.subr.mxu0 0.0
    %984 = vmatpush2.msra.mxu0 0.0
    %985 = vmatprep.subr.mxu0 0.0
    %986 = vmatpush2.msra.mxu0 0.0
    %987 = vmatprep.subr.mxu0 0.0
    %988 = vmatpush2.msra.mxu0 0.0
    %989 = vmatprep.subr.mxu0 0.0
    %990 = vmatpush2.msra.mxu0 0.0
    %991 = vmatprep.subr.mxu0 0.0
    %992 = vmatpush2.msra.mxu0 0.0
    %993 = vmatprep.subr.mxu0 0.0
    %994 = vmatpush2.msra.mxu0 0.0
    %995 = vmatprep.subr.mxu0 0.0
    %996 = vmatpush2.msra.mxu0 0.0
    %997 = vmatprep.subr.mxu0 0.0
    %998 = vmatpush2.msra.mxu0 0.0
    %999 = vmatprep.subr.mxu0 0.0
    %1000 = vmatpush2.msra.mxu0 0.0
    %1001 = vmatprep.subr.mxu0 0.0
    %1002 = vmatpush2.msra.mxu0 0.0
    %1003 = vmatprep.mubr.f32.mxu0 0.0
    %1004 = vmatmul.mubr.f32.gmra.mxu0 %v933
    %v1005 = vpop.f32.mrf.mxu0
    %v1006 = vadd.f32 0.0, %v1005
    %v1007 = vpop.f32.mrf.mxu0
    %1008 = vdwg.mxu0
    %v1010 = vsel %vm145, %v159, 0
    %v1013 = vsel %vm935, %v820, 0
    %1015 = vmatprep.subr.mxu0 0.0
    %1016 = vmatpush1.msra.mxu0 0.0
    %1017 = vmatprep.subr.mxu0 0.0
    %1018 = vmatpush1.msra.mxu0 0.0
    %1019 = vmatprep.subr.mxu0 0.0
    %1020 = vmatpush1.msra.mxu0 0.0
    %1021 = vmatprep.subr.mxu0 0.0
    %1022 = vmatpush1.msra.mxu0 0.0
    %1023 = vmatprep.subr.mxu0 0.0
    %1024 = vmatpush1.msra.mxu0 0.0
    %1025 = vmatprep.subr.mxu0 0.0
    %1026 = vmatpush1.msra.mxu0 0.0
    %1027 = vmatprep.subr.mxu0 0.0
    %1028 = vmatpush1.msra.mxu0 0.0
    %1029 = vmatprep.subr.mxu0 0.0
    %1030 = vmatpush1.msra.mxu0 0.0
    %1031 = vmatprep.subr.mxu0 0.0
    %1032 = vmatpush1.msra.mxu0 0.0
    %1033 = vmatprep.subr.mxu0 0.0
    %1034 = vmatpush1.msra.mxu0 0.0
    %1035 = vmatprep.subr.mxu0 0.0
    %1036 = vmatpush1.msra.mxu0 0.0
    %1037 = vmatprep.subr.mxu0 0.0
    %1038 = vmatpush1.msra.mxu0 0.0
    %1039 = vmatprep.subr.mxu0 0.0
    %1040 = vmatpush1.msra.mxu0 0.0
    %1041 = vmatprep.subr.mxu0 0.0
    %1042 = vmatpush1.msra.mxu0 0.0
    %1043 = vmatprep.subr.mxu0 0.0
    %1044 = vmatpush1.msra.mxu0 0.0
    %1045 = vmatprep.subr.mxu0 0.0
    %1046 = vmatpush1.msra.mxu0 %v1013
    %1047 = vmatprep.subr.mxu0 0.0
    %1048 = vmatpush2.msra.mxu0 0.0
    %1049 = vmatprep.subr.mxu0 0.0
    %1050 = vmatpush2.msra.mxu0 0.0
    %1051 = vmatprep.subr.mxu0 0.0
    %1052 = vmatpush2.msra.mxu0 0.0
    %1053 = vmatprep.subr.mxu0 0.0
    %1054 = vmatpush2.msra.mxu0 0.0
    %1055 = vmatprep.subr.mxu0 0.0
    %1056 = vmatpush2.msra.mxu0 0.0
    %1057 = vmatprep.subr.mxu0 0.0
    %1058 = vmatpush2.msra.mxu0 0.0
    %1059 = vmatprep.subr.mxu0 0.0
    %1060 = vmatpush2.msra.mxu0 0.0
    %1061 = vmatprep.subr.mxu0 0.0
    %1062 = vmatpush2.msra.mxu0 0.0
    %1063 = vmatprep.subr.mxu0 0.0
    %1064 = vmatpush2.msra.mxu0 0.0
    %1065 = vmatprep.subr.mxu0 0.0
    %1066 = vmatpush2.msra.mxu0 0.0
    %1067 = vmatprep.subr.mxu0 0.0
    %1068 = vmatpush2.msra.mxu0 0.0
    %1069 = vmatprep.subr.mxu0 0.0
    %1070 = vmatpush2.msra.mxu0 0.0
    %1071 = vmatprep.subr.mxu0 0.0
    %1072 = vmatpush2.msra.mxu0 0.0
    %1073 = vmatprep.subr.mxu0 0.0
    %1074 = vmatpush2.msra.mxu0 0.0
    %1075 = vmatprep.subr.mxu0 0.0
    %1076 = vmatpush2.msra.mxu0 0.0
    %1077 = vmatprep.subr.mxu0 0.0
    %1078 = vmatpush2.msra.mxu0 0.0
    %1079 = vmatprep.mubr.f32.mxu0 0.0
    %1080 = vmatmul.mubr.f32.gmra.mxu0 %v1010
    %v1081 = vpop.f32.mrf.mxu0
    %v1082 = vadd.f32 %v1006, %v1081
    %v1083 = vpop.f32.mrf.mxu0
    %1084 = vdwg.mxu0
    %v1085 = vsel %vm156, %v1082, %v313
    %v1086 = vsel %vm211, %v1085, %v209
    %v1088 = vsel %vm213, %v1086, 0
    %1090 = vmatprep.subr.mxu0 0.0
    %1091 = vmatpush1.msra.mxu0 0.0
    %1092 = vmatprep.subr.mxu0 0.0
    %1093 = vmatpush1.msra.mxu0 0.0
    %1094 = vmatprep.subr.mxu0 0.0
    %1095 = vmatpush1.msra.mxu0 0.0
    %1096 = vmatprep.subr.mxu0 0.0
    %1097 = vmatpush1.msra.mxu0 0.0
    %1098 = vmatprep.subr.mxu0 0.0
    %1099 = vmatpush1.msra.mxu0 0.0
    %1100 = vmatprep.subr.mxu0 0.0
    %1101 = vmatpush1.msra.mxu0 0.0
    %1102 = vmatprep.subr.mxu0 0.0
    %1103 = vmatpush1.msra.mxu0 0.0
    %1104 = vmatprep.subr.mxu0 0.0
    %1105 = vmatpush1.msra.mxu0 0.0
    %1106 = vmatprep.subr.mxu0 0.0
    %1107 = vmatpush1.msra.mxu0 0.0
    %1108 = vmatprep.subr.mxu0 0.0
    %1109 = vmatpush1.msra.mxu0 0.0
    %1110 = vmatprep.subr.mxu0 0.0
    %1111 = vmatpush1.msra.mxu0 0.0
    %1112 = vmatprep.subr.mxu0 0.0
    %1113 = vmatpush1.msra.mxu0 %v107
    %1114 = vmatprep.subr.mxu0 0.0
    %1115 = vmatpush1.msra.mxu0 %v106
    %1116 = vmatprep.subr.mxu0 0.0
    %1117 = vmatpush1.msra.mxu0 %v105
    %1118 = vmatprep.subr.mxu0 0.0
    %1119 = vmatpush1.msra.mxu0 %v104
    %1120 = vmatprep.subr.mxu0 0.0
    %1121 = vmatpush1.msra.mxu0 %v103
    %1122 = vmatprep.subr.mxu0 0.0
    %1123 = vmatpush2.msra.mxu0 0.0
    %1124 = vmatprep.subr.mxu0 0.0
    %1125 = vmatpush2.msra.mxu0 0.0
    %1126 = vmatprep.subr.mxu0 0.0
    %1127 = vmatpush2.msra.mxu0 0.0
    %1128 = vmatprep.subr.mxu0 0.0
    %1129 = vmatpush2.msra.mxu0 0.0
    %1130 = vmatprep.subr.mxu0 0.0
    %1131 = vmatpush2.msra.mxu0 0.0
    %1132 = vmatprep.subr.mxu0 0.0
    %1133 = vmatpush2.msra.mxu0 0.0
    %1134 = vmatprep.subr.mxu0 0.0
    %1135 = vmatpush2.msra.mxu0 0.0
    %1136 = vmatprep.subr.mxu0 0.0
    %1137 = vmatpush2.msra.mxu0 0.0
    %1138 = vmatprep.subr.mxu0 0.0
    %1139 = vmatpush2.msra.mxu0 0.0
    %1140 = vmatprep.subr.mxu0 0.0
    %1141 = vmatpush2.msra.mxu0 0.0
    %1142 = vmatprep.subr.mxu0 0.0
    %1143 = vmatpush2.msra.mxu0 0.0
    %1144 = vmatprep.subr.mxu0 0.0
    %1145 = vmatpush2.msra.mxu0 0.0
    %1146 = vmatprep.subr.mxu0 0.0
    %1147 = vmatpush2.msra.mxu0 0.0
    %1148 = vmatprep.subr.mxu0 0.0
    %1149 = vmatpush2.msra.mxu0 0.0
    %1150 = vmatprep.subr.mxu0 0.0
    %1151 = vmatpush2.msra.mxu0 0.0
    %1152 = vmatprep.subr.mxu0 0.0
    %1153 = vmatpush2.msra.mxu0 0.0
    %1154 = vmatprep.mubr.f32.mxu0 0.0
    %1155 = vmatmul.mubr.f32.gmra.mxu0 %v1088
    %v1156 = vpop.f32.mrf.mxu0
    %v1157 = vadd.f32 0.0, %v1156
    %v1158 = vpop.f32.mrf.mxu0
    %1159 = vdwg.mxu0
    %v1160 = vxor.u32 %v1157, 2147483648
    %v1161 = vmul.f32 %v1160, 1.442695
    %v1162 = vpow.pop %v1161
    %v1163 = vadd.f32 %v1162, 1.0
    %v1164 = vrcp.pop %v1163
    %v1165 = vmul.f32 1.0, %v1164
    %v1166 = vmax.f32 %v1157, 0.0
    %1168 = vrot.lane.b32.xlu0 %v1165, 32
    %v1169 = vpop.permute.xlu0 %1168
    %v1171 = vmul.f32 %v1166, %v1169
    %1173 = vrot.lane.b32.xlu0 %v1171, 96
    %v1174 = vpop.permute.xlu0 %1173
    %v1176 = vadd.f32 %v1085, %v1174
    %v1177 = vmul.f32 %v1176, %v1176
    %v1178 = vsel %vm211, %v1177, 0.0
    %1179 = vadd.xlane.f32.xlu0 %v1178
    %v1180 = vpop.xlane.xlu0 %1179
    %v1181 = vmax.f32 %v1180, 1e-24
    %v1182 = vrsqrt.pop %v1181
    %v1183 = vmul.f32 %v1176, %v1182
    %v1184 = vsel %vm312, %v1183, %v1085
    %1185 = vmatprep.subr.mxu0 0.0
    %1186 = vmatpush1.msra.mxu0 0.0
    %1187 = vmatprep.subr.mxu0 0.0
    %1188 = vmatpush1.msra.mxu0 0.0
    %1189 = vmatprep.subr.mxu0 0.0
    %1190 = vmatpush1.msra.mxu0 0.0
    %1191 = vmatprep.subr.mxu0 0.0
    %1192 = vmatpush1.msra.mxu0 0.0
    %1193 = vmatprep.subr.mxu0 0.0
    %1194 = vmatpush1.msra.mxu0 0.0
    %1195 = vmatprep.subr.mxu0 0.0
    %1196 = vmatpush1.msra.mxu0 0.0
    %1197 = vmatprep.subr.mxu0 0.0
    %1198 = vmatpush1.msra.mxu0 0.0
    %1199 = vmatprep.subr.mxu0 0.0
    %1200 = vmatpush1.msra.mxu0 0.0
    %1201 = vmatprep.subr.mxu0 0.0
    %1202 = vmatpush1.msra.mxu0 0.0
    %1203 = vmatprep.subr.mxu0 0.0
    %1204 = vmatpush1.msra.mxu0 0.0
    %1205 = vmatprep.subr.mxu0 0.0
    %1206 = vmatpush1.msra.mxu0 0.0
    %1207 = vmatprep.subr.mxu0 0.0
    %1208 = vmatpush1.msra.mxu0 0.0
    %1209 = vmatprep.subr.mxu0 0.0
    %1210 = vmatpush1.msra.mxu0 0.0
    %1211 = vmatprep.subr.mxu0 0.0
    %1212 = vmatpush1.msra.mxu0 0.0
    %1213 = vmatprep.subr.mxu0 0.0
    %1214 = vmatpush1.msra.mxu0 0.0
    %1215 = vmatprep.subr.mxu0 0.0
    %1216 = vmatpush1.msra.mxu0 %v1085
    %1217 = vmatprep.subr.mxu0 0.0
    %1218 = vmatpush2.msra.mxu0 0.0
    %1219 = vmatprep.subr.mxu0 0.0
    %1220 = vmatpush2.msra.mxu0 0.0
    %1221 = vmatprep.subr.mxu0 0.0
    %1222 = vmatpush2.msra.mxu0 0.0
    %1223 = vmatprep.subr.mxu0 0.0
    %1224 = vmatpush2.msra.mxu0 0.0
    %1225 = vmatprep.subr.mxu0 0.0
    %1226 = vmatpush2.msra.mxu0 0.0
    %1227 = vmatprep.subr.mxu0 0.0
    %1228 = vmatpush2.msra.mxu0 0.0
    %1229 = vmatprep.subr.mxu0 0.0
    %1230 = vmatpush2.msra.mxu0 0.0
    %1231 = vmatprep.subr.mxu0 0.0
    %1232 = vmatpush2.msra.mxu0 0.0
    %1233 = vmatprep.subr.mxu0 0.0
    %1234 = vmatpush2.msra.mxu0 0.0
    %1235 = vmatprep.subr.mxu0 0.0
    %1236 = vmatpush2.msra.mxu0 0.0
    %1237 = vmatprep.subr.mxu0 0.0
    %1238 = vmatpush2.msra.mxu0 0.0
    %1239 = vmatprep.subr.mxu0 0.0
    %1240 = vmatpush2.msra.mxu0 0.0
    %1241 = vmatprep.subr.mxu0 0.0
    %1242 = vmatpush2.msra.mxu0 0.0
    %1243 = vmatprep.subr.mxu0 0.0
    %1244 = vmatpush2.msra.mxu0 0.0
    %1245 = vmatprep.subr.mxu0 0.0
    %1246 = vmatpush2.msra.mxu0 0.0
    %1247 = vmatprep.subr.mxu0 0.0
    %1248 = vmatpush2.msra.mxu0 0.0
    %1249 = vmatprep.mubr.f32.mxu0 0.0
    %1250 = vmatmul.mubr.f32.gmra.mxu0 %v315
    %v1251 = vpop.f32.mrf.mxu0
    %v1252 = vadd.f32 0.0, %v1251
    %v1253 = vpop.f32.mrf.mxu0
    %1254 = vdwg.mxu0
    %1255 = vmatprep.subr.mxu0 0.0
    %1256 = vmatpush1.msra.mxu0 0.0
    %1257 = vmatprep.subr.mxu0 0.0
    %1258 = vmatpush1.msra.mxu0 0.0
    %1259 = vmatprep.subr.mxu0 0.0
    %1260 = vmatpush1.msra.mxu0 0.0
    %1261 = vmatprep.subr.mxu0 0.0
    %1262 = vmatpush1.msra.mxu0 0.0
    %1263 = vmatprep.subr.mxu0 0.0
    %1264 = vmatpush1.msra.mxu0 0.0
    %1265 = vmatprep.subr.mxu0 0.0
    %1266 = vmatpush1.msra.mxu0 0.0
    %1267 = vmatprep.subr.mxu0 0.0
    %1268 = vmatpush1.msra.mxu0 0.0
    %1269 = vmatprep.subr.mxu0 0.0
    %1270 = vmatpush1.msra.mxu0 0.0
    %1271 = vmatprep.subr.mxu0 0.0
    %1272 = vmatpush1.msra.mxu0 0.0
    %1273 = vmatprep.subr.mxu0 0.0
    %1274 = vmatpush1.msra.mxu0 0.0
    %1275 = vmatprep.subr.mxu0 0.0
    %1276 = vmatpush1.msra.mxu0 0.0
    %1277 = vmatprep.subr.mxu0 0.0
    %1278 = vmatpush1.msra.mxu0 0.0
    %1279 = vmatprep.subr.mxu0 0.0
    %1280 = vmatpush1.msra.mxu0 0.0
    %1281 = vmatprep.subr.mxu0 0.0
    %1282 = vmatpush1.msra.mxu0 0.0
    %1283 = vmatprep.subr.mxu0 0.0
    %1284 = vmatpush1.msra.mxu0 0.0
    %1285 = vmatprep.subr.mxu0 0.0
    %1286 = vmatpush1.msra.mxu0 %v1085
    %1287 = vmatprep.subr.mxu0 0.0
    %1288 = vmatpush2.msra.mxu0 0.0
    %1289 = vmatprep.subr.mxu0 0.0
    %1290 = vmatpush2.msra.mxu0 0.0
    %1291 = vmatprep.subr.mxu0 0.0
    %1292 = vmatpush2.msra.mxu0 0.0
    %1293 = vmatprep.subr.mxu0 0.0
    %1294 = vmatpush2.msra.mxu0 0.0
    %1295 = vmatprep.subr.mxu0 0.0
    %1296 = vmatpush2.msra.mxu0 0.0
    %1297 = vmatprep.subr.mxu0 0.0
    %1298 = vmatpush2.msra.mxu0 0.0
    %1299 = vmatprep.subr.mxu0 0.0
    %1300 = vmatpush2.msra.mxu0 0.0
    %1301 = vmatprep.subr.mxu0 0.0
    %1302 = vmatpush2.msra.mxu0 0.0
    %1303 = vmatprep.subr.mxu0 0.0
    %1304 = vmatpush2.msra.mxu0 0.0
    %1305 = vmatprep.subr.mxu0 0.0
    %1306 = vmatpush2.msra.mxu0 0.0
    %1307 = vmatprep.subr.mxu0 0.0
    %1308 = vmatpush2.msra.mxu0 0.0
    %1309 = vmatprep.subr.mxu0 0.0
    %1310 = vmatpush2.msra.mxu0 0.0
    %1311 = vmatprep.subr.mxu0 0.0
    %1312 = vmatpush2.msra.mxu0 0.0
    %1313 = vmatprep.subr.mxu0 0.0
    %1314 = vmatpush2.msra.mxu0 0.0
    %1315 = vmatprep.subr.mxu0 0.0
    %1316 = vmatpush2.msra.mxu0 0.0
    %1317 = vmatprep.subr.mxu0 0.0
    %1318 = vmatpush2.msra.mxu0 0.0
    %1319 = vmatprep.mubr.f32.mxu0 0.0
    %1320 = vmatmul.mubr.f32.gmra.mxu0 %v388
    %v1321 = vpop.f32.mrf.mxu0
    %v1322 = vadd.f32 0.0, %v1321
    %v1323 = vpop.f32.mrf.mxu0
    %1324 = vdwg.mxu0
    %1326 = vrot.lane.b32.xlu0 %v1322, 32
    %v1327 = vpop.permute.xlu0 %1326
    %v1329 = vsel %vm211, %v1252, %v1327
    %1331 = vrot.lane.b32.xlu0 %v1252, 32
    %v1332 = vpop.permute.xlu0 %1331
    %v1334 = vsel %vm211, %v1322, %v1332
    %v1336 = vsel %vm470, %v1329, 0
    %1338 = vmatprep.subr.mxu0 0.0
    %1339 = vmatpush1.msra.mxu0 0.0
    %1340 = vmatprep.subr.mxu0 0.0
    %1341 = vmatpush1.msra.mxu0 0.0
    %1342 = vmatprep.subr.mxu0 0.0
    %1343 = vmatpush1.msra.mxu0 0.0
    %1344 = vmatprep.subr.mxu0 0.0
    %1345 = vmatpush1.msra.mxu0 0.0
    %1346 = vmatprep.subr.mxu0 0.0
    %1347 = vmatpush1.msra.mxu0 0.0
    %1348 = vmatprep.subr.mxu0 0.0
    %1349 = vmatpush1.msra.mxu0 0.0
    %1350 = vmatprep.subr.mxu0 0.0
    %1351 = vmatpush1.msra.mxu0 0.0
    %1352 = vmatprep.subr.mxu0 0.0
    %1353 = vmatpush1.msra.mxu0 0.0
    %1354 = vmatprep.subr.mxu0 0.0
    %1355 = vmatpush1.msra.mxu0 %v173
    %1356 = vmatprep.subr.mxu0 0.0
    %1357 = vmatpush1.msra.mxu0 %v172
    %1358 = vmatprep.subr.mxu0 0.0
    %1359 = vmatpush1.msra.mxu0 %v171
    %1360 = vmatprep.subr.mxu0 0.0
    %1361 = vmatpush1.msra.mxu0 %v170
    %1362 = vmatprep.subr.mxu0 0.0
    %1363 = vmatpush1.msra.mxu0 %v169
    %1364 = vmatprep.subr.mxu0 0.0
    %1365 = vmatpush1.msra.mxu0 %v168
    %1366 = vmatprep.subr.mxu0 0.0
    %1367 = vmatpush1.msra.mxu0 %v167
    %1368 = vmatprep.subr.mxu0 0.0
    %1369 = vmatpush1.msra.mxu0 %v166
    %1370 = vmatprep.subr.mxu0 0.0
    %1371 = vmatpush2.msra.mxu0 0.0
    %1372 = vmatprep.subr.mxu0 0.0
    %1373 = vmatpush2.msra.mxu0 0.0
    %1374 = vmatprep.subr.mxu0 0.0
    %1375 = vmatpush2.msra.mxu0 0.0
    %1376 = vmatprep.subr.mxu0 0.0
    %1377 = vmatpush2.msra.mxu0 0.0
    %1378 = vmatprep.subr.mxu0 0.0
    %1379 = vmatpush2.msra.mxu0 0.0
    %1380 = vmatprep.subr.mxu0 0.0
    %1381 = vmatpush2.msra.mxu0 0.0
    %1382 = vmatprep.subr.mxu0 0.0
    %1383 = vmatpush2.msra.mxu0 0.0
    %1384 = vmatprep.subr.mxu0 0.0
    %1385 = vmatpush2.msra.mxu0 0.0
    %1386 = vmatprep.subr.mxu0 0.0
    %1387 = vmatpush2.msra.mxu0 0.0
    %1388 = vmatprep.subr.mxu0 0.0
    %1389 = vmatpush2.msra.mxu0 0.0
    %1390 = vmatprep.subr.mxu0 0.0
    %1391 = vmatpush2.msra.mxu0 0.0
    %1392 = vmatprep.subr.mxu0 0.0
    %1393 = vmatpush2.msra.mxu0 0.0
    %1394 = vmatprep.subr.mxu0 0.0
    %1395 = vmatpush2.msra.mxu0 0.0
    %1396 = vmatprep.subr.mxu0 0.0
    %1397 = vmatpush2.msra.mxu0 0.0
    %1398 = vmatprep.subr.mxu0 0.0
    %1399 = vmatpush2.msra.mxu0 0.0
    %1400 = vmatprep.subr.mxu0 0.0
    %1401 = vmatpush2.msra.mxu0 0.0
    %1402 = vmatprep.mubr.f32.mxu0 0.0
    %1403 = vmatmul.mubr.f32.gmra.mxu0 %v1336
    %v1404 = vpop.f32.mrf.mxu0
    %v1405 = vadd.f32 0.0, %v1404
    %v1406 = vpop.f32.mrf.mxu0
    %1407 = vdwg.mxu0
    %v1408 = vmul.f32 %v1322, %v548
    %v1409 = vsel %vm551, %v1408, 0.0
    %1410 = vadd.xlane.f32.xlu0 %v1409
    %v1411 = vpop.xlane.xlu0 %1410
    %v1412 = vmul.f32 %v1252, %v1411
    %1414 = vrot.lane.b32.xlu0 %v1412, 32
    %v1415 = vpop.permute.xlu0 %1414
    %v1417 = vadd.f32 %v1405, %v1415
    %v1418 = vmax.f32 %v1417, 0.0
    %v1419 = vxor.u32 %v1405, 2147483648
    %v1420 = vmul.f32 %v1419, 1.442695
    %v1421 = vpow.pop %v1420
    %v1422 = vadd.f32 %v1421, 1.0
    %v1423 = vrcp.pop %v1422
    %v1424 = vmul.f32 1.0, %v1423
    %1426 = vrot.lane.b32.xlu0 %v1424, 32
    %v1427 = vpop.permute.xlu0 %1426
    %v1429 = vmul.f32 %v1418, %v1427
    %1431 = vrot.lane.b32.xlu0 %v1429, 96
    %v1432 = vpop.permute.xlu0 %1431
    %v1434 = vadd.f32 %v1252, %v1432
    %v1435 = vmul.f32 %v1434, %v1434
    %v1436 = vsel %vm551, %v1435, 0.0
    %1437 = vadd.xlane.f32.xlu0 %v1436
    %v1438 = vpop.xlane.xlu0 %1437
    %v1439 = vmax.f32 %v1438, 1e-24
    %v1440 = vrsqrt.pop %v1439
    %v1441 = vmul.f32 %v1434, %v1440
    %v1442 = vsel %vm589, %v1441, 0.0
    %v1444 = vsel %vm470, %v1334, 0
    %1446 = vmatprep.subr.mxu0 0.0
    %1447 = vmatpush1.msra.mxu0 0.0
    %1448 = vmatprep.subr.mxu0 0.0
    %1449 = vmatpush1.msra.mxu0 0.0
    %1450 = vmatprep.subr.mxu0 0.0
    %1451 = vmatpush1.msra.mxu0 0.0
    %1452 = vmatprep.subr.mxu0 0.0
    %1453 = vmatpush1.msra.mxu0 0.0
    %1454 = vmatprep.subr.mxu0 0.0
    %1455 = vmatpush1.msra.mxu0 0.0
    %1456 = vmatprep.subr.mxu0 0.0
    %1457 = vmatpush1.msra.mxu0 0.0
    %1458 = vmatprep.subr.mxu0 0.0
    %1459 = vmatpush1.msra.mxu0 0.0
    %1460 = vmatprep.subr.mxu0 0.0
    %1461 = vmatpush1.msra.mxu0 0.0
    %1462 = vmatprep.subr.mxu0 0.0
    %1463 = vmatpush1.msra.mxu0 %v190
    %1464 = vmatprep.subr.mxu0 0.0
    %1465 = vmatpush1.msra.mxu0 %v189
    %1466 = vmatprep.subr.mxu0 0.0
    %1467 = vmatpush1.msra.mxu0 %v188
    %1468 = vmatprep.subr.mxu0 0.0
    %1469 = vmatpush1.msra.mxu0 %v187
    %1470 = vmatprep.subr.mxu0 0.0
    %1471 = vmatpush1.msra.mxu0 %v186
    %1472 = vmatprep.subr.mxu0 0.0
    %1473 = vmatpush1.msra.mxu0 %v185
    %1474 = vmatprep.subr.mxu0 0.0
    %1475 = vmatpush1.msra.mxu0 %v184
    %1476 = vmatprep.subr.mxu0 0.0
    %1477 = vmatpush1.msra.mxu0 %v183
    %1478 = vmatprep.subr.mxu0 0.0
    %1479 = vmatpush2.msra.mxu0 0.0
    %1480 = vmatprep.subr.mxu0 0.0
    %1481 = vmatpush2.msra.mxu0 0.0
    %1482 = vmatprep.subr.mxu0 0.0
    %1483 = vmatpush2.msra.mxu0 0.0
    %1484 = vmatprep.subr.mxu0 0.0
    %1485 = vmatpush2.msra.mxu0 0.0
    %1486 = vmatprep.subr.mxu0 0.0
    %1487 = vmatpush2.msra.mxu0 0.0
    %1488 = vmatprep.subr.mxu0 0.0
    %1489 = vmatpush2.msra.mxu0 0.0
    %1490 = vmatprep.subr.mxu0 0.0
    %1491 = vmatpush2.msra.mxu0 0.0
    %1492 = vmatprep.subr.mxu0 0.0
    %1493 = vmatpush2.msra.mxu0 0.0
    %1494 = vmatprep.subr.mxu0 0.0
    %1495 = vmatpush2.msra.mxu0 0.0
    %1496 = vmatprep.subr.mxu0 0.0
    %1497 = vmatpush2.msra.mxu0 0.0
    %1498 = vmatprep.subr.mxu0 0.0
    %1499 = vmatpush2.msra.mxu0 0.0
    %1500 = vmatprep.subr.mxu0 0.0
    %1501 = vmatpush2.msra.mxu0 0.0
    %1502 = vmatprep.subr.mxu0 0.0
    %1503 = vmatpush2.msra.mxu0 0.0
    %1504 = vmatprep.subr.mxu0 0.0
    %1505 = vmatpush2.msra.mxu0 0.0
    %1506 = vmatprep.subr.mxu0 0.0
    %1507 = vmatpush2.msra.mxu0 0.0
    %1508 = vmatprep.subr.mxu0 0.0
    %1509 = vmatpush2.msra.mxu0 0.0
    %1510 = vmatprep.mubr.f32.mxu0 0.0
    %1511 = vmatmul.mubr.f32.gmra.mxu0 %v1444
    %v1512 = vpop.f32.mrf.mxu0
    %v1513 = vadd.f32 0.0, %v1512
    %v1514 = vpop.f32.mrf.mxu0
    %1515 = vdwg.mxu0
    %v1516 = vmul.f32 %v1252, %v668
    %v1517 = vsel %vm551, %v1516, 0.0
    %1518 = vadd.xlane.f32.xlu0 %v1517
    %v1519 = vpop.xlane.xlu0 %1518
    %v1520 = vmul.f32 %v1322, %v1519
    %1522 = vrot.lane.b32.xlu0 %v1520, 32
    %v1523 = vpop.permute.xlu0 %1522
    %v1525 = vadd.f32 %v1513, %v1523
    %v1526 = vmax.f32 %v1525, 0.0
    %v1527 = vxor.u32 %v1513, 2147483648
    %v1528 = vmul.f32 %v1527, 1.442695
    %v1529 = vpow.pop %v1528
    %v1530 = vadd.f32 %v1529, 1.0
    %v1531 = vrcp.pop %v1530
    %v1532 = vmul.f32 1.0, %v1531
    %1534 = vrot.lane.b32.xlu0 %v1532, 32
    %v1535 = vpop.permute.xlu0 %1534
    %v1537 = vmul.f32 %v1526, %v1535
    %1539 = vrot.lane.b32.xlu0 %v1537, 96
    %v1540 = vpop.permute.xlu0 %1539
    %v1542 = vadd.f32 %v1322, %v1540
    %v1543 = vmul.f32 %v1542, %v1542
    %v1544 = vsel %vm551, %v1543, 0.0
    %1545 = vadd.xlane.f32.xlu0 %v1544
    %v1546 = vpop.xlane.xlu0 %1545
    %v1547 = vmax.f32 %v1546, 1e-24
    %v1548 = vrsqrt.pop %v1547
    %v1549 = vmul.f32 %v1542, %v1548
    %v1550 = vsel %vm589, %v1549, 0.0
    %1551 = vmatprep.subr.mxu0 0.0
    %1552 = vmatpush1.msra.mxu0 0.0
    %1553 = vmatprep.subr.mxu0 0.0
    %1554 = vmatpush1.msra.mxu0 0.0
    %1555 = vmatprep.subr.mxu0 0.0
    %1556 = vmatpush1.msra.mxu0 0.0
    %1557 = vmatprep.subr.mxu0 0.0
    %1558 = vmatpush1.msra.mxu0 0.0
    %1559 = vmatprep.subr.mxu0 0.0
    %1560 = vmatpush1.msra.mxu0 0.0
    %1561 = vmatprep.subr.mxu0 0.0
    %1562 = vmatpush1.msra.mxu0 0.0
    %1563 = vmatprep.subr.mxu0 0.0
    %1564 = vmatpush1.msra.mxu0 0.0
    %1565 = vmatprep.subr.mxu0 0.0
    %1566 = vmatpush1.msra.mxu0 0.0
    %1567 = vmatprep.subr.mxu0 0.0
    %1568 = vmatpush1.msra.mxu0 %v182
    %1569 = vmatprep.subr.mxu0 0.0
    %1570 = vmatpush1.msra.mxu0 %v181
    %1571 = vmatprep.subr.mxu0 0.0
    %1572 = vmatpush1.msra.mxu0 %v180
    %1573 = vmatprep.subr.mxu0 0.0
    %1574 = vmatpush1.msra.mxu0 %v179
    %1575 = vmatprep.subr.mxu0 0.0
    %1576 = vmatpush1.msra.mxu0 %v178
    %1577 = vmatprep.subr.mxu0 0.0
    %1578 = vmatpush1.msra.mxu0 %v177
    %1579 = vmatprep.subr.mxu0 0.0
    %1580 = vmatpush1.msra.mxu0 %v176
    %1581 = vmatprep.subr.mxu0 0.0
    %1582 = vmatpush1.msra.mxu0 %v175
    %1583 = vmatprep.subr.mxu0 0.0
    %1584 = vmatpush2.msra.mxu0 0.0
    %1585 = vmatprep.subr.mxu0 0.0
    %1586 = vmatpush2.msra.mxu0 0.0
    %1587 = vmatprep.subr.mxu0 0.0
    %1588 = vmatpush2.msra.mxu0 0.0
    %1589 = vmatprep.subr.mxu0 0.0
    %1590 = vmatpush2.msra.mxu0 0.0
    %1591 = vmatprep.subr.mxu0 0.0
    %1592 = vmatpush2.msra.mxu0 0.0
    %1593 = vmatprep.subr.mxu0 0.0
    %1594 = vmatpush2.msra.mxu0 0.0
    %1595 = vmatprep.subr.mxu0 0.0
    %1596 = vmatpush2.msra.mxu0 0.0
    %1597 = vmatprep.subr.mxu0 0.0
    %1598 = vmatpush2.msra.mxu0 0.0
    %1599 = vmatprep.subr.mxu0 0.0
    %1600 = vmatpush2.msra.mxu0 0.0
    %1601 = vmatprep.subr.mxu0 0.0
    %1602 = vmatpush2.msra.mxu0 0.0
    %1603 = vmatprep.subr.mxu0 0.0
    %1604 = vmatpush2.msra.mxu0 0.0
    %1605 = vmatprep.subr.mxu0 0.0
    %1606 = vmatpush2.msra.mxu0 0.0
    %1607 = vmatprep.subr.mxu0 0.0
    %1608 = vmatpush2.msra.mxu0 0.0
    %1609 = vmatprep.subr.mxu0 0.0
    %1610 = vmatpush2.msra.mxu0 0.0
    %1611 = vmatprep.subr.mxu0 0.0
    %1612 = vmatpush2.msra.mxu0 0.0
    %1613 = vmatprep.subr.mxu0 0.0
    %1614 = vmatpush2.msra.mxu0 0.0
    %1615 = vmatprep.mubr.f32.mxu0 0.0
    %1616 = vmatmul.mubr.f32.gmra.mxu0 %v1336
    %v1617 = vpop.f32.mrf.mxu0
    %v1618 = vadd.f32 0.0, %v1617
    %v1619 = vpop.f32.mrf.mxu0
    %1620 = vdwg.mxu0
    %v1621 = vmul.f32 %v1322, %v779
    %v1622 = vsel %vm551, %v1621, 0.0
    %1623 = vadd.xlane.f32.xlu0 %v1622
    %v1624 = vpop.xlane.xlu0 %1623
    %v1625 = vmul.f32 %v1252, %v1624
    %1627 = vrot.lane.b32.xlu0 %v1625, 32
    %v1628 = vpop.permute.xlu0 %1627
    %v1630 = vadd.f32 %v1618, %v1628
    %v1631 = vmax.f32 %v1630, 0.0
    %v1632 = vxor.u32 %v1618, 2147483648
    %v1633 = vmul.f32 %v1632, 1.442695
    %v1634 = vpow.pop %v1633
    %v1635 = vadd.f32 %v1634, 1.0
    %v1636 = vrcp.pop %v1635
    %v1637 = vmul.f32 1.0, %v1636
    %1639 = vrot.lane.b32.xlu0 %v1637, 32
    %v1640 = vpop.permute.xlu0 %1639
    %v1642 = vmul.f32 %v1631, %v1640
    %1644 = vrot.lane.b32.xlu0 %v1642, 96
    %v1645 = vpop.permute.xlu0 %1644
    %v1647 = vadd.f32 %v1252, %v1645
    %v1648 = vmul.f32 %v1647, %v1647
    %v1649 = vsel %vm551, %v1648, 0.0
    %1650 = vadd.xlane.f32.xlu0 %v1649
    %v1651 = vpop.xlane.xlu0 %1650
    %v1652 = vmax.f32 %v1651, 1e-24
    %v1653 = vrsqrt.pop %v1652
    %v1654 = vmul.f32 %v1647, %v1653
    %v1655 = vsel %vm819, %v1654, %v1442
    %1656 = vmatprep.subr.mxu0 0.0
    %1657 = vmatpush1.msra.mxu0 0.0
    %1658 = vmatprep.subr.mxu0 0.0
    %1659 = vmatpush1.msra.mxu0 0.0
    %1660 = vmatprep.subr.mxu0 0.0
    %1661 = vmatpush1.msra.mxu0 0.0
    %1662 = vmatprep.subr.mxu0 0.0
    %1663 = vmatpush1.msra.mxu0 0.0
    %1664 = vmatprep.subr.mxu0 0.0
    %1665 = vmatpush1.msra.mxu0 0.0
    %1666 = vmatprep.subr.mxu0 0.0
    %1667 = vmatpush1.msra.mxu0 0.0
    %1668 = vmatprep.subr.mxu0 0.0
    %1669 = vmatpush1.msra.mxu0 0.0
    %1670 = vmatprep.subr.mxu0 0.0
    %1671 = vmatpush1.msra.mxu0 0.0
    %1672 = vmatprep.subr.mxu0 0.0
    %1673 = vmatpush1.msra.mxu0 %v199
    %1674 = vmatprep.subr.mxu0 0.0
    %1675 = vmatpush1.msra.mxu0 %v198
    %1676 = vmatprep.subr.mxu0 0.0
    %1677 = vmatpush1.msra.mxu0 %v197
    %1678 = vmatprep.subr.mxu0 0.0
    %1679 = vmatpush1.msra.mxu0 %v196
    %1680 = vmatprep.subr.mxu0 0.0
    %1681 = vmatpush1.msra.mxu0 %v195
    %1682 = vmatprep.subr.mxu0 0.0
    %1683 = vmatpush1.msra.mxu0 %v194
    %1684 = vmatprep.subr.mxu0 0.0
    %1685 = vmatpush1.msra.mxu0 %v193
    %1686 = vmatprep.subr.mxu0 0.0
    %1687 = vmatpush1.msra.mxu0 %v192
    %1688 = vmatprep.subr.mxu0 0.0
    %1689 = vmatpush2.msra.mxu0 0.0
    %1690 = vmatprep.subr.mxu0 0.0
    %1691 = vmatpush2.msra.mxu0 0.0
    %1692 = vmatprep.subr.mxu0 0.0
    %1693 = vmatpush2.msra.mxu0 0.0
    %1694 = vmatprep.subr.mxu0 0.0
    %1695 = vmatpush2.msra.mxu0 0.0
    %1696 = vmatprep.subr.mxu0 0.0
    %1697 = vmatpush2.msra.mxu0 0.0
    %1698 = vmatprep.subr.mxu0 0.0
    %1699 = vmatpush2.msra.mxu0 0.0
    %1700 = vmatprep.subr.mxu0 0.0
    %1701 = vmatpush2.msra.mxu0 0.0
    %1702 = vmatprep.subr.mxu0 0.0
    %1703 = vmatpush2.msra.mxu0 0.0
    %1704 = vmatprep.subr.mxu0 0.0
    %1705 = vmatpush2.msra.mxu0 0.0
    %1706 = vmatprep.subr.mxu0 0.0
    %1707 = vmatpush2.msra.mxu0 0.0
    %1708 = vmatprep.subr.mxu0 0.0
    %1709 = vmatpush2.msra.mxu0 0.0
    %1710 = vmatprep.subr.mxu0 0.0
    %1711 = vmatpush2.msra.mxu0 0.0
    %1712 = vmatprep.subr.mxu0 0.0
    %1713 = vmatpush2.msra.mxu0 0.0
    %1714 = vmatprep.subr.mxu0 0.0
    %1715 = vmatpush2.msra.mxu0 0.0
    %1716 = vmatprep.subr.mxu0 0.0
    %1717 = vmatpush2.msra.mxu0 0.0
    %1718 = vmatprep.subr.mxu0 0.0
    %1719 = vmatpush2.msra.mxu0 0.0
    %1720 = vmatprep.mubr.f32.mxu0 0.0
    %1721 = vmatmul.mubr.f32.gmra.mxu0 %v1444
    %v1722 = vpop.f32.mrf.mxu0
    %v1723 = vadd.f32 0.0, %v1722
    %v1724 = vpop.f32.mrf.mxu0
    %1725 = vdwg.mxu0
    %v1726 = vmul.f32 %v1252, %v895
    %v1727 = vsel %vm551, %v1726, 0.0
    %1728 = vadd.xlane.f32.xlu0 %v1727
    %v1729 = vpop.xlane.xlu0 %1728
    %v1730 = vmul.f32 %v1322, %v1729
    %1732 = vrot.lane.b32.xlu0 %v1730, 32
    %v1733 = vpop.permute.xlu0 %1732
    %v1735 = vadd.f32 %v1723, %v1733
    %v1736 = vmax.f32 %v1735, 0.0
    %v1737 = vxor.u32 %v1723, 2147483648
    %v1738 = vmul.f32 %v1737, 1.442695
    %v1739 = vpow.pop %v1738
    %v1740 = vadd.f32 %v1739, 1.0
    %v1741 = vrcp.pop %v1740
    %v1742 = vmul.f32 1.0, %v1741
    %1744 = vrot.lane.b32.xlu0 %v1742, 32
    %v1745 = vpop.permute.xlu0 %1744
    %v1747 = vmul.f32 %v1736, %v1745
    %1749 = vrot.lane.b32.xlu0 %v1747, 96
    %v1750 = vpop.permute.xlu0 %1749
    %v1752 = vadd.f32 %v1322, %v1750
    %v1753 = vmul.f32 %v1752, %v1752
    %v1754 = vsel %vm551, %v1753, 0.0
    %1755 = vadd.xlane.f32.xlu0 %v1754
    %v1756 = vpop.xlane.xlu0 %1755
    %v1757 = vmax.f32 %v1756, 1e-24
    %v1758 = vrsqrt.pop %v1757
    %v1759 = vmul.f32 %v1752, %v1758
    %v1760 = vsel %vm819, %v1759, %v1550
    %v1762 = vsel %vm935, %v1760, 0
    %1764 = vmatprep.subr.mxu0 0.0
    %1765 = vmatpush1.msra.mxu0 0.0
    %1766 = vmatprep.subr.mxu0 0.0
    %1767 = vmatpush1.msra.mxu0 0.0
    %1768 = vmatprep.subr.mxu0 0.0
    %1769 = vmatpush1.msra.mxu0 0.0
    %1770 = vmatprep.subr.mxu0 0.0
    %1771 = vmatpush1.msra.mxu0 0.0
    %1772 = vmatprep.subr.mxu0 0.0
    %1773 = vmatpush1.msra.mxu0 0.0
    %1774 = vmatprep.subr.mxu0 0.0
    %1775 = vmatpush1.msra.mxu0 0.0
    %1776 = vmatprep.subr.mxu0 0.0
    %1777 = vmatpush1.msra.mxu0 0.0
    %1778 = vmatprep.subr.mxu0 0.0
    %1779 = vmatpush1.msra.mxu0 0.0
    %1780 = vmatprep.subr.mxu0 0.0
    %1781 = vmatpush1.msra.mxu0 0.0
    %1782 = vmatprep.subr.mxu0 0.0
    %1783 = vmatpush1.msra.mxu0 0.0
    %1784 = vmatprep.subr.mxu0 0.0
    %1785 = vmatpush1.msra.mxu0 0.0
    %1786 = vmatprep.subr.mxu0 0.0
    %1787 = vmatpush1.msra.mxu0 0.0
    %1788 = vmatprep.subr.mxu0 0.0
    %1789 = vmatpush1.msra.mxu0 0.0
    %1790 = vmatprep.subr.mxu0 0.0
    %1791 = vmatpush1.msra.mxu0 0.0
    %1792 = vmatprep.subr.mxu0 0.0
    %1793 = vmatpush1.msra.mxu0 0.0
    %1794 = vmatprep.subr.mxu0 0.0
    %1795 = vmatpush1.msra.mxu0 %v1762
    %1796 = vmatprep.subr.mxu0 0.0
    %1797 = vmatpush2.msra.mxu0 0.0
    %1798 = vmatprep.subr.mxu0 0.0
    %1799 = vmatpush2.msra.mxu0 0.0
    %1800 = vmatprep.subr.mxu0 0.0
    %1801 = vmatpush2.msra.mxu0 0.0
    %1802 = vmatprep.subr.mxu0 0.0
    %1803 = vmatpush2.msra.mxu0 0.0
    %1804 = vmatprep.subr.mxu0 0.0
    %1805 = vmatpush2.msra.mxu0 0.0
    %1806 = vmatprep.subr.mxu0 0.0
    %1807 = vmatpush2.msra.mxu0 0.0
    %1808 = vmatprep.subr.mxu0 0.0
    %1809 = vmatpush2.msra.mxu0 0.0
    %1810 = vmatprep.subr.mxu0 0.0
    %1811 = vmatpush2.msra.mxu0 0.0
    %1812 = vmatprep.subr.mxu0 0.0
    %1813 = vmatpush2.msra.mxu0 0.0
    %1814 = vmatprep.subr.mxu0 0.0
    %1815 = vmatpush2.msra.mxu0 0.0
    %1816 = vmatprep.subr.mxu0 0.0
    %1817 = vmatpush2.msra.mxu0 0.0
    %1818 = vmatprep.subr.mxu0 0.0
    %1819 = vmatpush2.msra.mxu0 0.0
    %1820 = vmatprep.subr.mxu0 0.0
    %1821 = vmatpush2.msra.mxu0 0.0
    %1822 = vmatprep.subr.mxu0 0.0
    %1823 = vmatpush2.msra.mxu0 0.0
    %1824 = vmatprep.subr.mxu0 0.0
    %1825 = vmatpush2.msra.mxu0 0.0
    %1826 = vmatprep.subr.mxu0 0.0
    %1827 = vmatpush2.msra.mxu0 0.0
    %1828 = vmatprep.mubr.f32.mxu0 0.0
    %1829 = vmatmul.mubr.f32.gmra.mxu0 %v933
    %v1830 = vpop.f32.mrf.mxu0
    %v1831 = vadd.f32 0.0, %v1830
    %v1832 = vpop.f32.mrf.mxu0
    %1833 = vdwg.mxu0
    %v1835 = vsel %vm935, %v1655, 0
    %1837 = vmatprep.subr.mxu0 0.0
    %1838 = vmatpush1.msra.mxu0 0.0
    %1839 = vmatprep.subr.mxu0 0.0
    %1840 = vmatpush1.msra.mxu0 0.0
    %1841 = vmatprep.subr.mxu0 0.0
    %1842 = vmatpush1.msra.mxu0 0.0
    %1843 = vmatprep.subr.mxu0 0.0
    %1844 = vmatpush1.msra.mxu0 0.0
    %1845 = vmatprep.subr.mxu0 0.0
    %1846 = vmatpush1.msra.mxu0 0.0
    %1847 = vmatprep.subr.mxu0 0.0
    %1848 = vmatpush1.msra.mxu0 0.0
    %1849 = vmatprep.subr.mxu0 0.0
    %1850 = vmatpush1.msra.mxu0 0.0
    %1851 = vmatprep.subr.mxu0 0.0
    %1852 = vmatpush1.msra.mxu0 0.0
    %1853 = vmatprep.subr.mxu0 0.0
    %1854 = vmatpush1.msra.mxu0 0.0
    %1855 = vmatprep.subr.mxu0 0.0
    %1856 = vmatpush1.msra.mxu0 0.0
    %1857 = vmatprep.subr.mxu0 0.0
    %1858 = vmatpush1.msra.mxu0 0.0
    %1859 = vmatprep.subr.mxu0 0.0
    %1860 = vmatpush1.msra.mxu0 0.0
    %1861 = vmatprep.subr.mxu0 0.0
    %1862 = vmatpush1.msra.mxu0 0.0
    %1863 = vmatprep.subr.mxu0 0.0
    %1864 = vmatpush1.msra.mxu0 0.0
    %1865 = vmatprep.subr.mxu0 0.0
    %1866 = vmatpush1.msra.mxu0 0.0
    %1867 = vmatprep.subr.mxu0 0.0
    %1868 = vmatpush1.msra.mxu0 %v1835
    %1869 = vmatprep.subr.mxu0 0.0
    %1870 = vmatpush2.msra.mxu0 0.0
    %1871 = vmatprep.subr.mxu0 0.0
    %1872 = vmatpush2.msra.mxu0 0.0
    %1873 = vmatprep.subr.mxu0 0.0
    %1874 = vmatpush2.msra.mxu0 0.0
    %1875 = vmatprep.subr.mxu0 0.0
    %1876 = vmatpush2.msra.mxu0 0.0
    %1877 = vmatprep.subr.mxu0 0.0
    %1878 = vmatpush2.msra.mxu0 0.0
    %1879 = vmatprep.subr.mxu0 0.0
    %1880 = vmatpush2.msra.mxu0 0.0
    %1881 = vmatprep.subr.mxu0 0.0
    %1882 = vmatpush2.msra.mxu0 0.0
    %1883 = vmatprep.subr.mxu0 0.0
    %1884 = vmatpush2.msra.mxu0 0.0
    %1885 = vmatprep.subr.mxu0 0.0
    %1886 = vmatpush2.msra.mxu0 0.0
    %1887 = vmatprep.subr.mxu0 0.0
    %1888 = vmatpush2.msra.mxu0 0.0
    %1889 = vmatprep.subr.mxu0 0.0
    %1890 = vmatpush2.msra.mxu0 0.0
    %1891 = vmatprep.subr.mxu0 0.0
    %1892 = vmatpush2.msra.mxu0 0.0
    %1893 = vmatprep.subr.mxu0 0.0
    %1894 = vmatpush2.msra.mxu0 0.0
    %1895 = vmatprep.subr.mxu0 0.0
    %1896 = vmatpush2.msra.mxu0 0.0
    %1897 = vmatprep.subr.mxu0 0.0
    %1898 = vmatpush2.msra.mxu0 0.0
    %1899 = vmatprep.subr.mxu0 0.0
    %1900 = vmatpush2.msra.mxu0 0.0
    %1901 = vmatprep.mubr.f32.mxu0 0.0
    %1902 = vmatmul.mubr.f32.gmra.mxu0 %v1010
    %v1903 = vpop.f32.mrf.mxu0
    %v1904 = vadd.f32 %v1831, %v1903
    %v1905 = vpop.f32.mrf.mxu0
    %1906 = vdwg.mxu0
    %v1907 = vsel %vm156, %v1904, %v1184
    %v1908 = vsel %vm211, %v1907, %v209
    %v1910 = vsel %vm213, %v1908, 0
    %1912 = vmatprep.subr.mxu0 0.0
    %1913 = vmatpush1.msra.mxu0 0.0
    %1914 = vmatprep.subr.mxu0 0.0
    %1915 = vmatpush1.msra.mxu0 0.0
    %1916 = vmatprep.subr.mxu0 0.0
    %1917 = vmatpush1.msra.mxu0 0.0
    %1918 = vmatprep.subr.mxu0 0.0
    %1919 = vmatpush1.msra.mxu0 0.0
    %1920 = vmatprep.subr.mxu0 0.0
    %1921 = vmatpush1.msra.mxu0 0.0
    %1922 = vmatprep.subr.mxu0 0.0
    %1923 = vmatpush1.msra.mxu0 0.0
    %1924 = vmatprep.subr.mxu0 0.0
    %1925 = vmatpush1.msra.mxu0 0.0
    %1926 = vmatprep.subr.mxu0 0.0
    %1927 = vmatpush1.msra.mxu0 0.0
    %1928 = vmatprep.subr.mxu0 0.0
    %1929 = vmatpush1.msra.mxu0 0.0
    %1930 = vmatprep.subr.mxu0 0.0
    %1931 = vmatpush1.msra.mxu0 0.0
    %1932 = vmatprep.subr.mxu0 0.0
    %1933 = vmatpush1.msra.mxu0 0.0
    %1934 = vmatprep.subr.mxu0 0.0
    %1935 = vmatpush1.msra.mxu0 %v107
    %1936 = vmatprep.subr.mxu0 0.0
    %1937 = vmatpush1.msra.mxu0 %v106
    %1938 = vmatprep.subr.mxu0 0.0
    %1939 = vmatpush1.msra.mxu0 %v105
    %1940 = vmatprep.subr.mxu0 0.0
    %1941 = vmatpush1.msra.mxu0 %v104
    %1942 = vmatprep.subr.mxu0 0.0
    %1943 = vmatpush1.msra.mxu0 %v103
    %1944 = vmatprep.subr.mxu0 0.0
    %1945 = vmatpush2.msra.mxu0 0.0
    %1946 = vmatprep.subr.mxu0 0.0
    %1947 = vmatpush2.msra.mxu0 0.0
    %1948 = vmatprep.subr.mxu0 0.0
    %1949 = vmatpush2.msra.mxu0 0.0
    %1950 = vmatprep.subr.mxu0 0.0
    %1951 = vmatpush2.msra.mxu0 0.0
    %1952 = vmatprep.subr.mxu0 0.0
    %1953 = vmatpush2.msra.mxu0 0.0
    %1954 = vmatprep.subr.mxu0 0.0
    %1955 = vmatpush2.msra.mxu0 0.0
    %1956 = vmatprep.subr.mxu0 0.0
    %1957 = vmatpush2.msra.mxu0 0.0
    %1958 = vmatprep.subr.mxu0 0.0
    %1959 = vmatpush2.msra.mxu0 0.0
    %1960 = vmatprep.subr.mxu0 0.0
    %1961 = vmatpush2.msra.mxu0 0.0
    %1962 = vmatprep.subr.mxu0 0.0
    %1963 = vmatpush2.msra.mxu0 0.0
    %1964 = vmatprep.subr.mxu0 0.0
    %1965 = vmatpush2.msra.mxu0 0.0
    %1966 = vmatprep.subr.mxu0 0.0
    %1967 = vmatpush2.msra.mxu0 0.0
    %1968 = vmatprep.subr.mxu0 0.0
    %1969 = vmatpush2.msra.mxu0 0.0
    %1970 = vmatprep.subr.mxu0 0.0
    %1971 = vmatpush2.msra.mxu0 0.0
    %1972 = vmatprep.subr.mxu0 0.0
    %1973 = vmatpush2.msra.mxu0 0.0
    %1974 = vmatprep.subr.mxu0 0.0
    %1975 = vmatpush2.msra.mxu0 0.0
    %1976 = vmatprep.mubr.f32.mxu0 0.0
    %1977 = vmatmul.mubr.f32.gmra.mxu0 %v1910
    %v1978 = vpop.f32.mrf.mxu0
    %v1979 = vadd.f32 0.0, %v1978
    %v1980 = vpop.f32.mrf.mxu0
    %1981 = vdwg.mxu0
    %v1982 = vxor.u32 %v1979, 2147483648
    %v1983 = vmul.f32 %v1982, 1.442695
    %v1984 = vpow.pop %v1983
    %v1985 = vadd.f32 %v1984, 1.0
    %v1986 = vrcp.pop %v1985
    %v1987 = vmul.f32 1.0, %v1986
    %v1988 = vmax.f32 %v1979, 0.0
    %1990 = vrot.lane.b32.xlu0 %v1987, 32
    %v1991 = vpop.permute.xlu0 %1990
    %v1993 = vmul.f32 %v1988, %v1991
    %1995 = vrot.lane.b32.xlu0 %v1993, 96
    %v1996 = vpop.permute.xlu0 %1995
    %v1998 = vadd.f32 %v1907, %v1996
    %v1999 = vmul.f32 %v1998, %v1998
    %v2000 = vsel %vm211, %v1999, 0.0
    %2001 = vadd.xlane.f32.xlu0 %v2000
    %v2002 = vpop.xlane.xlu0 %2001
    %v2003 = vmax.f32 %v2002, 1e-24
    %v2004 = vrsqrt.pop %v2003
    %v2005 = vmul.f32 %v1998, %v2004
    %v2006 = vsel %vm312, %v2005, %v1907
    %2007 = vmatprep.subr.mxu0 0.0
    %2008 = vmatpush1.msra.mxu0 0.0
    %2009 = vmatprep.subr.mxu0 0.0
    %2010 = vmatpush1.msra.mxu0 0.0
    %2011 = vmatprep.subr.mxu0 0.0
    %2012 = vmatpush1.msra.mxu0 0.0
    %2013 = vmatprep.subr.mxu0 0.0
    %2014 = vmatpush1.msra.mxu0 0.0
    %2015 = vmatprep.subr.mxu0 0.0
    %2016 = vmatpush1.msra.mxu0 0.0
    %2017 = vmatprep.subr.mxu0 0.0
    %2018 = vmatpush1.msra.mxu0 0.0
    %2019 = vmatprep.subr.mxu0 0.0
    %2020 = vmatpush1.msra.mxu0 0.0
    %2021 = vmatprep.subr.mxu0 0.0
    %2022 = vmatpush1.msra.mxu0 0.0
    %2023 = vmatprep.subr.mxu0 0.0
    %2024 = vmatpush1.msra.mxu0 0.0
    %2025 = vmatprep.subr.mxu0 0.0
    %2026 = vmatpush1.msra.mxu0 0.0
    %2027 = vmatprep.subr.mxu0 0.0
    %2028 = vmatpush1.msra.mxu0 0.0
    %2029 = vmatprep.subr.mxu0 0.0
    %2030 = vmatpush1.msra.mxu0 0.0
    %2031 = vmatprep.subr.mxu0 0.0
    %2032 = vmatpush1.msra.mxu0 0.0
    %2033 = vmatprep.subr.mxu0 0.0
    %2034 = vmatpush1.msra.mxu0 0.0
    %2035 = vmatprep.subr.mxu0 0.0
    %2036 = vmatpush1.msra.mxu0 0.0
    %2037 = vmatprep.subr.mxu0 0.0
    %2038 = vmatpush1.msra.mxu0 %v1907
    %2039 = vmatprep.subr.mxu0 0.0
    %2040 = vmatpush2.msra.mxu0 0.0
    %2041 = vmatprep.subr.mxu0 0.0
    %2042 = vmatpush2.msra.mxu0 0.0
    %2043 = vmatprep.subr.mxu0 0.0
    %2044 = vmatpush2.msra.mxu0 0.0
    %2045 = vmatprep.subr.mxu0 0.0
    %2046 = vmatpush2.msra.mxu0 0.0
    %2047 = vmatprep.subr.mxu0 0.0
    %2048 = vmatpush2.msra.mxu0 0.0
    %2049 = vmatprep.subr.mxu0 0.0
    %2050 = vmatpush2.msra.mxu0 0.0
    %2051 = vmatprep.subr.mxu0 0.0
    %2052 = vmatpush2.msra.mxu0 0.0
    %2053 = vmatprep.subr.mxu0 0.0
    %2054 = vmatpush2.msra.mxu0 0.0
    %2055 = vmatprep.subr.mxu0 0.0
    %2056 = vmatpush2.msra.mxu0 0.0
    %2057 = vmatprep.subr.mxu0 0.0
    %2058 = vmatpush2.msra.mxu0 0.0
    %2059 = vmatprep.subr.mxu0 0.0
    %2060 = vmatpush2.msra.mxu0 0.0
    %2061 = vmatprep.subr.mxu0 0.0
    %2062 = vmatpush2.msra.mxu0 0.0
    %2063 = vmatprep.subr.mxu0 0.0
    %2064 = vmatpush2.msra.mxu0 0.0
    %2065 = vmatprep.subr.mxu0 0.0
    %2066 = vmatpush2.msra.mxu0 0.0
    %2067 = vmatprep.subr.mxu0 0.0
    %2068 = vmatpush2.msra.mxu0 0.0
    %2069 = vmatprep.subr.mxu0 0.0
    %2070 = vmatpush2.msra.mxu0 0.0
    %2071 = vmatprep.mubr.f32.mxu0 0.0
    %2072 = vmatmul.mubr.f32.gmra.mxu0 %v315
    %v2073 = vpop.f32.mrf.mxu0
    %v2074 = vadd.f32 0.0, %v2073
    %v2075 = vpop.f32.mrf.mxu0
    %2076 = vdwg.mxu0
    %2077 = vmatprep.subr.mxu0 0.0
    %2078 = vmatpush1.msra.mxu0 0.0
    %2079 = vmatprep.subr.mxu0 0.0
    %2080 = vmatpush1.msra.mxu0 0.0
    %2081 = vmatprep.subr.mxu0 0.0
    %2082 = vmatpush1.msra.mxu0 0.0
    %2083 = vmatprep.subr.mxu0 0.0
    %2084 = vmatpush1.msra.mxu0 0.0
    %2085 = vmatprep.subr.mxu0 0.0
    %2086 = vmatpush1.msra.mxu0 0.0
    %2087 = vmatprep.subr.mxu0 0.0
    %2088 = vmatpush1.msra.mxu0 0.0
    %2089 = vmatprep.subr.mxu0 0.0
    %2090 = vmatpush1.msra.mxu0 0.0
    %2091 = vmatprep.subr.mxu0 0.0
    %2092 = vmatpush1.msra.mxu0 0.0
    %2093 = vmatprep.subr.mxu0 0.0
    %2094 = vmatpush1.msra.mxu0 0.0
    %2095 = vmatprep.subr.mxu0 0.0
    %2096 = vmatpush1.msra.mxu0 0.0
    %2097 = vmatprep.subr.mxu0 0.0
    %2098 = vmatpush1.msra.mxu0 0.0
    %2099 = vmatprep.subr.mxu0 0.0
    %2100 = vmatpush1.msra.mxu0 0.0
    %2101 = vmatprep.subr.mxu0 0.0
    %2102 = vmatpush1.msra.mxu0 0.0
    %2103 = vmatprep.subr.mxu0 0.0
    %2104 = vmatpush1.msra.mxu0 0.0
    %2105 = vmatprep.subr.mxu0 0.0
    %2106 = vmatpush1.msra.mxu0 0.0
    %2107 = vmatprep.subr.mxu0 0.0
    %2108 = vmatpush1.msra.mxu0 %v1907
    %2109 = vmatprep.subr.mxu0 0.0
    %2110 = vmatpush2.msra.mxu0 0.0
    %2111 = vmatprep.subr.mxu0 0.0
    %2112 = vmatpush2.msra.mxu0 0.0
    %2113 = vmatprep.subr.mxu0 0.0
    %2114 = vmatpush2.msra.mxu0 0.0
    %2115 = vmatprep.subr.mxu0 0.0
    %2116 = vmatpush2.msra.mxu0 0.0
    %2117 = vmatprep.subr.mxu0 0.0
    %2118 = vmatpush2.msra.mxu0 0.0
    %2119 = vmatprep.subr.mxu0 0.0
    %2120 = vmatpush2.msra.mxu0 0.0
    %2121 = vmatprep.subr.mxu0 0.0
    %2122 = vmatpush2.msra.mxu0 0.0
    %2123 = vmatprep.subr.mxu0 0.0
    %2124 = vmatpush2.msra.mxu0 0.0
    %2125 = vmatprep.subr.mxu0 0.0
    %2126 = vmatpush2.msra.mxu0 0.0
    %2127 = vmatprep.subr.mxu0 0.0
    %2128 = vmatpush2.msra.mxu0 0.0
    %2129 = vmatprep.subr.mxu0 0.0
    %2130 = vmatpush2.msra.mxu0 0.0
    %2131 = vmatprep.subr.mxu0 0.0
    %2132 = vmatpush2.msra.mxu0 0.0
    %2133 = vmatprep.subr.mxu0 0.0
    %2134 = vmatpush2.msra.mxu0 0.0
    %2135 = vmatprep.subr.mxu0 0.0
    %2136 = vmatpush2.msra.mxu0 0.0
    %2137 = vmatprep.subr.mxu0 0.0
    %2138 = vmatpush2.msra.mxu0 0.0
    %2139 = vmatprep.subr.mxu0 0.0
    %2140 = vmatpush2.msra.mxu0 0.0
    %2141 = vmatprep.mubr.f32.mxu0 0.0
    %2142 = vmatmul.mubr.f32.gmra.mxu0 %v388
    %v2143 = vpop.f32.mrf.mxu0
    %v2144 = vadd.f32 0.0, %v2143
    %v2145 = vpop.f32.mrf.mxu0
    %2146 = vdwg.mxu0
    %2148 = vrot.lane.b32.xlu0 %v2144, 32
    %v2149 = vpop.permute.xlu0 %2148
    %v2151 = vsel %vm211, %v2074, %v2149
    %2153 = vrot.lane.b32.xlu0 %v2074, 32
    %v2154 = vpop.permute.xlu0 %2153
    %v2156 = vsel %vm211, %v2144, %v2154
    %v2158 = vsel %vm470, %v2151, 0
    %2160 = vmatprep.subr.mxu0 0.0
    %2161 = vmatpush1.msra.mxu0 0.0
    %2162 = vmatprep.subr.mxu0 0.0
    %2163 = vmatpush1.msra.mxu0 0.0
    %2164 = vmatprep.subr.mxu0 0.0
    %2165 = vmatpush1.msra.mxu0 0.0
    %2166 = vmatprep.subr.mxu0 0.0
    %2167 = vmatpush1.msra.mxu0 0.0
    %2168 = vmatprep.subr.mxu0 0.0
    %2169 = vmatpush1.msra.mxu0 0.0
    %2170 = vmatprep.subr.mxu0 0.0
    %2171 = vmatpush1.msra.mxu0 0.0
    %2172 = vmatprep.subr.mxu0 0.0
    %2173 = vmatpush1.msra.mxu0 0.0
    %2174 = vmatprep.subr.mxu0 0.0
    %2175 = vmatpush1.msra.mxu0 0.0
    %2176 = vmatprep.subr.mxu0 0.0
    %2177 = vmatpush1.msra.mxu0 %v173
    %2178 = vmatprep.subr.mxu0 0.0
    %2179 = vmatpush1.msra.mxu0 %v172
    %2180 = vmatprep.subr.mxu0 0.0
    %2181 = vmatpush1.msra.mxu0 %v171
    %2182 = vmatprep.subr.mxu0 0.0
    %2183 = vmatpush1.msra.mxu0 %v170
    %2184 = vmatprep.subr.mxu0 0.0
    %2185 = vmatpush1.msra.mxu0 %v169
    %2186 = vmatprep.subr.mxu0 0.0
    %2187 = vmatpush1.msra.mxu0 %v168
    %2188 = vmatprep.subr.mxu0 0.0
    %2189 = vmatpush1.msra.mxu0 %v167
    %2190 = vmatprep.subr.mxu0 0.0
    %2191 = vmatpush1.msra.mxu0 %v166
    %2192 = vmatprep.subr.mxu0 0.0
    %2193 = vmatpush2.msra.mxu0 0.0
    %2194 = vmatprep.subr.mxu0 0.0
    %2195 = vmatpush2.msra.mxu0 0.0
    %2196 = vmatprep.subr.mxu0 0.0
    %2197 = vmatpush2.msra.mxu0 0.0
    %2198 = vmatprep.subr.mxu0 0.0
    %2199 = vmatpush2.msra.mxu0 0.0
    %2200 = vmatprep.subr.mxu0 0.0
    %2201 = vmatpush2.msra.mxu0 0.0
    %2202 = vmatprep.subr.mxu0 0.0
    %2203 = vmatpush2.msra.mxu0 0.0
    %2204 = vmatprep.subr.mxu0 0.0
    %2205 = vmatpush2.msra.mxu0 0.0
    %2206 = vmatprep.subr.mxu0 0.0
    %2207 = vmatpush2.msra.mxu0 0.0
    %2208 = vmatprep.subr.mxu0 0.0
    %2209 = vmatpush2.msra.mxu0 0.0
    %2210 = vmatprep.subr.mxu0 0.0
    %2211 = vmatpush2.msra.mxu0 0.0
    %2212 = vmatprep.subr.mxu0 0.0
    %2213 = vmatpush2.msra.mxu0 0.0
    %2214 = vmatprep.subr.mxu0 0.0
    %2215 = vmatpush2.msra.mxu0 0.0
    %2216 = vmatprep.subr.mxu0 0.0
    %2217 = vmatpush2.msra.mxu0 0.0
    %2218 = vmatprep.subr.mxu0 0.0
    %2219 = vmatpush2.msra.mxu0 0.0
    %2220 = vmatprep.subr.mxu0 0.0
    %2221 = vmatpush2.msra.mxu0 0.0
    %2222 = vmatprep.subr.mxu0 0.0
    %2223 = vmatpush2.msra.mxu0 0.0
    %2224 = vmatprep.mubr.f32.mxu0 0.0
    %2225 = vmatmul.mubr.f32.gmra.mxu0 %v2158
    %v2226 = vpop.f32.mrf.mxu0
    %v2227 = vadd.f32 0.0, %v2226
    %v2228 = vpop.f32.mrf.mxu0
    %2229 = vdwg.mxu0
    %v2230 = vmul.f32 %v2144, %v548
    %v2231 = vsel %vm551, %v2230, 0.0
    %2232 = vadd.xlane.f32.xlu0 %v2231
    %v2233 = vpop.xlane.xlu0 %2232
    %v2234 = vmul.f32 %v2074, %v2233
    %2236 = vrot.lane.b32.xlu0 %v2234, 32
    %v2237 = vpop.permute.xlu0 %2236
    %v2239 = vadd.f32 %v2227, %v2237
    %v2240 = vmax.f32 %v2239, 0.0
    %v2241 = vxor.u32 %v2227, 2147483648
    %v2242 = vmul.f32 %v2241, 1.442695
    %v2243 = vpow.pop %v2242
    %v2244 = vadd.f32 %v2243, 1.0
    %v2245 = vrcp.pop %v2244
    %v2246 = vmul.f32 1.0, %v2245
    %2248 = vrot.lane.b32.xlu0 %v2246, 32
    %v2249 = vpop.permute.xlu0 %2248
    %v2251 = vmul.f32 %v2240, %v2249
    %2253 = vrot.lane.b32.xlu0 %v2251, 96
    %v2254 = vpop.permute.xlu0 %2253
    %v2256 = vadd.f32 %v2074, %v2254
    %v2257 = vmul.f32 %v2256, %v2256
    %v2258 = vsel %vm551, %v2257, 0.0
    %2259 = vadd.xlane.f32.xlu0 %v2258
    %v2260 = vpop.xlane.xlu0 %2259
    %v2261 = vmax.f32 %v2260, 1e-24
    %v2262 = vrsqrt.pop %v2261
    %v2263 = vmul.f32 %v2256, %v2262
    %v2264 = vsel %vm589, %v2263, 0.0
    %v2266 = vsel %vm470, %v2156, 0
    %2268 = vmatprep.subr.mxu0 0.0
    %2269 = vmatpush1.msra.mxu0 0.0
    %2270 = vmatprep.subr.mxu0 0.0
    %2271 = vmatpush1.msra.mxu0 0.0
    %2272 = vmatprep.subr.mxu0 0.0
    %2273 = vmatpush1.msra.mxu0 0.0
    %2274 = vmatprep.subr.mxu0 0.0
    %2275 = vmatpush1.msra.mxu0 0.0
    %2276 = vmatprep.subr.mxu0 0.0
    %2277 = vmatpush1.msra.mxu0 0.0
    %2278 = vmatprep.subr.mxu0 0.0
    %2279 = vmatpush1.msra.mxu0 0.0
    %2280 = vmatprep.subr.mxu0 0.0
    %2281 = vmatpush1.msra.mxu0 0.0
    %2282 = vmatprep.subr.mxu0 0.0
    %2283 = vmatpush1.msra.mxu0 0.0
    %2284 = vmatprep.subr.mxu0 0.0
    %2285 = vmatpush1.msra.mxu0 %v190
    %2286 = vmatprep.subr.mxu0 0.0
    %2287 = vmatpush1.msra.mxu0 %v189
    %2288 = vmatprep.subr.mxu0 0.0
    %2289 = vmatpush1.msra.mxu0 %v188
    %2290 = vmatprep.subr.mxu0 0.0
    %2291 = vmatpush1.msra.mxu0 %v187
    %2292 = vmatprep.subr.mxu0 0.0
    %2293 = vmatpush1.msra.mxu0 %v186
    %2294 = vmatprep.subr.mxu0 0.0
    %2295 = vmatpush1.msra.mxu0 %v185
    %2296 = vmatprep.subr.mxu0 0.0
    %2297 = vmatpush1.msra.mxu0 %v184
    %2298 = vmatprep.subr.mxu0 0.0
    %2299 = vmatpush1.msra.mxu0 %v183
    %2300 = vmatprep.subr.mxu0 0.0
    %2301 = vmatpush2.msra.mxu0 0.0
    %2302 = vmatprep.subr.mxu0 0.0
    %2303 = vmatpush2.msra.mxu0 0.0
    %2304 = vmatprep.subr.mxu0 0.0
    %2305 = vmatpush2.msra.mxu0 0.0
    %2306 = vmatprep.subr.mxu0 0.0
    %2307 = vmatpush2.msra.mxu0 0.0
    %2308 = vmatprep.subr.mxu0 0.0
    %2309 = vmatpush2.msra.mxu0 0.0
    %2310 = vmatprep.subr.mxu0 0.0
    %2311 = vmatpush2.msra.mxu0 0.0
    %2312 = vmatprep.subr.mxu0 0.0
    %2313 = vmatpush2.msra.mxu0 0.0
    %2314 = vmatprep.subr.mxu0 0.0
    %2315 = vmatpush2.msra.mxu0 0.0
    %2316 = vmatprep.subr.mxu0 0.0
    %2317 = vmatpush2.msra.mxu0 0.0
    %2318 = vmatprep.subr.mxu0 0.0
    %2319 = vmatpush2.msra.mxu0 0.0
    %2320 = vmatprep.subr.mxu0 0.0
    %2321 = vmatpush2.msra.mxu0 0.0
    %2322 = vmatprep.subr.mxu0 0.0
    %2323 = vmatpush2.msra.mxu0 0.0
    %2324 = vmatprep.subr.mxu0 0.0
    %2325 = vmatpush2.msra.mxu0 0.0
    %2326 = vmatprep.subr.mxu0 0.0
    %2327 = vmatpush2.msra.mxu0 0.0
    %2328 = vmatprep.subr.mxu0 0.0
    %2329 = vmatpush2.msra.mxu0 0.0
    %2330 = vmatprep.subr.mxu0 0.0
    %2331 = vmatpush2.msra.mxu0 0.0
    %2332 = vmatprep.mubr.f32.mxu0 0.0
    %2333 = vmatmul.mubr.f32.gmra.mxu0 %v2266
    %v2334 = vpop.f32.mrf.mxu0
    %v2335 = vadd.f32 0.0, %v2334
    %v2336 = vpop.f32.mrf.mxu0
    %2337 = vdwg.mxu0
    %v2338 = vmul.f32 %v2074, %v668
    %v2339 = vsel %vm551, %v2338, 0.0
    %2340 = vadd.xlane.f32.xlu0 %v2339
    %v2341 = vpop.xlane.xlu0 %2340
    %v2342 = vmul.f32 %v2144, %v2341
    %2344 = vrot.lane.b32.xlu0 %v2342, 32
    %v2345 = vpop.permute.xlu0 %2344
    %v2347 = vadd.f32 %v2335, %v2345
    %v2348 = vmax.f32 %v2347, 0.0
    %v2349 = vxor.u32 %v2335, 2147483648
    %v2350 = vmul.f32 %v2349, 1.442695
    %v2351 = vpow.pop %v2350
    %v2352 = vadd.f32 %v2351, 1.0
    %v2353 = vrcp.pop %v2352
    %v2354 = vmul.f32 1.0, %v2353
    %2356 = vrot.lane.b32.xlu0 %v2354, 32
    %v2357 = vpop.permute.xlu0 %2356
    %v2359 = vmul.f32 %v2348, %v2357
    %2361 = vrot.lane.b32.xlu0 %v2359, 96
    %v2362 = vpop.permute.xlu0 %2361
    %v2364 = vadd.f32 %v2144, %v2362
    %v2365 = vmul.f32 %v2364, %v2364
    %v2366 = vsel %vm551, %v2365, 0.0
    %2367 = vadd.xlane.f32.xlu0 %v2366
    %v2368 = vpop.xlane.xlu0 %2367
    %v2369 = vmax.f32 %v2368, 1e-24
    %v2370 = vrsqrt.pop %v2369
    %v2371 = vmul.f32 %v2364, %v2370
    %v2372 = vsel %vm589, %v2371, 0.0
    %2373 = vmatprep.subr.mxu0 0.0
    %2374 = vmatpush1.msra.mxu0 0.0
    %2375 = vmatprep.subr.mxu0 0.0
    %2376 = vmatpush1.msra.mxu0 0.0
    %2377 = vmatprep.subr.mxu0 0.0
    %2378 = vmatpush1.msra.mxu0 0.0
    %2379 = vmatprep.subr.mxu0 0.0
    %2380 = vmatpush1.msra.mxu0 0.0
    %2381 = vmatprep.subr.mxu0 0.0
    %2382 = vmatpush1.msra.mxu0 0.0
    %2383 = vmatprep.subr.mxu0 0.0
    %2384 = vmatpush1.msra.mxu0 0.0
    %2385 = vmatprep.subr.mxu0 0.0
    %2386 = vmatpush1.msra.mxu0 0.0
    %2387 = vmatprep.subr.mxu0 0.0
    %2388 = vmatpush1.msra.mxu0 0.0
    %2389 = vmatprep.subr.mxu0 0.0
    %2390 = vmatpush1.msra.mxu0 %v182
    %2391 = vmatprep.subr.mxu0 0.0
    %2392 = vmatpush1.msra.mxu0 %v181
    %2393 = vmatprep.subr.mxu0 0.0
    %2394 = vmatpush1.msra.mxu0 %v180
    %2395 = vmatprep.subr.mxu0 0.0
    %2396 = vmatpush1.msra.mxu0 %v179
    %2397 = vmatprep.subr.mxu0 0.0
    %2398 = vmatpush1.msra.mxu0 %v178
    %2399 = vmatprep.subr.mxu0 0.0
    %2400 = vmatpush1.msra.mxu0 %v177
    %2401 = vmatprep.subr.mxu0 0.0
    %2402 = vmatpush1.msra.mxu0 %v176
    %2403 = vmatprep.subr.mxu0 0.0
    %2404 = vmatpush1.msra.mxu0 %v175
    %2405 = vmatprep.subr.mxu0 0.0
    %2406 = vmatpush2.msra.mxu0 0.0
    %2407 = vmatprep.subr.mxu0 0.0
    %2408 = vmatpush2.msra.mxu0 0.0
    %2409 = vmatprep.subr.mxu0 0.0
    %2410 = vmatpush2.msra.mxu0 0.0
    %2411 = vmatprep.subr.mxu0 0.0
    %2412 = vmatpush2.msra.mxu0 0.0
    %2413 = vmatprep.subr.mxu0 0.0
    %2414 = vmatpush2.msra.mxu0 0.0
    %2415 = vmatprep.subr.mxu0 0.0
    %2416 = vmatpush2.msra.mxu0 0.0
    %2417 = vmatprep.subr.mxu0 0.0
    %2418 = vmatpush2.msra.mxu0 0.0
    %2419 = vmatprep.subr.mxu0 0.0
    %2420 = vmatpush2.msra.mxu0 0.0
    %2421 = vmatprep.subr.mxu0 0.0
    %2422 = vmatpush2.msra.mxu0 0.0
    %2423 = vmatprep.subr.mxu0 0.0
    %2424 = vmatpush2.msra.mxu0 0.0
    %2425 = vmatprep.subr.mxu0 0.0
    %2426 = vmatpush2.msra.mxu0 0.0
    %2427 = vmatprep.subr.mxu0 0.0
    %2428 = vmatpush2.msra.mxu0 0.0
    %2429 = vmatprep.subr.mxu0 0.0
    %2430 = vmatpush2.msra.mxu0 0.0
    %2431 = vmatprep.subr.mxu0 0.0
    %2432 = vmatpush2.msra.mxu0 0.0
    %2433 = vmatprep.subr.mxu0 0.0
    %2434 = vmatpush2.msra.mxu0 0.0
    %2435 = vmatprep.subr.mxu0 0.0
    %2436 = vmatpush2.msra.mxu0 0.0
    %2437 = vmatprep.mubr.f32.mxu0 0.0
    %2438 = vmatmul.mubr.f32.gmra.mxu0 %v2158
    %v2439 = vpop.f32.mrf.mxu0
    %v2440 = vadd.f32 0.0, %v2439
    %v2441 = vpop.f32.mrf.mxu0
    %2442 = vdwg.mxu0
    %v2443 = vmul.f32 %v2144, %v779
    %v2444 = vsel %vm551, %v2443, 0.0
    %2445 = vadd.xlane.f32.xlu0 %v2444
    %v2446 = vpop.xlane.xlu0 %2445
    %v2447 = vmul.f32 %v2074, %v2446
    %2449 = vrot.lane.b32.xlu0 %v2447, 32
    %v2450 = vpop.permute.xlu0 %2449
    %v2452 = vadd.f32 %v2440, %v2450
    %v2453 = vmax.f32 %v2452, 0.0
    %v2454 = vxor.u32 %v2440, 2147483648
    %v2455 = vmul.f32 %v2454, 1.442695
    %v2456 = vpow.pop %v2455
    %v2457 = vadd.f32 %v2456, 1.0
    %v2458 = vrcp.pop %v2457
    %v2459 = vmul.f32 1.0, %v2458
    %2461 = vrot.lane.b32.xlu0 %v2459, 32
    %v2462 = vpop.permute.xlu0 %2461
    %v2464 = vmul.f32 %v2453, %v2462
    %2466 = vrot.lane.b32.xlu0 %v2464, 96
    %v2467 = vpop.permute.xlu0 %2466
    %v2469 = vadd.f32 %v2074, %v2467
    %v2470 = vmul.f32 %v2469, %v2469
    %v2471 = vsel %vm551, %v2470, 0.0
    %2472 = vadd.xlane.f32.xlu0 %v2471
    %v2473 = vpop.xlane.xlu0 %2472
    %v2474 = vmax.f32 %v2473, 1e-24
    %v2475 = vrsqrt.pop %v2474
    %v2476 = vmul.f32 %v2469, %v2475
    %v2477 = vsel %vm819, %v2476, %v2264
    %2478 = vmatprep.subr.mxu0 0.0
    %2479 = vmatpush1.msra.mxu0 0.0
    %2480 = vmatprep.subr.mxu0 0.0
    %2481 = vmatpush1.msra.mxu0 0.0
    %2482 = vmatprep.subr.mxu0 0.0
    %2483 = vmatpush1.msra.mxu0 0.0
    %2484 = vmatprep.subr.mxu0 0.0
    %2485 = vmatpush1.msra.mxu0 0.0
    %2486 = vmatprep.subr.mxu0 0.0
    %2487 = vmatpush1.msra.mxu0 0.0
    %2488 = vmatprep.subr.mxu0 0.0
    %2489 = vmatpush1.msra.mxu0 0.0
    %2490 = vmatprep.subr.mxu0 0.0
    %2491 = vmatpush1.msra.mxu0 0.0
    %2492 = vmatprep.subr.mxu0 0.0
    %2493 = vmatpush1.msra.mxu0 0.0
    %2494 = vmatprep.subr.mxu0 0.0
    %2495 = vmatpush1.msra.mxu0 %v199
    %2496 = vmatprep.subr.mxu0 0.0
    %2497 = vmatpush1.msra.mxu0 %v198
    %2498 = vmatprep.subr.mxu0 0.0
    %2499 = vmatpush1.msra.mxu0 %v197
    %2500 = vmatprep.subr.mxu0 0.0
    %2501 = vmatpush1.msra.mxu0 %v196
    %2502 = vmatprep.subr.mxu0 0.0
    %2503 = vmatpush1.msra.mxu0 %v195
    %2504 = vmatprep.subr.mxu0 0.0
    %2505 = vmatpush1.msra.mxu0 %v194
    %2506 = vmatprep.subr.mxu0 0.0
    %2507 = vmatpush1.msra.mxu0 %v193
    %2508 = vmatprep.subr.mxu0 0.0
    %2509 = vmatpush1.msra.mxu0 %v192
    %2510 = vmatprep.subr.mxu0 0.0
    %2511 = vmatpush2.msra.mxu0 0.0
    %2512 = vmatprep.subr.mxu0 0.0
    %2513 = vmatpush2.msra.mxu0 0.0
    %2514 = vmatprep.subr.mxu0 0.0
    %2515 = vmatpush2.msra.mxu0 0.0
    %2516 = vmatprep.subr.mxu0 0.0
    %2517 = vmatpush2.msra.mxu0 0.0
    %2518 = vmatprep.subr.mxu0 0.0
    %2519 = vmatpush2.msra.mxu0 0.0
    %2520 = vmatprep.subr.mxu0 0.0
    %2521 = vmatpush2.msra.mxu0 0.0
    %2522 = vmatprep.subr.mxu0 0.0
    %2523 = vmatpush2.msra.mxu0 0.0
    %2524 = vmatprep.subr.mxu0 0.0
    %2525 = vmatpush2.msra.mxu0 0.0
    %2526 = vmatprep.subr.mxu0 0.0
    %2527 = vmatpush2.msra.mxu0 0.0
    %2528 = vmatprep.subr.mxu0 0.0
    %2529 = vmatpush2.msra.mxu0 0.0
    %2530 = vmatprep.subr.mxu0 0.0
    %2531 = vmatpush2.msra.mxu0 0.0
    %2532 = vmatprep.subr.mxu0 0.0
    %2533 = vmatpush2.msra.mxu0 0.0
    %2534 = vmatprep.subr.mxu0 0.0
    %2535 = vmatpush2.msra.mxu0 0.0
    %2536 = vmatprep.subr.mxu0 0.0
    %2537 = vmatpush2.msra.mxu0 0.0
    %2538 = vmatprep.subr.mxu0 0.0
    %2539 = vmatpush2.msra.mxu0 0.0
    %2540 = vmatprep.subr.mxu0 0.0
    %2541 = vmatpush2.msra.mxu0 0.0
    %2542 = vmatprep.mubr.f32.mxu0 0.0
    %2543 = vmatmul.mubr.f32.gmra.mxu0 %v2266
    %v2544 = vpop.f32.mrf.mxu0
    %v2545 = vadd.f32 0.0, %v2544
    %v2546 = vpop.f32.mrf.mxu0
    %2547 = vdwg.mxu0
    %v2548 = vmul.f32 %v2074, %v895
    %v2549 = vsel %vm551, %v2548, 0.0
    %2550 = vadd.xlane.f32.xlu0 %v2549
    %v2551 = vpop.xlane.xlu0 %2550
    %v2552 = vmul.f32 %v2144, %v2551
    %2554 = vrot.lane.b32.xlu0 %v2552, 32
    %v2555 = vpop.permute.xlu0 %2554
    %v2557 = vadd.f32 %v2545, %v2555
    %v2558 = vmax.f32 %v2557, 0.0
    %v2559 = vxor.u32 %v2545, 2147483648
    %v2560 = vmul.f32 %v2559, 1.442695
    %v2561 = vpow.pop %v2560
    %v2562 = vadd.f32 %v2561, 1.0
    %v2563 = vrcp.pop %v2562
    %v2564 = vmul.f32 1.0, %v2563
    %2566 = vrot.lane.b32.xlu0 %v2564, 32
    %v2567 = vpop.permute.xlu0 %2566
    %v2569 = vmul.f32 %v2558, %v2567
    %2571 = vrot.lane.b32.xlu0 %v2569, 96
    %v2572 = vpop.permute.xlu0 %2571
    %v2574 = vadd.f32 %v2144, %v2572
    %v2575 = vmul.f32 %v2574, %v2574
    %v2576 = vsel %vm551, %v2575, 0.0
    %2577 = vadd.xlane.f32.xlu0 %v2576
    %v2578 = vpop.xlane.xlu0 %2577
    %v2579 = vmax.f32 %v2578, 1e-24
    %v2580 = vrsqrt.pop %v2579
    %v2581 = vmul.f32 %v2574, %v2580
    %v2582 = vsel %vm819, %v2581, %v2372
    %v2584 = vsel %vm935, %v2582, 0
    %2586 = vmatprep.subr.mxu0 0.0
    %2587 = vmatpush1.msra.mxu0 0.0
    %2588 = vmatprep.subr.mxu0 0.0
    %2589 = vmatpush1.msra.mxu0 0.0
    %2590 = vmatprep.subr.mxu0 0.0
    %2591 = vmatpush1.msra.mxu0 0.0
    %2592 = vmatprep.subr.mxu0 0.0
    %2593 = vmatpush1.msra.mxu0 0.0
    %2594 = vmatprep.subr.mxu0 0.0
    %2595 = vmatpush1.msra.mxu0 0.0
    %2596 = vmatprep.subr.mxu0 0.0
    %2597 = vmatpush1.msra.mxu0 0.0
    %2598 = vmatprep.subr.mxu0 0.0
    %2599 = vmatpush1.msra.mxu0 0.0
    %2600 = vmatprep.subr.mxu0 0.0
    %2601 = vmatpush1.msra.mxu0 0.0
    %2602 = vmatprep.subr.mxu0 0.0
    %2603 = vmatpush1.msra.mxu0 0.0
    %2604 = vmatprep.subr.mxu0 0.0
    %2605 = vmatpush1.msra.mxu0 0.0
    %2606 = vmatprep.subr.mxu0 0.0
    %2607 = vmatpush1.msra.mxu0 0.0
    %2608 = vmatprep.subr.mxu0 0.0
    %2609 = vmatpush1.msra.mxu0 0.0
    %2610 = vmatprep.subr.mxu0 0.0
    %2611 = vmatpush1.msra.mxu0 0.0
    %2612 = vmatprep.subr.mxu0 0.0
    %2613 = vmatpush1.msra.mxu0 0.0
    %2614 = vmatprep.subr.mxu0 0.0
    %2615 = vmatpush1.msra.mxu0 0.0
    %2616 = vmatprep.subr.mxu0 0.0
    %2617 = vmatpush1.msra.mxu0 %v2584
    %2618 = vmatprep.subr.mxu0 0.0
    %2619 = vmatpush2.msra.mxu0 0.0
    %2620 = vmatprep.subr.mxu0 0.0
    %2621 = vmatpush2.msra.mxu0 0.0
    %2622 = vmatprep.subr.mxu0 0.0
    %2623 = vmatpush2.msra.mxu0 0.0
    %2624 = vmatprep.subr.mxu0 0.0
    %2625 = vmatpush2.msra.mxu0 0.0
    %2626 = vmatprep.subr.mxu0 0.0
    %2627 = vmatpush2.msra.mxu0 0.0
    %2628 = vmatprep.subr.mxu0 0.0
    %2629 = vmatpush2.msra.mxu0 0.0
    %2630 = vmatprep.subr.mxu0 0.0
    %2631 = vmatpush2.msra.mxu0 0.0
    %2632 = vmatprep.subr.mxu0 0.0
    %2633 = vmatpush2.msra.mxu0 0.0
    %2634 = vmatprep.subr.mxu0 0.0
    %2635 = vmatpush2.msra.mxu0 0.0
    %2636 = vmatprep.subr.mxu0 0.0
    %2637 = vmatpush2.msra.mxu0 0.0
    %2638 = vmatprep.subr.mxu0 0.0
    %2639 = vmatpush2.msra.mxu0 0.0
    %2640 = vmatprep.subr.mxu0 0.0
    %2641 = vmatpush2.msra.mxu0 0.0
    %2642 = vmatprep.subr.mxu0 0.0
    %2643 = vmatpush2.msra.mxu0 0.0
    %2644 = vmatprep.subr.mxu0 0.0
    %2645 = vmatpush2.msra.mxu0 0.0
    %2646 = vmatprep.subr.mxu0 0.0
    %2647 = vmatpush2.msra.mxu0 0.0
    %2648 = vmatprep.subr.mxu0 0.0
    %2649 = vmatpush2.msra.mxu0 0.0
    %2650 = vmatprep.mubr.f32.mxu0 0.0
    %2651 = vmatmul.mubr.f32.gmra.mxu0 %v933
    %v2652 = vpop.f32.mrf.mxu0
    %v2653 = vadd.f32 0.0, %v2652
    %v2654 = vpop.f32.mrf.mxu0
    %2655 = vdwg.mxu0
    %v2657 = vsel %vm935, %v2477, 0
    %2659 = vmatprep.subr.mxu0 0.0
    %2660 = vmatpush1.msra.mxu0 0.0
    %2661 = vmatprep.subr.mxu0 0.0
    %2662 = vmatpush1.msra.mxu0 0.0
    %2663 = vmatprep.subr.mxu0 0.0
    %2664 = vmatpush1.msra.mxu0 0.0
    %2665 = vmatprep.subr.mxu0 0.0
    %2666 = vmatpush1.msra.mxu0 0.0
    %2667 = vmatprep.subr.mxu0 0.0
    %2668 = vmatpush1.msra.mxu0 0.0
    %2669 = vmatprep.subr.mxu0 0.0
    %2670 = vmatpush1.msra.mxu0 0.0
    %2671 = vmatprep.subr.mxu0 0.0
    %2672 = vmatpush1.msra.mxu0 0.0
    %2673 = vmatprep.subr.mxu0 0.0
    %2674 = vmatpush1.msra.mxu0 0.0
    %2675 = vmatprep.subr.mxu0 0.0
    %2676 = vmatpush1.msra.mxu0 0.0
    %2677 = vmatprep.subr.mxu0 0.0
    %2678 = vmatpush1.msra.mxu0 0.0
    %2679 = vmatprep.subr.mxu0 0.0
    %2680 = vmatpush1.msra.mxu0 0.0
    %2681 = vmatprep.subr.mxu0 0.0
    %2682 = vmatpush1.msra.mxu0 0.0
    %2683 = vmatprep.subr.mxu0 0.0
    %2684 = vmatpush1.msra.mxu0 0.0
    %2685 = vmatprep.subr.mxu0 0.0
    %2686 = vmatpush1.msra.mxu0 0.0
    %2687 = vmatprep.subr.mxu0 0.0
    %2688 = vmatpush1.msra.mxu0 0.0
    %2689 = vmatprep.subr.mxu0 0.0
    %2690 = vmatpush1.msra.mxu0 %v2657
    %2691 = vmatprep.subr.mxu0 0.0
    %2692 = vmatpush2.msra.mxu0 0.0
    %2693 = vmatprep.subr.mxu0 0.0
    %2694 = vmatpush2.msra.mxu0 0.0
    %2695 = vmatprep.subr.mxu0 0.0
    %2696 = vmatpush2.msra.mxu0 0.0
    %2697 = vmatprep.subr.mxu0 0.0
    %2698 = vmatpush2.msra.mxu0 0.0
    %2699 = vmatprep.subr.mxu0 0.0
    %2700 = vmatpush2.msra.mxu0 0.0
    %2701 = vmatprep.subr.mxu0 0.0
    %2702 = vmatpush2.msra.mxu0 0.0
    %2703 = vmatprep.subr.mxu0 0.0
    %2704 = vmatpush2.msra.mxu0 0.0
    %2705 = vmatprep.subr.mxu0 0.0
    %2706 = vmatpush2.msra.mxu0 0.0
    %2707 = vmatprep.subr.mxu0 0.0
    %2708 = vmatpush2.msra.mxu0 0.0
    %2709 = vmatprep.subr.mxu0 0.0
    %2710 = vmatpush2.msra.mxu0 0.0
    %2711 = vmatprep.subr.mxu0 0.0
    %2712 = vmatpush2.msra.mxu0 0.0
    %2713 = vmatprep.subr.mxu0 0.0
    %2714 = vmatpush2.msra.mxu0 0.0
    %2715 = vmatprep.subr.mxu0 0.0
    %2716 = vmatpush2.msra.mxu0 0.0
    %2717 = vmatprep.subr.mxu0 0.0
    %2718 = vmatpush2.msra.mxu0 0.0
    %2719 = vmatprep.subr.mxu0 0.0
    %2720 = vmatpush2.msra.mxu0 0.0
    %2721 = vmatprep.subr.mxu0 0.0
    %2722 = vmatpush2.msra.mxu0 0.0
    %2723 = vmatprep.mubr.f32.mxu0 0.0
    %2724 = vmatmul.mubr.f32.gmra.mxu0 %v1010
    %v2725 = vpop.f32.mrf.mxu0
    %v2726 = vadd.f32 %v2653, %v2725
    %v2727 = vpop.f32.mrf.mxu0
    %2728 = vdwg.mxu0
    %v2729 = vsel %vm156, %v2726, %v2006
    %v2730 = vsel %vm211, %v2729, %v209
    %v2732 = vsel %vm213, %v2730, 0
    %2734 = vmatprep.subr.mxu0 0.0
    %2735 = vmatpush1.msra.mxu0 0.0
    %2736 = vmatprep.subr.mxu0 0.0
    %2737 = vmatpush1.msra.mxu0 0.0
    %2738 = vmatprep.subr.mxu0 0.0
    %2739 = vmatpush1.msra.mxu0 0.0
    %2740 = vmatprep.subr.mxu0 0.0
    %2741 = vmatpush1.msra.mxu0 0.0
    %2742 = vmatprep.subr.mxu0 0.0
    %2743 = vmatpush1.msra.mxu0 0.0
    %2744 = vmatprep.subr.mxu0 0.0
    %2745 = vmatpush1.msra.mxu0 0.0
    %2746 = vmatprep.subr.mxu0 0.0
    %2747 = vmatpush1.msra.mxu0 0.0
    %2748 = vmatprep.subr.mxu0 0.0
    %2749 = vmatpush1.msra.mxu0 0.0
    %2750 = vmatprep.subr.mxu0 0.0
    %2751 = vmatpush1.msra.mxu0 0.0
    %2752 = vmatprep.subr.mxu0 0.0
    %2753 = vmatpush1.msra.mxu0 0.0
    %2754 = vmatprep.subr.mxu0 0.0
    %2755 = vmatpush1.msra.mxu0 0.0
    %2756 = vmatprep.subr.mxu0 0.0
    %2757 = vmatpush1.msra.mxu0 %v107
    %2758 = vmatprep.subr.mxu0 0.0
    %2759 = vmatpush1.msra.mxu0 %v106
    %2760 = vmatprep.subr.mxu0 0.0
    %2761 = vmatpush1.msra.mxu0 %v105
    %2762 = vmatprep.subr.mxu0 0.0
    %2763 = vmatpush1.msra.mxu0 %v104
    %2764 = vmatprep.subr.mxu0 0.0
    %2765 = vmatpush1.msra.mxu0 %v103
    %2766 = vmatprep.subr.mxu0 0.0
    %2767 = vmatpush2.msra.mxu0 0.0
    %2768 = vmatprep.subr.mxu0 0.0
    %2769 = vmatpush2.msra.mxu0 0.0
    %2770 = vmatprep.subr.mxu0 0.0
    %2771 = vmatpush2.msra.mxu0 0.0
    %2772 = vmatprep.subr.mxu0 0.0
    %2773 = vmatpush2.msra.mxu0 0.0
    %2774 = vmatprep.subr.mxu0 0.0
    %2775 = vmatpush2.msra.mxu0 0.0
    %2776 = vmatprep.subr.mxu0 0.0
    %2777 = vmatpush2.msra.mxu0 0.0
    %2778 = vmatprep.subr.mxu0 0.0
    %2779 = vmatpush2.msra.mxu0 0.0
    %2780 = vmatprep.subr.mxu0 0.0
    %2781 = vmatpush2.msra.mxu0 0.0
    %2782 = vmatprep.subr.mxu0 0.0
    %2783 = vmatpush2.msra.mxu0 0.0
    %2784 = vmatprep.subr.mxu0 0.0
    %2785 = vmatpush2.msra.mxu0 0.0
    %2786 = vmatprep.subr.mxu0 0.0
    %2787 = vmatpush2.msra.mxu0 0.0
    %2788 = vmatprep.subr.mxu0 0.0
    %2789 = vmatpush2.msra.mxu0 0.0
    %2790 = vmatprep.subr.mxu0 0.0
    %2791 = vmatpush2.msra.mxu0 0.0
    %2792 = vmatprep.subr.mxu0 0.0
    %2793 = vmatpush2.msra.mxu0 0.0
    %2794 = vmatprep.subr.mxu0 0.0
    %2795 = vmatpush2.msra.mxu0 0.0
    %2796 = vmatprep.subr.mxu0 0.0
    %2797 = vmatpush2.msra.mxu0 0.0
    %2798 = vmatprep.mubr.f32.mxu0 0.0
    %2799 = vmatmul.mubr.f32.gmra.mxu0 %v2732
    %v2800 = vpop.f32.mrf.mxu0
    %v2801 = vadd.f32 0.0, %v2800
    %v2802 = vpop.f32.mrf.mxu0
    %2803 = vdwg.mxu0
    %v2804 = vxor.u32 %v2801, 2147483648
    %v2805 = vmul.f32 %v2804, 1.442695
    %v2806 = vpow.pop %v2805
    %v2807 = vadd.f32 %v2806, 1.0
    %v2808 = vrcp.pop %v2807
    %v2809 = vmul.f32 1.0, %v2808
    %v2810 = vmax.f32 %v2801, 0.0
    %2812 = vrot.lane.b32.xlu0 %v2809, 32
    %v2813 = vpop.permute.xlu0 %2812
    %v2815 = vmul.f32 %v2810, %v2813
    %2817 = vrot.lane.b32.xlu0 %v2815, 96
    %v2818 = vpop.permute.xlu0 %2817
    %v2820 = vadd.f32 %v2729, %v2818
    %v2821 = vmul.f32 %v2820, %v2820
    %v2822 = vsel %vm211, %v2821, 0.0
    %2823 = vadd.xlane.f32.xlu0 %v2822
    %v2824 = vpop.xlane.xlu0 %2823
    %v2825 = vmax.f32 %v2824, 1e-24
    %v2826 = vrsqrt.pop %v2825
    %v2827 = vmul.f32 %v2820, %v2826
    %v2828 = vsel %vm312, %v2827, %v2729
    %2829 = vmatprep.subr.mxu0 0.0
    %2830 = vmatpush1.msra.mxu0 0.0
    %2831 = vmatprep.subr.mxu0 0.0
    %2832 = vmatpush1.msra.mxu0 0.0
    %2833 = vmatprep.subr.mxu0 0.0
    %2834 = vmatpush1.msra.mxu0 0.0
    %2835 = vmatprep.subr.mxu0 0.0
    %2836 = vmatpush1.msra.mxu0 0.0
    %2837 = vmatprep.subr.mxu0 0.0
    %2838 = vmatpush1.msra.mxu0 0.0
    %2839 = vmatprep.subr.mxu0 0.0
    %2840 = vmatpush1.msra.mxu0 0.0
    %2841 = vmatprep.subr.mxu0 0.0
    %2842 = vmatpush1.msra.mxu0 0.0
    %2843 = vmatprep.subr.mxu0 0.0
    %2844 = vmatpush1.msra.mxu0 0.0
    %2845 = vmatprep.subr.mxu0 0.0
    %2846 = vmatpush1.msra.mxu0 0.0
    %2847 = vmatprep.subr.mxu0 0.0
    %2848 = vmatpush1.msra.mxu0 0.0
    %2849 = vmatprep.subr.mxu0 0.0
    %2850 = vmatpush1.msra.mxu0 0.0
    %2851 = vmatprep.subr.mxu0 0.0
    %2852 = vmatpush1.msra.mxu0 0.0
    %2853 = vmatprep.subr.mxu0 0.0
    %2854 = vmatpush1.msra.mxu0 0.0
    %2855 = vmatprep.subr.mxu0 0.0
    %2856 = vmatpush1.msra.mxu0 0.0
    %2857 = vmatprep.subr.mxu0 0.0
    %2858 = vmatpush1.msra.mxu0 0.0
    %2859 = vmatprep.subr.mxu0 0.0
    %2860 = vmatpush1.msra.mxu0 %v2729
    %2861 = vmatprep.subr.mxu0 0.0
    %2862 = vmatpush2.msra.mxu0 0.0
    %2863 = vmatprep.subr.mxu0 0.0
    %2864 = vmatpush2.msra.mxu0 0.0
    %2865 = vmatprep.subr.mxu0 0.0
    %2866 = vmatpush2.msra.mxu0 0.0
    %2867 = vmatprep.subr.mxu0 0.0
    %2868 = vmatpush2.msra.mxu0 0.0
    %2869 = vmatprep.subr.mxu0 0.0
    %2870 = vmatpush2.msra.mxu0 0.0
    %2871 = vmatprep.subr.mxu0 0.0
    %2872 = vmatpush2.msra.mxu0 0.0
    %2873 = vmatprep.subr.mxu0 0.0
    %2874 = vmatpush2.msra.mxu0 0.0
    %2875 = vmatprep.subr.mxu0 0.0
    %2876 = vmatpush2.msra.mxu0 0.0
    %2877 = vmatprep.subr.mxu0 0.0
    %2878 = vmatpush2.msra.mxu0 0.0
    %2879 = vmatprep.subr.mxu0 0.0
    %2880 = vmatpush2.msra.mxu0 0.0
    %2881 = vmatprep.subr.mxu0 0.0
    %2882 = vmatpush2.msra.mxu0 0.0
    %2883 = vmatprep.subr.mxu0 0.0
    %2884 = vmatpush2.msra.mxu0 0.0
    %2885 = vmatprep.subr.mxu0 0.0
    %2886 = vmatpush2.msra.mxu0 0.0
    %2887 = vmatprep.subr.mxu0 0.0
    %2888 = vmatpush2.msra.mxu0 0.0
    %2889 = vmatprep.subr.mxu0 0.0
    %2890 = vmatpush2.msra.mxu0 0.0
    %2891 = vmatprep.subr.mxu0 0.0
    %2892 = vmatpush2.msra.mxu0 0.0
    %2893 = vmatprep.mubr.f32.mxu0 0.0
    %2894 = vmatmul.mubr.f32.gmra.mxu0 %v315
    %v2895 = vpop.f32.mrf.mxu0
    %v2896 = vadd.f32 0.0, %v2895
    %v2897 = vpop.f32.mrf.mxu0
    %2898 = vdwg.mxu0
    %2899 = vmatprep.subr.mxu0 0.0
    %2900 = vmatpush1.msra.mxu0 0.0
    %2901 = vmatprep.subr.mxu0 0.0
    %2902 = vmatpush1.msra.mxu0 0.0
    %2903 = vmatprep.subr.mxu0 0.0
    %2904 = vmatpush1.msra.mxu0 0.0
    %2905 = vmatprep.subr.mxu0 0.0
    %2906 = vmatpush1.msra.mxu0 0.0
    %2907 = vmatprep.subr.mxu0 0.0
    %2908 = vmatpush1.msra.mxu0 0.0
    %2909 = vmatprep.subr.mxu0 0.0
    %2910 = vmatpush1.msra.mxu0 0.0
    %2911 = vmatprep.subr.mxu0 0.0
    %2912 = vmatpush1.msra.mxu0 0.0
    %2913 = vmatprep.subr.mxu0 0.0
    %2914 = vmatpush1.msra.mxu0 0.0
    %2915 = vmatprep.subr.mxu0 0.0
    %2916 = vmatpush1.msra.mxu0 0.0
    %2917 = vmatprep.subr.mxu0 0.0
    %2918 = vmatpush1.msra.mxu0 0.0
    %2919 = vmatprep.subr.mxu0 0.0
    %2920 = vmatpush1.msra.mxu0 0.0
    %2921 = vmatprep.subr.mxu0 0.0
    %2922 = vmatpush1.msra.mxu0 0.0
    %2923 = vmatprep.subr.mxu0 0.0
    %2924 = vmatpush1.msra.mxu0 0.0
    %2925 = vmatprep.subr.mxu0 0.0
    %2926 = vmatpush1.msra.mxu0 0.0
    %2927 = vmatprep.subr.mxu0 0.0
    %2928 = vmatpush1.msra.mxu0 0.0
    %2929 = vmatprep.subr.mxu0 0.0
    %2930 = vmatpush1.msra.mxu0 %v2729
    %2931 = vmatprep.subr.mxu0 0.0
    %2932 = vmatpush2.msra.mxu0 0.0
    %2933 = vmatprep.subr.mxu0 0.0
    %2934 = vmatpush2.msra.mxu0 0.0
    %2935 = vmatprep.subr.mxu0 0.0
    %2936 = vmatpush2.msra.mxu0 0.0
    %2937 = vmatprep.subr.mxu0 0.0
    %2938 = vmatpush2.msra.mxu0 0.0
    %2939 = vmatprep.subr.mxu0 0.0
    %2940 = vmatpush2.msra.mxu0 0.0
    %2941 = vmatprep.subr.mxu0 0.0
    %2942 = vmatpush2.msra.mxu0 0.0
    %2943 = vmatprep.subr.mxu0 0.0
    %2944 = vmatpush2.msra.mxu0 0.0
    %2945 = vmatprep.subr.mxu0 0.0
    %2946 = vmatpush2.msra.mxu0 0.0
    %2947 = vmatprep.subr.mxu0 0.0
    %2948 = vmatpush2.msra.mxu0 0.0
    %2949 = vmatprep.subr.mxu0 0.0
    %2950 = vmatpush2.msra.mxu0 0.0
    %2951 = vmatprep.subr.mxu0 0.0
    %2952 = vmatpush2.msra.mxu0 0.0
    %2953 = vmatprep.subr.mxu0 0.0
    %2954 = vmatpush2.msra.mxu0 0.0
    %2955 = vmatprep.subr.mxu0 0.0
    %2956 = vmatpush2.msra.mxu0 0.0
    %2957 = vmatprep.subr.mxu0 0.0
    %2958 = vmatpush2.msra.mxu0 0.0
    %2959 = vmatprep.subr.mxu0 0.0
    %2960 = vmatpush2.msra.mxu0 0.0
    %2961 = vmatprep.subr.mxu0 0.0
    %2962 = vmatpush2.msra.mxu0 0.0
    %2963 = vmatprep.mubr.f32.mxu0 0.0
    %2964 = vmatmul.mubr.f32.gmra.mxu0 %v388
    %v2965 = vpop.f32.mrf.mxu0
    %v2966 = vadd.f32 0.0, %v2965
    %v2967 = vpop.f32.mrf.mxu0
    %2968 = vdwg.mxu0
    %2970 = vrot.lane.b32.xlu0 %v2966, 32
    %v2971 = vpop.permute.xlu0 %2970
    %v2973 = vsel %vm211, %v2896, %v2971
    %2975 = vrot.lane.b32.xlu0 %v2896, 32
    %v2976 = vpop.permute.xlu0 %2975
    %v2978 = vsel %vm211, %v2966, %v2976
    %v2980 = vsel %vm470, %v2973, 0
    %2982 = vmatprep.subr.mxu0 0.0
    %2983 = vmatpush1.msra.mxu0 0.0
    %2984 = vmatprep.subr.mxu0 0.0
    %2985 = vmatpush1.msra.mxu0 0.0
    %2986 = vmatprep.subr.mxu0 0.0
    %2987 = vmatpush1.msra.mxu0 0.0
    %2988 = vmatprep.subr.mxu0 0.0
    %2989 = vmatpush1.msra.mxu0 0.0
    %2990 = vmatprep.subr.mxu0 0.0
    %2991 = vmatpush1.msra.mxu0 0.0
    %2992 = vmatprep.subr.mxu0 0.0
    %2993 = vmatpush1.msra.mxu0 0.0
    %2994 = vmatprep.subr.mxu0 0.0
    %2995 = vmatpush1.msra.mxu0 0.0
    %2996 = vmatprep.subr.mxu0 0.0
    %2997 = vmatpush1.msra.mxu0 0.0
    %2998 = vmatprep.subr.mxu0 0.0
    %2999 = vmatpush1.msra.mxu0 %v173
    %3000 = vmatprep.subr.mxu0 0.0
    %3001 = vmatpush1.msra.mxu0 %v172
    %3002 = vmatprep.subr.mxu0 0.0
    %3003 = vmatpush1.msra.mxu0 %v171
    %3004 = vmatprep.subr.mxu0 0.0
    %3005 = vmatpush1.msra.mxu0 %v170
    %3006 = vmatprep.subr.mxu0 0.0
    %3007 = vmatpush1.msra.mxu0 %v169
    %3008 = vmatprep.subr.mxu0 0.0
    %3009 = vmatpush1.msra.mxu0 %v168
    %3010 = vmatprep.subr.mxu0 0.0
    %3011 = vmatpush1.msra.mxu0 %v167
    %3012 = vmatprep.subr.mxu0 0.0
    %3013 = vmatpush1.msra.mxu0 %v166
    %3014 = vmatprep.subr.mxu0 0.0
    %3015 = vmatpush2.msra.mxu0 0.0
    %3016 = vmatprep.subr.mxu0 0.0
    %3017 = vmatpush2.msra.mxu0 0.0
    %3018 = vmatprep.subr.mxu0 0.0
    %3019 = vmatpush2.msra.mxu0 0.0
    %3020 = vmatprep.subr.mxu0 0.0
    %3021 = vmatpush2.msra.mxu0 0.0
    %3022 = vmatprep.subr.mxu0 0.0
    %3023 = vmatpush2.msra.mxu0 0.0
    %3024 = vmatprep.subr.mxu0 0.0
    %3025 = vmatpush2.msra.mxu0 0.0
    %3026 = vmatprep.subr.mxu0 0.0
    %3027 = vmatpush2.msra.mxu0 0.0
    %3028 = vmatprep.subr.mxu0 0.0
    %3029 = vmatpush2.msra.mxu0 0.0
    %3030 = vmatprep.subr.mxu0 0.0
    %3031 = vmatpush2.msra.mxu0 0.0
    %3032 = vmatprep.subr.mxu0 0.0
    %3033 = vmatpush2.msra.mxu0 0.0
    %3034 = vmatprep.subr.mxu0 0.0
    %3035 = vmatpush2.msra.mxu0 0.0
    %3036 = vmatprep.subr.mxu0 0.0
    %3037 = vmatpush2.msra.mxu0 0.0
    %3038 = vmatprep.subr.mxu0 0.0
    %3039 = vmatpush2.msra.mxu0 0.0
    %3040 = vmatprep.subr.mxu0 0.0
    %3041 = vmatpush2.msra.mxu0 0.0
    %3042 = vmatprep.subr.mxu0 0.0
    %3043 = vmatpush2.msra.mxu0 0.0
    %3044 = vmatprep.subr.mxu0 0.0
    %3045 = vmatpush2.msra.mxu0 0.0
    %3046 = vmatprep.mubr.f32.mxu0 0.0
    %3047 = vmatmul.mubr.f32.gmra.mxu0 %v2980
    %v3048 = vpop.f32.mrf.mxu0
    %v3049 = vadd.f32 0.0, %v3048
    %v3050 = vpop.f32.mrf.mxu0
    %3051 = vdwg.mxu0
    %v3052 = vmul.f32 %v2966, %v548
    %v3053 = vsel %vm551, %v3052, 0.0
    %3054 = vadd.xlane.f32.xlu0 %v3053
    %v3055 = vpop.xlane.xlu0 %3054
    %v3056 = vmul.f32 %v2896, %v3055
    %3058 = vrot.lane.b32.xlu0 %v3056, 32
    %v3059 = vpop.permute.xlu0 %3058
    %v3061 = vadd.f32 %v3049, %v3059
    %v3062 = vmax.f32 %v3061, 0.0
    %v3063 = vxor.u32 %v3049, 2147483648
    %v3064 = vmul.f32 %v3063, 1.442695
    %v3065 = vpow.pop %v3064
    %v3066 = vadd.f32 %v3065, 1.0
    %v3067 = vrcp.pop %v3066
    %v3068 = vmul.f32 1.0, %v3067
    %3070 = vrot.lane.b32.xlu0 %v3068, 32
    %v3071 = vpop.permute.xlu0 %3070
    %v3073 = vmul.f32 %v3062, %v3071
    %3075 = vrot.lane.b32.xlu0 %v3073, 96
    %v3076 = vpop.permute.xlu0 %3075
    %v3078 = vadd.f32 %v2896, %v3076
    %v3079 = vmul.f32 %v3078, %v3078
    %v3080 = vsel %vm551, %v3079, 0.0
    %3081 = vadd.xlane.f32.xlu0 %v3080
    %v3082 = vpop.xlane.xlu0 %3081
    %v3083 = vmax.f32 %v3082, 1e-24
    %v3084 = vrsqrt.pop %v3083
    %v3085 = vmul.f32 %v3078, %v3084
    %v3086 = vsel %vm589, %v3085, 0.0
    %v3088 = vsel %vm470, %v2978, 0
    %3090 = vmatprep.subr.mxu0 0.0
    %3091 = vmatpush1.msra.mxu0 0.0
    %3092 = vmatprep.subr.mxu0 0.0
    %3093 = vmatpush1.msra.mxu0 0.0
    %3094 = vmatprep.subr.mxu0 0.0
    %3095 = vmatpush1.msra.mxu0 0.0
    %3096 = vmatprep.subr.mxu0 0.0
    %3097 = vmatpush1.msra.mxu0 0.0
    %3098 = vmatprep.subr.mxu0 0.0
    %3099 = vmatpush1.msra.mxu0 0.0
    %3100 = vmatprep.subr.mxu0 0.0
    %3101 = vmatpush1.msra.mxu0 0.0
    %3102 = vmatprep.subr.mxu0 0.0
    %3103 = vmatpush1.msra.mxu0 0.0
    %3104 = vmatprep.subr.mxu0 0.0
    %3105 = vmatpush1.msra.mxu0 0.0
    %3106 = vmatprep.subr.mxu0 0.0
    %3107 = vmatpush1.msra.mxu0 %v190
    %3108 = vmatprep.subr.mxu0 0.0
    %3109 = vmatpush1.msra.mxu0 %v189
    %3110 = vmatprep.subr.mxu0 0.0
    %3111 = vmatpush1.msra.mxu0 %v188
    %3112 = vmatprep.subr.mxu0 0.0
    %3113 = vmatpush1.msra.mxu0 %v187
    %3114 = vmatprep.subr.mxu0 0.0
    %3115 = vmatpush1.msra.mxu0 %v186
    %3116 = vmatprep.subr.mxu0 0.0
    %3117 = vmatpush1.msra.mxu0 %v185
    %3118 = vmatprep.subr.mxu0 0.0
    %3119 = vmatpush1.msra.mxu0 %v184
    %3120 = vmatprep.subr.mxu0 0.0
    %3121 = vmatpush1.msra.mxu0 %v183
    %3122 = vmatprep.subr.mxu0 0.0
    %3123 = vmatpush2.msra.mxu0 0.0
    %3124 = vmatprep.subr.mxu0 0.0
    %3125 = vmatpush2.msra.mxu0 0.0
    %3126 = vmatprep.subr.mxu0 0.0
    %3127 = vmatpush2.msra.mxu0 0.0
    %3128 = vmatprep.subr.mxu0 0.0
    %3129 = vmatpush2.msra.mxu0 0.0
    %3130 = vmatprep.subr.mxu0 0.0
    %3131 = vmatpush2.msra.mxu0 0.0
    %3132 = vmatprep.subr.mxu0 0.0
    %3133 = vmatpush2.msra.mxu0 0.0
    %3134 = vmatprep.subr.mxu0 0.0
    %3135 = vmatpush2.msra.mxu0 0.0
    %3136 = vmatprep.subr.mxu0 0.0
    %3137 = vmatpush2.msra.mxu0 0.0
    %3138 = vmatprep.subr.mxu0 0.0
    %3139 = vmatpush2.msra.mxu0 0.0
    %3140 = vmatprep.subr.mxu0 0.0
    %3141 = vmatpush2.msra.mxu0 0.0
    %3142 = vmatprep.subr.mxu0 0.0
    %3143 = vmatpush2.msra.mxu0 0.0
    %3144 = vmatprep.subr.mxu0 0.0
    %3145 = vmatpush2.msra.mxu0 0.0
    %3146 = vmatprep.subr.mxu0 0.0
    %3147 = vmatpush2.msra.mxu0 0.0
    %3148 = vmatprep.subr.mxu0 0.0
    %3149 = vmatpush2.msra.mxu0 0.0
    %3150 = vmatprep.subr.mxu0 0.0
    %3151 = vmatpush2.msra.mxu0 0.0
    %3152 = vmatprep.subr.mxu0 0.0
    %3153 = vmatpush2.msra.mxu0 0.0
    %3154 = vmatprep.mubr.f32.mxu0 0.0
    %3155 = vmatmul.mubr.f32.gmra.mxu0 %v3088
    %v3156 = vpop.f32.mrf.mxu0
    %v3157 = vadd.f32 0.0, %v3156
    %v3158 = vpop.f32.mrf.mxu0
    %3159 = vdwg.mxu0
    %v3160 = vmul.f32 %v2896, %v668
    %v3161 = vsel %vm551, %v3160, 0.0
    %3162 = vadd.xlane.f32.xlu0 %v3161
    %v3163 = vpop.xlane.xlu0 %3162
    %v3164 = vmul.f32 %v2966, %v3163
    %3166 = vrot.lane.b32.xlu0 %v3164, 32
    %v3167 = vpop.permute.xlu0 %3166
    %v3169 = vadd.f32 %v3157, %v3167
    %v3170 = vmax.f32 %v3169, 0.0
    %v3171 = vxor.u32 %v3157, 2147483648
    %v3172 = vmul.f32 %v3171, 1.442695
    %v3173 = vpow.pop %v3172
    %v3174 = vadd.f32 %v3173, 1.0
    %v3175 = vrcp.pop %v3174
    %v3176 = vmul.f32 1.0, %v3175
    %3178 = vrot.lane.b32.xlu0 %v3176, 32
    %v3179 = vpop.permute.xlu0 %3178
    %v3181 = vmul.f32 %v3170, %v3179
    %3183 = vrot.lane.b32.xlu0 %v3181, 96
    %v3184 = vpop.permute.xlu0 %3183
    %v3186 = vadd.f32 %v2966, %v3184
    %v3187 = vmul.f32 %v3186, %v3186
    %v3188 = vsel %vm551, %v3187, 0.0
    %3189 = vadd.xlane.f32.xlu0 %v3188
    %v3190 = vpop.xlane.xlu0 %3189
    %v3191 = vmax.f32 %v3190, 1e-24
    %v3192 = vrsqrt.pop %v3191
    %v3193 = vmul.f32 %v3186, %v3192
    %v3194 = vsel %vm589, %v3193, 0.0
    %3195 = vmatprep.subr.mxu0 0.0
    %3196 = vmatpush1.msra.mxu0 0.0
    %3197 = vmatprep.subr.mxu0 0.0
    %3198 = vmatpush1.msra.mxu0 0.0
    %3199 = vmatprep.subr.mxu0 0.0
    %3200 = vmatpush1.msra.mxu0 0.0
    %3201 = vmatprep.subr.mxu0 0.0
    %3202 = vmatpush1.msra.mxu0 0.0
    %3203 = vmatprep.subr.mxu0 0.0
    %3204 = vmatpush1.msra.mxu0 0.0
    %3205 = vmatprep.subr.mxu0 0.0
    %3206 = vmatpush1.msra.mxu0 0.0
    %3207 = vmatprep.subr.mxu0 0.0
    %3208 = vmatpush1.msra.mxu0 0.0
    %3209 = vmatprep.subr.mxu0 0.0
    %3210 = vmatpush1.msra.mxu0 0.0
    %3211 = vmatprep.subr.mxu0 0.0
    %3212 = vmatpush1.msra.mxu0 %v182
    %3213 = vmatprep.subr.mxu0 0.0
    %3214 = vmatpush1.msra.mxu0 %v181
    %3215 = vmatprep.subr.mxu0 0.0
    %3216 = vmatpush1.msra.mxu0 %v180
    %3217 = vmatprep.subr.mxu0 0.0
    %3218 = vmatpush1.msra.mxu0 %v179
    %3219 = vmatprep.subr.mxu0 0.0
    %3220 = vmatpush1.msra.mxu0 %v178
    %3221 = vmatprep.subr.mxu0 0.0
    %3222 = vmatpush1.msra.mxu0 %v177
    %3223 = vmatprep.subr.mxu0 0.0
    %3224 = vmatpush1.msra.mxu0 %v176
    %3225 = vmatprep.subr.mxu0 0.0
    %3226 = vmatpush1.msra.mxu0 %v175
    %3227 = vmatprep.subr.mxu0 0.0
    %3228 = vmatpush2.msra.mxu0 0.0
    %3229 = vmatprep.subr.mxu0 0.0
    %3230 = vmatpush2.msra.mxu0 0.0
    %3231 = vmatprep.subr.mxu0 0.0
    %3232 = vmatpush2.msra.mxu0 0.0
    %3233 = vmatprep.subr.mxu0 0.0
    %3234 = vmatpush2.msra.mxu0 0.0
    %3235 = vmatprep.subr.mxu0 0.0
    %3236 = vmatpush2.msra.mxu0 0.0
    %3237 = vmatprep.subr.mxu0 0.0
    %3238 = vmatpush2.msra.mxu0 0.0
    %3239 = vmatprep.subr.mxu0 0.0
    %3240 = vmatpush2.msra.mxu0 0.0
    %3241 = vmatprep.subr.mxu0 0.0
    %3242 = vmatpush2.msra.mxu0 0.0
    %3243 = vmatprep.subr.mxu0 0.0
    %3244 = vmatpush2.msra.mxu0 0.0
    %3245 = vmatprep.subr.mxu0 0.0
    %3246 = vmatpush2.msra.mxu0 0.0
    %3247 = vmatprep.subr.mxu0 0.0
    %3248 = vmatpush2.msra.mxu0 0.0
    %3249 = vmatprep.subr.mxu0 0.0
    %3250 = vmatpush2.msra.mxu0 0.0
    %3251 = vmatprep.subr.mxu0 0.0
    %3252 = vmatpush2.msra.mxu0 0.0
    %3253 = vmatprep.subr.mxu0 0.0
    %3254 = vmatpush2.msra.mxu0 0.0
    %3255 = vmatprep.subr.mxu0 0.0
    %3256 = vmatpush2.msra.mxu0 0.0
    %3257 = vmatprep.subr.mxu0 0.0
    %3258 = vmatpush2.msra.mxu0 0.0
    %3259 = vmatprep.mubr.f32.mxu0 0.0
    %3260 = vmatmul.mubr.f32.gmra.mxu0 %v2980
    %v3261 = vpop.f32.mrf.mxu0
    %v3262 = vadd.f32 0.0, %v3261
    %v3263 = vpop.f32.mrf.mxu0
    %3264 = vdwg.mxu0
    %v3265 = vmul.f32 %v2966, %v779
    %v3266 = vsel %vm551, %v3265, 0.0
    %3267 = vadd.xlane.f32.xlu0 %v3266
    %v3268 = vpop.xlane.xlu0 %3267
    %v3269 = vmul.f32 %v2896, %v3268
    %3271 = vrot.lane.b32.xlu0 %v3269, 32
    %v3272 = vpop.permute.xlu0 %3271
    %v3274 = vadd.f32 %v3262, %v3272
    %v3275 = vmax.f32 %v3274, 0.0
    %v3276 = vxor.u32 %v3262, 2147483648
    %v3277 = vmul.f32 %v3276, 1.442695
    %v3278 = vpow.pop %v3277
    %v3279 = vadd.f32 %v3278, 1.0
    %v3280 = vrcp.pop %v3279
    %v3281 = vmul.f32 1.0, %v3280
    %3283 = vrot.lane.b32.xlu0 %v3281, 32
    %v3284 = vpop.permute.xlu0 %3283
    %v3286 = vmul.f32 %v3275, %v3284
    %3288 = vrot.lane.b32.xlu0 %v3286, 96
    %v3289 = vpop.permute.xlu0 %3288
    %v3291 = vadd.f32 %v2896, %v3289
    %v3292 = vmul.f32 %v3291, %v3291
    %v3293 = vsel %vm551, %v3292, 0.0
    %3294 = vadd.xlane.f32.xlu0 %v3293
    %v3295 = vpop.xlane.xlu0 %3294
    %v3296 = vmax.f32 %v3295, 1e-24
    %v3297 = vrsqrt.pop %v3296
    %v3298 = vmul.f32 %v3291, %v3297
    %v3299 = vsel %vm819, %v3298, %v3086
    %3300 = vmatprep.subr.mxu0 0.0
    %3301 = vmatpush1.msra.mxu0 0.0
    %3302 = vmatprep.subr.mxu0 0.0
    %3303 = vmatpush1.msra.mxu0 0.0
    %3304 = vmatprep.subr.mxu0 0.0
    %3305 = vmatpush1.msra.mxu0 0.0
    %3306 = vmatprep.subr.mxu0 0.0
    %3307 = vmatpush1.msra.mxu0 0.0
    %3308 = vmatprep.subr.mxu0 0.0
    %3309 = vmatpush1.msra.mxu0 0.0
    %3310 = vmatprep.subr.mxu0 0.0
    %3311 = vmatpush1.msra.mxu0 0.0
    %3312 = vmatprep.subr.mxu0 0.0
    %3313 = vmatpush1.msra.mxu0 0.0
    %3314 = vmatprep.subr.mxu0 0.0
    %3315 = vmatpush1.msra.mxu0 0.0
    %3316 = vmatprep.subr.mxu0 0.0
    %3317 = vmatpush1.msra.mxu0 %v199
    %3318 = vmatprep.subr.mxu0 0.0
    %3319 = vmatpush1.msra.mxu0 %v198
    %3320 = vmatprep.subr.mxu0 0.0
    %3321 = vmatpush1.msra.mxu0 %v197
    %3322 = vmatprep.subr.mxu0 0.0
    %3323 = vmatpush1.msra.mxu0 %v196
    %3324 = vmatprep.subr.mxu0 0.0
    %3325 = vmatpush1.msra.mxu0 %v195
    %3326 = vmatprep.subr.mxu0 0.0
    %3327 = vmatpush1.msra.mxu0 %v194
    %3328 = vmatprep.subr.mxu0 0.0
    %3329 = vmatpush1.msra.mxu0 %v193
    %3330 = vmatprep.subr.mxu0 0.0
    %3331 = vmatpush1.msra.mxu0 %v192
    %3332 = vmatprep.subr.mxu0 0.0
    %3333 = vmatpush2.msra.mxu0 0.0
    %3334 = vmatprep.subr.mxu0 0.0
    %3335 = vmatpush2.msra.mxu0 0.0
    %3336 = vmatprep.subr.mxu0 0.0
    %3337 = vmatpush2.msra.mxu0 0.0
    %3338 = vmatprep.subr.mxu0 0.0
    %3339 = vmatpush2.msra.mxu0 0.0
    %3340 = vmatprep.subr.mxu0 0.0
    %3341 = vmatpush2.msra.mxu0 0.0
    %3342 = vmatprep.subr.mxu0 0.0
    %3343 = vmatpush2.msra.mxu0 0.0
    %3344 = vmatprep.subr.mxu0 0.0
    %3345 = vmatpush2.msra.mxu0 0.0
    %3346 = vmatprep.subr.mxu0 0.0
    %3347 = vmatpush2.msra.mxu0 0.0
    %3348 = vmatprep.subr.mxu0 0.0
    %3349 = vmatpush2.msra.mxu0 0.0
    %3350 = vmatprep.subr.mxu0 0.0
    %3351 = vmatpush2.msra.mxu0 0.0
    %3352 = vmatprep.subr.mxu0 0.0
    %3353 = vmatpush2.msra.mxu0 0.0
    %3354 = vmatprep.subr.mxu0 0.0
    %3355 = vmatpush2.msra.mxu0 0.0
    %3356 = vmatprep.subr.mxu0 0.0
    %3357 = vmatpush2.msra.mxu0 0.0
    %3358 = vmatprep.subr.mxu0 0.0
    %3359 = vmatpush2.msra.mxu0 0.0
    %3360 = vmatprep.subr.mxu0 0.0
    %3361 = vmatpush2.msra.mxu0 0.0
    %3362 = vmatprep.subr.mxu0 0.0
    %3363 = vmatpush2.msra.mxu0 0.0
    %3364 = vmatprep.mubr.f32.mxu0 0.0
    %3365 = vmatmul.mubr.f32.gmra.mxu0 %v3088
    %v3366 = vpop.f32.mrf.mxu0
    %v3367 = vadd.f32 0.0, %v3366
    %v3368 = vpop.f32.mrf.mxu0
    %3369 = vdwg.mxu0
    %v3370 = vmul.f32 %v2896, %v895
    %v3371 = vsel %vm551, %v3370, 0.0
    %3372 = vadd.xlane.f32.xlu0 %v3371
    %v3373 = vpop.xlane.xlu0 %3372
    %v3374 = vmul.f32 %v2966, %v3373
    %3376 = vrot.lane.b32.xlu0 %v3374, 32
    %v3377 = vpop.permute.xlu0 %3376
    %v3379 = vadd.f32 %v3367, %v3377
    %v3380 = vmax.f32 %v3379, 0.0
    %v3381 = vxor.u32 %v3367, 2147483648
    %v3382 = vmul.f32 %v3381, 1.442695
    %v3383 = vpow.pop %v3382
    %v3384 = vadd.f32 %v3383, 1.0
    %v3385 = vrcp.pop %v3384
    %v3386 = vmul.f32 1.0, %v3385
    %3388 = vrot.lane.b32.xlu0 %v3386, 32
    %v3389 = vpop.permute.xlu0 %3388
    %v3391 = vmul.f32 %v3380, %v3389
    %3393 = vrot.lane.b32.xlu0 %v3391, 96
    %v3394 = vpop.permute.xlu0 %3393
    %v3396 = vadd.f32 %v2966, %v3394
    %v3397 = vmul.f32 %v3396, %v3396
    %v3398 = vsel %vm551, %v3397, 0.0
    %3399 = vadd.xlane.f32.xlu0 %v3398
    %v3400 = vpop.xlane.xlu0 %3399
    %v3401 = vmax.f32 %v3400, 1e-24
    %v3402 = vrsqrt.pop %v3401
    %v3403 = vmul.f32 %v3396, %v3402
    %v3404 = vsel %vm819, %v3403, %v3194
    %v3406 = vsel %vm935, %v3404, 0
    %3408 = vmatprep.subr.mxu0 0.0
    %3409 = vmatpush1.msra.mxu0 0.0
    %3410 = vmatprep.subr.mxu0 0.0
    %3411 = vmatpush1.msra.mxu0 0.0
    %3412 = vmatprep.subr.mxu0 0.0
    %3413 = vmatpush1.msra.mxu0 0.0
    %3414 = vmatprep.subr.mxu0 0.0
    %3415 = vmatpush1.msra.mxu0 0.0
    %3416 = vmatprep.subr.mxu0 0.0
    %3417 = vmatpush1.msra.mxu0 0.0
    %3418 = vmatprep.subr.mxu0 0.0
    %3419 = vmatpush1.msra.mxu0 0.0
    %3420 = vmatprep.subr.mxu0 0.0
    %3421 = vmatpush1.msra.mxu0 0.0
    %3422 = vmatprep.subr.mxu0 0.0
    %3423 = vmatpush1.msra.mxu0 0.0
    %3424 = vmatprep.subr.mxu0 0.0
    %3425 = vmatpush1.msra.mxu0 0.0
    %3426 = vmatprep.subr.mxu0 0.0
    %3427 = vmatpush1.msra.mxu0 0.0
    %3428 = vmatprep.subr.mxu0 0.0
    %3429 = vmatpush1.msra.mxu0 0.0
    %3430 = vmatprep.subr.mxu0 0.0
    %3431 = vmatpush1.msra.mxu0 0.0
    %3432 = vmatprep.subr.mxu0 0.0
    %3433 = vmatpush1.msra.mxu0 0.0
    %3434 = vmatprep.subr.mxu0 0.0
    %3435 = vmatpush1.msra.mxu0 0.0
    %3436 = vmatprep.subr.mxu0 0.0
    %3437 = vmatpush1.msra.mxu0 0.0
    %3438 = vmatprep.subr.mxu0 0.0
    %3439 = vmatpush1.msra.mxu0 %v3406
    %3440 = vmatprep.subr.mxu0 0.0
    %3441 = vmatpush2.msra.mxu0 0.0
    %3442 = vmatprep.subr.mxu0 0.0
    %3443 = vmatpush2.msra.mxu0 0.0
    %3444 = vmatprep.subr.mxu0 0.0
    %3445 = vmatpush2.msra.mxu0 0.0
    %3446 = vmatprep.subr.mxu0 0.0
    %3447 = vmatpush2.msra.mxu0 0.0
    %3448 = vmatprep.subr.mxu0 0.0
    %3449 = vmatpush2.msra.mxu0 0.0
    %3450 = vmatprep.subr.mxu0 0.0
    %3451 = vmatpush2.msra.mxu0 0.0
    %3452 = vmatprep.subr.mxu0 0.0
    %3453 = vmatpush2.msra.mxu0 0.0
    %3454 = vmatprep.subr.mxu0 0.0
    %3455 = vmatpush2.msra.mxu0 0.0
    %3456 = vmatprep.subr.mxu0 0.0
    %3457 = vmatpush2.msra.mxu0 0.0
    %3458 = vmatprep.subr.mxu0 0.0
    %3459 = vmatpush2.msra.mxu0 0.0
    %3460 = vmatprep.subr.mxu0 0.0
    %3461 = vmatpush2.msra.mxu0 0.0
    %3462 = vmatprep.subr.mxu0 0.0
    %3463 = vmatpush2.msra.mxu0 0.0
    %3464 = vmatprep.subr.mxu0 0.0
    %3465 = vmatpush2.msra.mxu0 0.0
    %3466 = vmatprep.subr.mxu0 0.0
    %3467 = vmatpush2.msra.mxu0 0.0
    %3468 = vmatprep.subr.mxu0 0.0
    %3469 = vmatpush2.msra.mxu0 0.0
    %3470 = vmatprep.subr.mxu0 0.0
    %3471 = vmatpush2.msra.mxu0 0.0
    %3472 = vmatprep.mubr.f32.mxu0 0.0
    %3473 = vmatmul.mubr.f32.gmra.mxu0 %v933
    %v3474 = vpop.f32.mrf.mxu0
    %v3475 = vadd.f32 0.0, %v3474
    %v3476 = vpop.f32.mrf.mxu0
    %3477 = vdwg.mxu0
    %v3479 = vsel %vm935, %v3299, 0
    %3481 = vmatprep.subr.mxu0 0.0
    %3482 = vmatpush1.msra.mxu0 0.0
    %3483 = vmatprep.subr.mxu0 0.0
    %3484 = vmatpush1.msra.mxu0 0.0
    %3485 = vmatprep.subr.mxu0 0.0
    %3486 = vmatpush1.msra.mxu0 0.0
    %3487 = vmatprep.subr.mxu0 0.0
    %3488 = vmatpush1.msra.mxu0 0.0
    %3489 = vmatprep.subr.mxu0 0.0
    %3490 = vmatpush1.msra.mxu0 0.0
    %3491 = vmatprep.subr.mxu0 0.0
    %3492 = vmatpush1.msra.mxu0 0.0
    %3493 = vmatprep.subr.mxu0 0.0
    %3494 = vmatpush1.msra.mxu0 0.0
    %3495 = vmatprep.subr.mxu0 0.0
    %3496 = vmatpush1.msra.mxu0 0.0
    %3497 = vmatprep.subr.mxu0 0.0
    %3498 = vmatpush1.msra.mxu0 0.0
    %3499 = vmatprep.subr.mxu0 0.0
    %3500 = vmatpush1.msra.mxu0 0.0
    %3501 = vmatprep.subr.mxu0 0.0
    %3502 = vmatpush1.msra.mxu0 0.0
    %3503 = vmatprep.subr.mxu0 0.0
    %3504 = vmatpush1.msra.mxu0 0.0
    %3505 = vmatprep.subr.mxu0 0.0
    %3506 = vmatpush1.msra.mxu0 0.0
    %3507 = vmatprep.subr.mxu0 0.0
    %3508 = vmatpush1.msra.mxu0 0.0
    %3509 = vmatprep.subr.mxu0 0.0
    %3510 = vmatpush1.msra.mxu0 0.0
    %3511 = vmatprep.subr.mxu0 0.0
    %3512 = vmatpush1.msra.mxu0 %v3479
    %3513 = vmatprep.subr.mxu0 0.0
    %3514 = vmatpush2.msra.mxu0 0.0
    %3515 = vmatprep.subr.mxu0 0.0
    %3516 = vmatpush2.msra.mxu0 0.0
    %3517 = vmatprep.subr.mxu0 0.0
    %3518 = vmatpush2.msra.mxu0 0.0
    %3519 = vmatprep.subr.mxu0 0.0
    %3520 = vmatpush2.msra.mxu0 0.0
    %3521 = vmatprep.subr.mxu0 0.0
    %3522 = vmatpush2.msra.mxu0 0.0
    %3523 = vmatprep.subr.mxu0 0.0
    %3524 = vmatpush2.msra.mxu0 0.0
    %3525 = vmatprep.subr.mxu0 0.0
    %3526 = vmatpush2.msra.mxu0 0.0
    %3527 = vmatprep.subr.mxu0 0.0
    %3528 = vmatpush2.msra.mxu0 0.0
    %3529 = vmatprep.subr.mxu0 0.0
    %3530 = vmatpush2.msra.mxu0 0.0
    %3531 = vmatprep.subr.mxu0 0.0
    %3532 = vmatpush2.msra.mxu0 0.0
    %3533 = vmatprep.subr.mxu0 0.0
    %3534 = vmatpush2.msra.mxu0 0.0
    %3535 = vmatprep.subr.mxu0 0.0
    %3536 = vmatpush2.msra.mxu0 0.0
    %3537 = vmatprep.subr.mxu0 0.0
    %3538 = vmatpush2.msra.mxu0 0.0
    %3539 = vmatprep.subr.mxu0 0.0
    %3540 = vmatpush2.msra.mxu0 0.0
    %3541 = vmatprep.subr.mxu0 0.0
    %3542 = vmatpush2.msra.mxu0 0.0
    %3543 = vmatprep.subr.mxu0 0.0
    %3544 = vmatpush2.msra.mxu0 0.0
    %3545 = vmatprep.mubr.f32.mxu0 0.0
    %3546 = vmatmul.mubr.f32.gmra.mxu0 %v1010
    %v3547 = vpop.f32.mrf.mxu0
    %v3548 = vadd.f32 %v3475, %v3547
    %v3549 = vpop.f32.mrf.mxu0
    %3550 = vdwg.mxu0
    %v3551 = vsel %vm156, %v3548, %v2828
    %v3552 = vsel %vm211, %v3551, %v209
    %v3554 = vsel %vm213, %v3552, 0
    %3556 = vmatprep.subr.mxu0 0.0
    %3557 = vmatpush1.msra.mxu0 0.0
    %3558 = vmatprep.subr.mxu0 0.0
    %3559 = vmatpush1.msra.mxu0 0.0
    %3560 = vmatprep.subr.mxu0 0.0
    %3561 = vmatpush1.msra.mxu0 0.0
    %3562 = vmatprep.subr.mxu0 0.0
    %3563 = vmatpush1.msra.mxu0 0.0
    %3564 = vmatprep.subr.mxu0 0.0
    %3565 = vmatpush1.msra.mxu0 0.0
    %3566 = vmatprep.subr.mxu0 0.0
    %3567 = vmatpush1.msra.mxu0 0.0
    %3568 = vmatprep.subr.mxu0 0.0
    %3569 = vmatpush1.msra.mxu0 0.0
    %3570 = vmatprep.subr.mxu0 0.0
    %3571 = vmatpush1.msra.mxu0 0.0
    %3572 = vmatprep.subr.mxu0 0.0
    %3573 = vmatpush1.msra.mxu0 0.0
    %3574 = vmatprep.subr.mxu0 0.0
    %3575 = vmatpush1.msra.mxu0 0.0
    %3576 = vmatprep.subr.mxu0 0.0
    %3577 = vmatpush1.msra.mxu0 0.0
    %3578 = vmatprep.subr.mxu0 0.0
    %3579 = vmatpush1.msra.mxu0 %v107
    %3580 = vmatprep.subr.mxu0 0.0
    %3581 = vmatpush1.msra.mxu0 %v106
    %3582 = vmatprep.subr.mxu0 0.0
    %3583 = vmatpush1.msra.mxu0 %v105
    %3584 = vmatprep.subr.mxu0 0.0
    %3585 = vmatpush1.msra.mxu0 %v104
    %3586 = vmatprep.subr.mxu0 0.0
    %3587 = vmatpush1.msra.mxu0 %v103
    %3588 = vmatprep.subr.mxu0 0.0
    %3589 = vmatpush2.msra.mxu0 0.0
    %3590 = vmatprep.subr.mxu0 0.0
    %3591 = vmatpush2.msra.mxu0 0.0
    %3592 = vmatprep.subr.mxu0 0.0
    %3593 = vmatpush2.msra.mxu0 0.0
    %3594 = vmatprep.subr.mxu0 0.0
    %3595 = vmatpush2.msra.mxu0 0.0
    %3596 = vmatprep.subr.mxu0 0.0
    %3597 = vmatpush2.msra.mxu0 0.0
    %3598 = vmatprep.subr.mxu0 0.0
    %3599 = vmatpush2.msra.mxu0 0.0
    %3600 = vmatprep.subr.mxu0 0.0
    %3601 = vmatpush2.msra.mxu0 0.0
    %3602 = vmatprep.subr.mxu0 0.0
    %3603 = vmatpush2.msra.mxu0 0.0
    %3604 = vmatprep.subr.mxu0 0.0
    %3605 = vmatpush2.msra.mxu0 0.0
    %3606 = vmatprep.subr.mxu0 0.0
    %3607 = vmatpush2.msra.mxu0 0.0
    %3608 = vmatprep.subr.mxu0 0.0
    %3609 = vmatpush2.msra.mxu0 0.0
    %3610 = vmatprep.subr.mxu0 0.0
    %3611 = vmatpush2.msra.mxu0 0.0
    %3612 = vmatprep.subr.mxu0 0.0
    %3613 = vmatpush2.msra.mxu0 0.0
    %3614 = vmatprep.subr.mxu0 0.0
    %3615 = vmatpush2.msra.mxu0 0.0
    %3616 = vmatprep.subr.mxu0 0.0
    %3617 = vmatpush2.msra.mxu0 0.0
    %3618 = vmatprep.subr.mxu0 0.0
    %3619 = vmatpush2.msra.mxu0 0.0
    %3620 = vmatprep.mubr.f32.mxu0 0.0
    %3621 = vmatmul.mubr.f32.gmra.mxu0 %v3554
    %v3622 = vpop.f32.mrf.mxu0
    %v3623 = vadd.f32 0.0, %v3622
    %v3624 = vpop.f32.mrf.mxu0
    %3625 = vdwg.mxu0
    %v3626 = vxor.u32 %v3623, 2147483648
    %v3627 = vmul.f32 %v3626, 1.442695
    %v3628 = vpow.pop %v3627
    %v3629 = vadd.f32 %v3628, 1.0
    %v3630 = vrcp.pop %v3629
    %v3631 = vmul.f32 1.0, %v3630
    %v3632 = vmax.f32 %v3623, 0.0
    %3634 = vrot.lane.b32.xlu0 %v3631, 32
    %v3635 = vpop.permute.xlu0 %3634
    %v3637 = vmul.f32 %v3632, %v3635
    %3639 = vrot.lane.b32.xlu0 %v3637, 96
    %v3640 = vpop.permute.xlu0 %3639
    %v3642 = vadd.f32 %v3551, %v3640
    %v3643 = vmul.f32 %v3642, %v3642
    %v3644 = vsel %vm211, %v3643, 0.0
    %3645 = vadd.xlane.f32.xlu0 %v3644
    %v3646 = vpop.xlane.xlu0 %3645
    %v3647 = vmax.f32 %v3646, 1e-24
    %v3648 = vrsqrt.pop %v3647
    %v3649 = vmul.f32 %v3642, %v3648
    %v3650 = vsel %vm312, %v3649, %v3551
    %3651 = vmatprep.subr.mxu0 0.0
    %3652 = vmatpush1.msra.mxu0 0.0
    %3653 = vmatprep.subr.mxu0 0.0
    %3654 = vmatpush1.msra.mxu0 0.0
    %3655 = vmatprep.subr.mxu0 0.0
    %3656 = vmatpush1.msra.mxu0 0.0
    %3657 = vmatprep.subr.mxu0 0.0
    %3658 = vmatpush1.msra.mxu0 0.0
    %3659 = vmatprep.subr.mxu0 0.0
    %3660 = vmatpush1.msra.mxu0 0.0
    %3661 = vmatprep.subr.mxu0 0.0
    %3662 = vmatpush1.msra.mxu0 0.0
    %3663 = vmatprep.subr.mxu0 0.0
    %3664 = vmatpush1.msra.mxu0 0.0
    %3665 = vmatprep.subr.mxu0 0.0
    %3666 = vmatpush1.msra.mxu0 0.0
    %3667 = vmatprep.subr.mxu0 0.0
    %3668 = vmatpush1.msra.mxu0 0.0
    %3669 = vmatprep.subr.mxu0 0.0
    %3670 = vmatpush1.msra.mxu0 0.0
    %3671 = vmatprep.subr.mxu0 0.0
    %3672 = vmatpush1.msra.mxu0 0.0
    %3673 = vmatprep.subr.mxu0 0.0
    %3674 = vmatpush1.msra.mxu0 0.0
    %3675 = vmatprep.subr.mxu0 0.0
    %3676 = vmatpush1.msra.mxu0 0.0
    %3677 = vmatprep.subr.mxu0 0.0
    %3678 = vmatpush1.msra.mxu0 0.0
    %3679 = vmatprep.subr.mxu0 0.0
    %3680 = vmatpush1.msra.mxu0 0.0
    %3681 = vmatprep.subr.mxu0 0.0
    %3682 = vmatpush1.msra.mxu0 %v3551
    %3683 = vmatprep.subr.mxu0 0.0
    %3684 = vmatpush2.msra.mxu0 0.0
    %3685 = vmatprep.subr.mxu0 0.0
    %3686 = vmatpush2.msra.mxu0 0.0
    %3687 = vmatprep.subr.mxu0 0.0
    %3688 = vmatpush2.msra.mxu0 0.0
    %3689 = vmatprep.subr.mxu0 0.0
    %3690 = vmatpush2.msra.mxu0 0.0
    %3691 = vmatprep.subr.mxu0 0.0
    %3692 = vmatpush2.msra.mxu0 0.0
    %3693 = vmatprep.subr.mxu0 0.0
    %3694 = vmatpush2.msra.mxu0 0.0
    %3695 = vmatprep.subr.mxu0 0.0
    %3696 = vmatpush2.msra.mxu0 0.0
    %3697 = vmatprep.subr.mxu0 0.0
    %3698 = vmatpush2.msra.mxu0 0.0
    %3699 = vmatprep.subr.mxu0 0.0
    %3700 = vmatpush2.msra.mxu0 0.0
    %3701 = vmatprep.subr.mxu0 0.0
    %3702 = vmatpush2.msra.mxu0 0.0
    %3703 = vmatprep.subr.mxu0 0.0
    %3704 = vmatpush2.msra.mxu0 0.0
    %3705 = vmatprep.subr.mxu0 0.0
    %3706 = vmatpush2.msra.mxu0 0.0
    %3707 = vmatprep.subr.mxu0 0.0
    %3708 = vmatpush2.msra.mxu0 0.0
    %3709 = vmatprep.subr.mxu0 0.0
    %3710 = vmatpush2.msra.mxu0 0.0
    %3711 = vmatprep.subr.mxu0 0.0
    %3712 = vmatpush2.msra.mxu0 0.0
    %3713 = vmatprep.subr.mxu0 0.0
    %3714 = vmatpush2.msra.mxu0 0.0
    %3715 = vmatprep.mubr.f32.mxu0 0.0
    %3716 = vmatmul.mubr.f32.gmra.mxu0 %v315
    %v3717 = vpop.f32.mrf.mxu0
    %v3718 = vadd.f32 0.0, %v3717
    %v3719 = vpop.f32.mrf.mxu0
    %3720 = vdwg.mxu0
    %3721 = vmatprep.subr.mxu0 0.0
    %3722 = vmatpush1.msra.mxu0 0.0
    %3723 = vmatprep.subr.mxu0 0.0
    %3724 = vmatpush1.msra.mxu0 0.0
    %3725 = vmatprep.subr.mxu0 0.0
    %3726 = vmatpush1.msra.mxu0 0.0
    %3727 = vmatprep.subr.mxu0 0.0
    %3728 = vmatpush1.msra.mxu0 0.0
    %3729 = vmatprep.subr.mxu0 0.0
    %3730 = vmatpush1.msra.mxu0 0.0
    %3731 = vmatprep.subr.mxu0 0.0
    %3732 = vmatpush1.msra.mxu0 0.0
    %3733 = vmatprep.subr.mxu0 0.0
    %3734 = vmatpush1.msra.mxu0 0.0
    %3735 = vmatprep.subr.mxu0 0.0
    %3736 = vmatpush1.msra.mxu0 0.0
    %3737 = vmatprep.subr.mxu0 0.0
    %3738 = vmatpush1.msra.mxu0 0.0
    %3739 = vmatprep.subr.mxu0 0.0
    %3740 = vmatpush1.msra.mxu0 0.0
    %3741 = vmatprep.subr.mxu0 0.0
    %3742 = vmatpush1.msra.mxu0 0.0
    %3743 = vmatprep.subr.mxu0 0.0
    %3744 = vmatpush1.msra.mxu0 0.0
    %3745 = vmatprep.subr.mxu0 0.0
    %3746 = vmatpush1.msra.mxu0 0.0
    %3747 = vmatprep.subr.mxu0 0.0
    %3748 = vmatpush1.msra.mxu0 0.0
    %3749 = vmatprep.subr.mxu0 0.0
    %3750 = vmatpush1.msra.mxu0 0.0
    %3751 = vmatprep.subr.mxu0 0.0
    %3752 = vmatpush1.msra.mxu0 %v3551
    %3753 = vmatprep.subr.mxu0 0.0
    %3754 = vmatpush2.msra.mxu0 0.0
    %3755 = vmatprep.subr.mxu0 0.0
    %3756 = vmatpush2.msra.mxu0 0.0
    %3757 = vmatprep.subr.mxu0 0.0
    %3758 = vmatpush2.msra.mxu0 0.0
    %3759 = vmatprep.subr.mxu0 0.0
    %3760 = vmatpush2.msra.mxu0 0.0
    %3761 = vmatprep.subr.mxu0 0.0
    %3762 = vmatpush2.msra.mxu0 0.0
    %3763 = vmatprep.subr.mxu0 0.0
    %3764 = vmatpush2.msra.mxu0 0.0
    %3765 = vmatprep.subr.mxu0 0.0
    %3766 = vmatpush2.msra.mxu0 0.0
    %3767 = vmatprep.subr.mxu0 0.0
    %3768 = vmatpush2.msra.mxu0 0.0
    %3769 = vmatprep.subr.mxu0 0.0
    %3770 = vmatpush2.msra.mxu0 0.0
    %3771 = vmatprep.subr.mxu0 0.0
    %3772 = vmatpush2.msra.mxu0 0.0
    %3773 = vmatprep.subr.mxu0 0.0
    %3774 = vmatpush2.msra.mxu0 0.0
    %3775 = vmatprep.subr.mxu0 0.0
    %3776 = vmatpush2.msra.mxu0 0.0
    %3777 = vmatprep.subr.mxu0 0.0
    %3778 = vmatpush2.msra.mxu0 0.0
    %3779 = vmatprep.subr.mxu0 0.0
    %3780 = vmatpush2.msra.mxu0 0.0
    %3781 = vmatprep.subr.mxu0 0.0
    %3782 = vmatpush2.msra.mxu0 0.0
    %3783 = vmatprep.subr.mxu0 0.0
    %3784 = vmatpush2.msra.mxu0 0.0
    %3785 = vmatprep.mubr.f32.mxu0 0.0
    %3786 = vmatmul.mubr.f32.gmra.mxu0 %v388
    %v3787 = vpop.f32.mrf.mxu0
    %v3788 = vadd.f32 0.0, %v3787
    %v3789 = vpop.f32.mrf.mxu0
    %3790 = vdwg.mxu0
    %3792 = vrot.lane.b32.xlu0 %v3788, 32
    %v3793 = vpop.permute.xlu0 %3792
    %v3795 = vsel %vm211, %v3718, %v3793
    %3797 = vrot.lane.b32.xlu0 %v3718, 32
    %v3798 = vpop.permute.xlu0 %3797
    %v3800 = vsel %vm211, %v3788, %v3798
    %v3802 = vsel %vm470, %v3795, 0
    %3804 = vmatprep.subr.mxu0 0.0
    %3805 = vmatpush1.msra.mxu0 0.0
    %3806 = vmatprep.subr.mxu0 0.0
    %3807 = vmatpush1.msra.mxu0 0.0
    %3808 = vmatprep.subr.mxu0 0.0
    %3809 = vmatpush1.msra.mxu0 0.0
    %3810 = vmatprep.subr.mxu0 0.0
    %3811 = vmatpush1.msra.mxu0 0.0
    %3812 = vmatprep.subr.mxu0 0.0
    %3813 = vmatpush1.msra.mxu0 0.0
    %3814 = vmatprep.subr.mxu0 0.0
    %3815 = vmatpush1.msra.mxu0 0.0
    %3816 = vmatprep.subr.mxu0 0.0
    %3817 = vmatpush1.msra.mxu0 0.0
    %3818 = vmatprep.subr.mxu0 0.0
    %3819 = vmatpush1.msra.mxu0 0.0
    %3820 = vmatprep.subr.mxu0 0.0
    %3821 = vmatpush1.msra.mxu0 %v173
    %3822 = vmatprep.subr.mxu0 0.0
    %3823 = vmatpush1.msra.mxu0 %v172
    %3824 = vmatprep.subr.mxu0 0.0
    %3825 = vmatpush1.msra.mxu0 %v171
    %3826 = vmatprep.subr.mxu0 0.0
    %3827 = vmatpush1.msra.mxu0 %v170
    %3828 = vmatprep.subr.mxu0 0.0
    %3829 = vmatpush1.msra.mxu0 %v169
    %3830 = vmatprep.subr.mxu0 0.0
    %3831 = vmatpush1.msra.mxu0 %v168
    %3832 = vmatprep.subr.mxu0 0.0
    %3833 = vmatpush1.msra.mxu0 %v167
    %3834 = vmatprep.subr.mxu0 0.0
    %3835 = vmatpush1.msra.mxu0 %v166
    %3836 = vmatprep.subr.mxu0 0.0
    %3837 = vmatpush2.msra.mxu0 0.0
    %3838 = vmatprep.subr.mxu0 0.0
    %3839 = vmatpush2.msra.mxu0 0.0
    %3840 = vmatprep.subr.mxu0 0.0
    %3841 = vmatpush2.msra.mxu0 0.0
    %3842 = vmatprep.subr.mxu0 0.0
    %3843 = vmatpush2.msra.mxu0 0.0
    %3844 = vmatprep.subr.mxu0 0.0
    %3845 = vmatpush2.msra.mxu0 0.0
    %3846 = vmatprep.subr.mxu0 0.0
    %3847 = vmatpush2.msra.mxu0 0.0
    %3848 = vmatprep.subr.mxu0 0.0
    %3849 = vmatpush2.msra.mxu0 0.0
    %3850 = vmatprep.subr.mxu0 0.0
    %3851 = vmatpush2.msra.mxu0 0.0
    %3852 = vmatprep.subr.mxu0 0.0
    %3853 = vmatpush2.msra.mxu0 0.0
    %3854 = vmatprep.subr.mxu0 0.0
    %3855 = vmatpush2.msra.mxu0 0.0
    %3856 = vmatprep.subr.mxu0 0.0
    %3857 = vmatpush2.msra.mxu0 0.0
    %3858 = vmatprep.subr.mxu0 0.0
    %3859 = vmatpush2.msra.mxu0 0.0
    %3860 = vmatprep.subr.mxu0 0.0
    %3861 = vmatpush2.msra.mxu0 0.0
    %3862 = vmatprep.subr.mxu0 0.0
    %3863 = vmatpush2.msra.mxu0 0.0
    %3864 = vmatprep.subr.mxu0 0.0
    %3865 = vmatpush2.msra.mxu0 0.0
    %3866 = vmatprep.subr.mxu0 0.0
    %3867 = vmatpush2.msra.mxu0 0.0
    %3868 = vmatprep.mubr.f32.mxu0 0.0
    %3869 = vmatmul.mubr.f32.gmra.mxu0 %v3802
    %v3870 = vpop.f32.mrf.mxu0
    %v3871 = vadd.f32 0.0, %v3870
    %v3872 = vpop.f32.mrf.mxu0
    %3873 = vdwg.mxu0
    %v3874 = vmul.f32 %v3788, %v548
    %v3875 = vsel %vm551, %v3874, 0.0
    %3876 = vadd.xlane.f32.xlu0 %v3875
    %v3877 = vpop.xlane.xlu0 %3876
    %v3878 = vmul.f32 %v3718, %v3877
    %3880 = vrot.lane.b32.xlu0 %v3878, 32
    %v3881 = vpop.permute.xlu0 %3880
    %v3883 = vadd.f32 %v3871, %v3881
    %v3884 = vmax.f32 %v3883, 0.0
    %v3885 = vxor.u32 %v3871, 2147483648
    %v3886 = vmul.f32 %v3885, 1.442695
    %v3887 = vpow.pop %v3886
    %v3888 = vadd.f32 %v3887, 1.0
    %v3889 = vrcp.pop %v3888
    %v3890 = vmul.f32 1.0, %v3889
    %3892 = vrot.lane.b32.xlu0 %v3890, 32
    %v3893 = vpop.permute.xlu0 %3892
    %v3895 = vmul.f32 %v3884, %v3893
    %3897 = vrot.lane.b32.xlu0 %v3895, 96
    %v3898 = vpop.permute.xlu0 %3897
    %v3900 = vadd.f32 %v3718, %v3898
    %v3901 = vmul.f32 %v3900, %v3900
    %v3902 = vsel %vm551, %v3901, 0.0
    %3903 = vadd.xlane.f32.xlu0 %v3902
    %v3904 = vpop.xlane.xlu0 %3903
    %v3905 = vmax.f32 %v3904, 1e-24
    %v3906 = vrsqrt.pop %v3905
    %v3907 = vmul.f32 %v3900, %v3906
    %v3908 = vsel %vm589, %v3907, 0.0
    %v3910 = vsel %vm470, %v3800, 0
    %3912 = vmatprep.subr.mxu0 0.0
    %3913 = vmatpush1.msra.mxu0 0.0
    %3914 = vmatprep.subr.mxu0 0.0
    %3915 = vmatpush1.msra.mxu0 0.0
    %3916 = vmatprep.subr.mxu0 0.0
    %3917 = vmatpush1.msra.mxu0 0.0
    %3918 = vmatprep.subr.mxu0 0.0
    %3919 = vmatpush1.msra.mxu0 0.0
    %3920 = vmatprep.subr.mxu0 0.0
    %3921 = vmatpush1.msra.mxu0 0.0
    %3922 = vmatprep.subr.mxu0 0.0
    %3923 = vmatpush1.msra.mxu0 0.0
    %3924 = vmatprep.subr.mxu0 0.0
    %3925 = vmatpush1.msra.mxu0 0.0
    %3926 = vmatprep.subr.mxu0 0.0
    %3927 = vmatpush1.msra.mxu0 0.0
    %3928 = vmatprep.subr.mxu0 0.0
    %3929 = vmatpush1.msra.mxu0 %v190
    %3930 = vmatprep.subr.mxu0 0.0
    %3931 = vmatpush1.msra.mxu0 %v189
    %3932 = vmatprep.subr.mxu0 0.0
    %3933 = vmatpush1.msra.mxu0 %v188
    %3934 = vmatprep.subr.mxu0 0.0
    %3935 = vmatpush1.msra.mxu0 %v187
    %3936 = vmatprep.subr.mxu0 0.0
    %3937 = vmatpush1.msra.mxu0 %v186
    %3938 = vmatprep.subr.mxu0 0.0
    %3939 = vmatpush1.msra.mxu0 %v185
    %3940 = vmatprep.subr.mxu0 0.0
    %3941 = vmatpush1.msra.mxu0 %v184
    %3942 = vmatprep.subr.mxu0 0.0
    %3943 = vmatpush1.msra.mxu0 %v183
    %3944 = vmatprep.subr.mxu0 0.0
    %3945 = vmatpush2.msra.mxu0 0.0
    %3946 = vmatprep.subr.mxu0 0.0
    %3947 = vmatpush2.msra.mxu0 0.0
    %3948 = vmatprep.subr.mxu0 0.0
    %3949 = vmatpush2.msra.mxu0 0.0
    %3950 = vmatprep.subr.mxu0 0.0
    %3951 = vmatpush2.msra.mxu0 0.0
    %3952 = vmatprep.subr.mxu0 0.0
    %3953 = vmatpush2.msra.mxu0 0.0
    %3954 = vmatprep.subr.mxu0 0.0
    %3955 = vmatpush2.msra.mxu0 0.0
    %3956 = vmatprep.subr.mxu0 0.0
    %3957 = vmatpush2.msra.mxu0 0.0
    %3958 = vmatprep.subr.mxu0 0.0
    %3959 = vmatpush2.msra.mxu0 0.0
    %3960 = vmatprep.subr.mxu0 0.0
    %3961 = vmatpush2.msra.mxu0 0.0
    %3962 = vmatprep.subr.mxu0 0.0
    %3963 = vmatpush2.msra.mxu0 0.0
    %3964 = vmatprep.subr.mxu0 0.0
    %3965 = vmatpush2.msra.mxu0 0.0
    %3966 = vmatprep.subr.mxu0 0.0
    %3967 = vmatpush2.msra.mxu0 0.0
    %3968 = vmatprep.subr.mxu0 0.0
    %3969 = vmatpush2.msra.mxu0 0.0
    %3970 = vmatprep.subr.mxu0 0.0
    %3971 = vmatpush2.msra.mxu0 0.0
    %3972 = vmatprep.subr.mxu0 0.0
    %3973 = vmatpush2.msra.mxu0 0.0
    %3974 = vmatprep.subr.mxu0 0.0
    %3975 = vmatpush2.msra.mxu0 0.0
    %3976 = vmatprep.mubr.f32.mxu0 0.0
    %3977 = vmatmul.mubr.f32.gmra.mxu0 %v3910
    %v3978 = vpop.f32.mrf.mxu0
    %v3979 = vadd.f32 0.0, %v3978
    %v3980 = vpop.f32.mrf.mxu0
    %3981 = vdwg.mxu0
    %v3982 = vmul.f32 %v3718, %v668
    %v3983 = vsel %vm551, %v3982, 0.0
    %3984 = vadd.xlane.f32.xlu0 %v3983
    %v3985 = vpop.xlane.xlu0 %3984
    %v3986 = vmul.f32 %v3788, %v3985
    %3988 = vrot.lane.b32.xlu0 %v3986, 32
    %v3989 = vpop.permute.xlu0 %3988
    %v3991 = vadd.f32 %v3979, %v3989
    %v3992 = vmax.f32 %v3991, 0.0
    %v3993 = vxor.u32 %v3979, 2147483648
    %v3994 = vmul.f32 %v3993, 1.442695
    %v3995 = vpow.pop %v3994
    %v3996 = vadd.f32 %v3995, 1.0
    %v3997 = vrcp.pop %v3996
    %v3998 = vmul.f32 1.0, %v3997
    %4000 = vrot.lane.b32.xlu0 %v3998, 32
    %v4001 = vpop.permute.xlu0 %4000
    %v4003 = vmul.f32 %v3992, %v4001
    %4005 = vrot.lane.b32.xlu0 %v4003, 96
    %v4006 = vpop.permute.xlu0 %4005
    %v4008 = vadd.f32 %v3788, %v4006
    %v4009 = vmul.f32 %v4008, %v4008
    %v4010 = vsel %vm551, %v4009, 0.0
    %4011 = vadd.xlane.f32.xlu0 %v4010
    %v4012 = vpop.xlane.xlu0 %4011
    %v4013 = vmax.f32 %v4012, 1e-24
    %v4014 = vrsqrt.pop %v4013
    %v4015 = vmul.f32 %v4008, %v4014
    %v4016 = vsel %vm589, %v4015, 0.0
    %4017 = vmatprep.subr.mxu0 0.0
    %4018 = vmatpush1.msra.mxu0 0.0
    %4019 = vmatprep.subr.mxu0 0.0
    %4020 = vmatpush1.msra.mxu0 0.0
    %4021 = vmatprep.subr.mxu0 0.0
    %4022 = vmatpush1.msra.mxu0 0.0
    %4023 = vmatprep.subr.mxu0 0.0
    %4024 = vmatpush1.msra.mxu0 0.0
    %4025 = vmatprep.subr.mxu0 0.0
    %4026 = vmatpush1.msra.mxu0 0.0
    %4027 = vmatprep.subr.mxu0 0.0
    %4028 = vmatpush1.msra.mxu0 0.0
    %4029 = vmatprep.subr.mxu0 0.0
    %4030 = vmatpush1.msra.mxu0 0.0
    %4031 = vmatprep.subr.mxu0 0.0
    %4032 = vmatpush1.msra.mxu0 0.0
    %4033 = vmatprep.subr.mxu0 0.0
    %4034 = vmatpush1.msra.mxu0 %v182
    %4035 = vmatprep.subr.mxu0 0.0
    %4036 = vmatpush1.msra.mxu0 %v181
    %4037 = vmatprep.subr.mxu0 0.0
    %4038 = vmatpush1.msra.mxu0 %v180
    %4039 = vmatprep.subr.mxu0 0.0
    %4040 = vmatpush1.msra.mxu0 %v179
    %4041 = vmatprep.subr.mxu0 0.0
    %4042 = vmatpush1.msra.mxu0 %v178
    %4043 = vmatprep.subr.mxu0 0.0
    %4044 = vmatpush1.msra.mxu0 %v177
    %4045 = vmatprep.subr.mxu0 0.0
    %4046 = vmatpush1.msra.mxu0 %v176
    %4047 = vmatprep.subr.mxu0 0.0
    %4048 = vmatpush1.msra.mxu0 %v175
    %4049 = vmatprep.subr.mxu0 0.0
    %4050 = vmatpush2.msra.mxu0 0.0
    %4051 = vmatprep.subr.mxu0 0.0
    %4052 = vmatpush2.msra.mxu0 0.0
    %4053 = vmatprep.subr.mxu0 0.0
    %4054 = vmatpush2.msra.mxu0 0.0
    %4055 = vmatprep.subr.mxu0 0.0
    %4056 = vmatpush2.msra.mxu0 0.0
    %4057 = vmatprep.subr.mxu0 0.0
    %4058 = vmatpush2.msra.mxu0 0.0
    %4059 = vmatprep.subr.mxu0 0.0
    %4060 = vmatpush2.msra.mxu0 0.0
    %4061 = vmatprep.subr.mxu0 0.0
    %4062 = vmatpush2.msra.mxu0 0.0
    %4063 = vmatprep.subr.mxu0 0.0
    %4064 = vmatpush2.msra.mxu0 0.0
    %4065 = vmatprep.subr.mxu0 0.0
    %4066 = vmatpush2.msra.mxu0 0.0
    %4067 = vmatprep.subr.mxu0 0.0
    %4068 = vmatpush2.msra.mxu0 0.0
    %4069 = vmatprep.subr.mxu0 0.0
    %4070 = vmatpush2.msra.mxu0 0.0
    %4071 = vmatprep.subr.mxu0 0.0
    %4072 = vmatpush2.msra.mxu0 0.0
    %4073 = vmatprep.subr.mxu0 0.0
    %4074 = vmatpush2.msra.mxu0 0.0
    %4075 = vmatprep.subr.mxu0 0.0
    %4076 = vmatpush2.msra.mxu0 0.0
    %4077 = vmatprep.subr.mxu0 0.0
    %4078 = vmatpush2.msra.mxu0 0.0
    %4079 = vmatprep.subr.mxu0 0.0
    %4080 = vmatpush2.msra.mxu0 0.0
    %4081 = vmatprep.mubr.f32.mxu0 0.0
    %4082 = vmatmul.mubr.f32.gmra.mxu0 %v3802
    %v4083 = vpop.f32.mrf.mxu0
    %v4084 = vadd.f32 0.0, %v4083
    %v4085 = vpop.f32.mrf.mxu0
    %4086 = vdwg.mxu0
    %v4087 = vmul.f32 %v3788, %v779
    %v4088 = vsel %vm551, %v4087, 0.0
    %4089 = vadd.xlane.f32.xlu0 %v4088
    %v4090 = vpop.xlane.xlu0 %4089
    %v4091 = vmul.f32 %v3718, %v4090
    %4093 = vrot.lane.b32.xlu0 %v4091, 32
    %v4094 = vpop.permute.xlu0 %4093
    %v4096 = vadd.f32 %v4084, %v4094
    %v4097 = vmax.f32 %v4096, 0.0
    %v4098 = vxor.u32 %v4084, 2147483648
    %v4099 = vmul.f32 %v4098, 1.442695
    %v4100 = vpow.pop %v4099
    %v4101 = vadd.f32 %v4100, 1.0
    %v4102 = vrcp.pop %v4101
    %v4103 = vmul.f32 1.0, %v4102
    %4105 = vrot.lane.b32.xlu0 %v4103, 32
    %v4106 = vpop.permute.xlu0 %4105
    %v4108 = vmul.f32 %v4097, %v4106
    %4110 = vrot.lane.b32.xlu0 %v4108, 96
    %v4111 = vpop.permute.xlu0 %4110
    %v4113 = vadd.f32 %v3718, %v4111
    %v4114 = vmul.f32 %v4113, %v4113
    %v4115 = vsel %vm551, %v4114, 0.0
    %4116 = vadd.xlane.f32.xlu0 %v4115
    %v4117 = vpop.xlane.xlu0 %4116
    %v4118 = vmax.f32 %v4117, 1e-24
    %v4119 = vrsqrt.pop %v4118
    %v4120 = vmul.f32 %v4113, %v4119
    %v4121 = vsel %vm819, %v4120, %v3908
    %4122 = vmatprep.subr.mxu0 0.0
    %4123 = vmatpush1.msra.mxu0 0.0
    %4124 = vmatprep.subr.mxu0 0.0
    %4125 = vmatpush1.msra.mxu0 0.0
    %4126 = vmatprep.subr.mxu0 0.0
    %4127 = vmatpush1.msra.mxu0 0.0
    %4128 = vmatprep.subr.mxu0 0.0
    %4129 = vmatpush1.msra.mxu0 0.0
    %4130 = vmatprep.subr.mxu0 0.0
    %4131 = vmatpush1.msra.mxu0 0.0
    %4132 = vmatprep.subr.mxu0 0.0
    %4133 = vmatpush1.msra.mxu0 0.0
    %4134 = vmatprep.subr.mxu0 0.0
    %4135 = vmatpush1.msra.mxu0 0.0
    %4136 = vmatprep.subr.mxu0 0.0
    %4137 = vmatpush1.msra.mxu0 0.0
    %4138 = vmatprep.subr.mxu0 0.0
    %4139 = vmatpush1.msra.mxu0 %v199
    %4140 = vmatprep.subr.mxu0 0.0
    %4141 = vmatpush1.msra.mxu0 %v198
    %4142 = vmatprep.subr.mxu0 0.0
    %4143 = vmatpush1.msra.mxu0 %v197
    %4144 = vmatprep.subr.mxu0 0.0
    %4145 = vmatpush1.msra.mxu0 %v196
    %4146 = vmatprep.subr.mxu0 0.0
    %4147 = vmatpush1.msra.mxu0 %v195
    %4148 = vmatprep.subr.mxu0 0.0
    %4149 = vmatpush1.msra.mxu0 %v194
    %4150 = vmatprep.subr.mxu0 0.0
    %4151 = vmatpush1.msra.mxu0 %v193
    %4152 = vmatprep.subr.mxu0 0.0
    %4153 = vmatpush1.msra.mxu0 %v192
    %4154 = vmatprep.subr.mxu0 0.0
    %4155 = vmatpush2.msra.mxu0 0.0
    %4156 = vmatprep.subr.mxu0 0.0
    %4157 = vmatpush2.msra.mxu0 0.0
    %4158 = vmatprep.subr.mxu0 0.0
    %4159 = vmatpush2.msra.mxu0 0.0
    %4160 = vmatprep.subr.mxu0 0.0
    %4161 = vmatpush2.msra.mxu0 0.0
    %4162 = vmatprep.subr.mxu0 0.0
    %4163 = vmatpush2.msra.mxu0 0.0
    %4164 = vmatprep.subr.mxu0 0.0
    %4165 = vmatpush2.msra.mxu0 0.0
    %4166 = vmatprep.subr.mxu0 0.0
    %4167 = vmatpush2.msra.mxu0 0.0
    %4168 = vmatprep.subr.mxu0 0.0
    %4169 = vmatpush2.msra.mxu0 0.0
    %4170 = vmatprep.subr.mxu0 0.0
    %4171 = vmatpush2.msra.mxu0 0.0
    %4172 = vmatprep.subr.mxu0 0.0
    %4173 = vmatpush2.msra.mxu0 0.0
    %4174 = vmatprep.subr.mxu0 0.0
    %4175 = vmatpush2.msra.mxu0 0.0
    %4176 = vmatprep.subr.mxu0 0.0
    %4177 = vmatpush2.msra.mxu0 0.0
    %4178 = vmatprep.subr.mxu0 0.0
    %4179 = vmatpush2.msra.mxu0 0.0
    %4180 = vmatprep.subr.mxu0 0.0
    %4181 = vmatpush2.msra.mxu0 0.0
    %4182 = vmatprep.subr.mxu0 0.0
    %4183 = vmatpush2.msra.mxu0 0.0
    %4184 = vmatprep.subr.mxu0 0.0
    %4185 = vmatpush2.msra.mxu0 0.0
    %4186 = vmatprep.mubr.f32.mxu0 0.0
    %4187 = vmatmul.mubr.f32.gmra.mxu0 %v3910
    %v4188 = vpop.f32.mrf.mxu0
    %v4189 = vadd.f32 0.0, %v4188
    %v4190 = vpop.f32.mrf.mxu0
    %4191 = vdwg.mxu0
    %v4192 = vmul.f32 %v3718, %v895
    %v4193 = vsel %vm551, %v4192, 0.0
    %4194 = vadd.xlane.f32.xlu0 %v4193
    %v4195 = vpop.xlane.xlu0 %4194
    %v4196 = vmul.f32 %v3788, %v4195
    %4198 = vrot.lane.b32.xlu0 %v4196, 32
    %v4199 = vpop.permute.xlu0 %4198
    %v4201 = vadd.f32 %v4189, %v4199
    %v4202 = vmax.f32 %v4201, 0.0
    %v4203 = vxor.u32 %v4189, 2147483648
    %v4204 = vmul.f32 %v4203, 1.442695
    %v4205 = vpow.pop %v4204
    %v4206 = vadd.f32 %v4205, 1.0
    %v4207 = vrcp.pop %v4206
    %v4208 = vmul.f32 1.0, %v4207
    %4210 = vrot.lane.b32.xlu0 %v4208, 32
    %v4211 = vpop.permute.xlu0 %4210
    %v4213 = vmul.f32 %v4202, %v4211
    %4215 = vrot.lane.b32.xlu0 %v4213, 96
    %v4216 = vpop.permute.xlu0 %4215
    %v4218 = vadd.f32 %v3788, %v4216
    %v4219 = vmul.f32 %v4218, %v4218
    %v4220 = vsel %vm551, %v4219, 0.0
    %4221 = vadd.xlane.f32.xlu0 %v4220
    %v4222 = vpop.xlane.xlu0 %4221
    %v4223 = vmax.f32 %v4222, 1e-24
    %v4224 = vrsqrt.pop %v4223
    %v4225 = vmul.f32 %v4218, %v4224
    %v4226 = vsel %vm819, %v4225, %v4016
    %v4228 = vsel %vm935, %v4226, 0
    %4230 = vmatprep.subr.mxu0 0.0
    %4231 = vmatpush1.msra.mxu0 0.0
    %4232 = vmatprep.subr.mxu0 0.0
    %4233 = vmatpush1.msra.mxu0 0.0
    %4234 = vmatprep.subr.mxu0 0.0
    %4235 = vmatpush1.msra.mxu0 0.0
    %4236 = vmatprep.subr.mxu0 0.0
    %4237 = vmatpush1.msra.mxu0 0.0
    %4238 = vmatprep.subr.mxu0 0.0
    %4239 = vmatpush1.msra.mxu0 0.0
    %4240 = vmatprep.subr.mxu0 0.0
    %4241 = vmatpush1.msra.mxu0 0.0
    %4242 = vmatprep.subr.mxu0 0.0
    %4243 = vmatpush1.msra.mxu0 0.0
    %4244 = vmatprep.subr.mxu0 0.0
    %4245 = vmatpush1.msra.mxu0 0.0
    %4246 = vmatprep.subr.mxu0 0.0
    %4247 = vmatpush1.msra.mxu0 0.0
    %4248 = vmatprep.subr.mxu0 0.0
    %4249 = vmatpush1.msra.mxu0 0.0
    %4250 = vmatprep.subr.mxu0 0.0
    %4251 = vmatpush1.msra.mxu0 0.0
    %4252 = vmatprep.subr.mxu0 0.0
    %4253 = vmatpush1.msra.mxu0 0.0
    %4254 = vmatprep.subr.mxu0 0.0
    %4255 = vmatpush1.msra.mxu0 0.0
    %4256 = vmatprep.subr.mxu0 0.0
    %4257 = vmatpush1.msra.mxu0 0.0
    %4258 = vmatprep.subr.mxu0 0.0
    %4259 = vmatpush1.msra.mxu0 0.0
    %4260 = vmatprep.subr.mxu0 0.0
    %4261 = vmatpush1.msra.mxu0 %v4228
    %4262 = vmatprep.subr.mxu0 0.0
    %4263 = vmatpush2.msra.mxu0 0.0
    %4264 = vmatprep.subr.mxu0 0.0
    %4265 = vmatpush2.msra.mxu0 0.0
    %4266 = vmatprep.subr.mxu0 0.0
    %4267 = vmatpush2.msra.mxu0 0.0
    %4268 = vmatprep.subr.mxu0 0.0
    %4269 = vmatpush2.msra.mxu0 0.0
    %4270 = vmatprep.subr.mxu0 0.0
    %4271 = vmatpush2.msra.mxu0 0.0
    %4272 = vmatprep.subr.mxu0 0.0
    %4273 = vmatpush2.msra.mxu0 0.0
    %4274 = vmatprep.subr.mxu0 0.0
    %4275 = vmatpush2.msra.mxu0 0.0
    %4276 = vmatprep.subr.mxu0 0.0
    %4277 = vmatpush2.msra.mxu0 0.0
    %4278 = vmatprep.subr.mxu0 0.0
    %4279 = vmatpush2.msra.mxu0 0.0
    %4280 = vmatprep.subr.mxu0 0.0
    %4281 = vmatpush2.msra.mxu0 0.0
    %4282 = vmatprep.subr.mxu0 0.0
    %4283 = vmatpush2.msra.mxu0 0.0
    %4284 = vmatprep.subr.mxu0 0.0
    %4285 = vmatpush2.msra.mxu0 0.0
    %4286 = vmatprep.subr.mxu0 0.0
    %4287 = vmatpush2.msra.mxu0 0.0
    %4288 = vmatprep.subr.mxu0 0.0
    %4289 = vmatpush2.msra.mxu0 0.0
    %4290 = vmatprep.subr.mxu0 0.0
    %4291 = vmatpush2.msra.mxu0 0.0
    %4292 = vmatprep.subr.mxu0 0.0
    %4293 = vmatpush2.msra.mxu0 0.0
    %4294 = vmatprep.mubr.f32.mxu0 0.0
    %4295 = vmatmul.mubr.f32.gmra.mxu0 %v933
    %v4296 = vpop.f32.mrf.mxu0
    %v4297 = vadd.f32 0.0, %v4296
    %v4298 = vpop.f32.mrf.mxu0
    %4299 = vdwg.mxu0
    %v4301 = vsel %vm935, %v4121, 0
    %4303 = vmatprep.subr.mxu0 0.0
    %4304 = vmatpush1.msra.mxu0 0.0
    %4305 = vmatprep.subr.mxu0 0.0
    %4306 = vmatpush1.msra.mxu0 0.0
    %4307 = vmatprep.subr.mxu0 0.0
    %4308 = vmatpush1.msra.mxu0 0.0
    %4309 = vmatprep.subr.mxu0 0.0
    %4310 = vmatpush1.msra.mxu0 0.0
    %4311 = vmatprep.subr.mxu0 0.0
    %4312 = vmatpush1.msra.mxu0 0.0
    %4313 = vmatprep.subr.mxu0 0.0
    %4314 = vmatpush1.msra.mxu0 0.0
    %4315 = vmatprep.subr.mxu0 0.0
    %4316 = vmatpush1.msra.mxu0 0.0
    %4317 = vmatprep.subr.mxu0 0.0
    %4318 = vmatpush1.msra.mxu0 0.0
    %4319 = vmatprep.subr.mxu0 0.0
    %4320 = vmatpush1.msra.mxu0 0.0
    %4321 = vmatprep.subr.mxu0 0.0
    %4322 = vmatpush1.msra.mxu0 0.0
    %4323 = vmatprep.subr.mxu0 0.0
    %4324 = vmatpush1.msra.mxu0 0.0
    %4325 = vmatprep.subr.mxu0 0.0
    %4326 = vmatpush1.msra.mxu0 0.0
    %4327 = vmatprep.subr.mxu0 0.0
    %4328 = vmatpush1.msra.mxu0 0.0
    %4329 = vmatprep.subr.mxu0 0.0
    %4330 = vmatpush1.msra.mxu0 0.0
    %4331 = vmatprep.subr.mxu0 0.0
    %4332 = vmatpush1.msra.mxu0 0.0
    %4333 = vmatprep.subr.mxu0 0.0
    %4334 = vmatpush1.msra.mxu0 %v4301
    %4335 = vmatprep.subr.mxu0 0.0
    %4336 = vmatpush2.msra.mxu0 0.0
    %4337 = vmatprep.subr.mxu0 0.0
    %4338 = vmatpush2.msra.mxu0 0.0
    %4339 = vmatprep.subr.mxu0 0.0
    %4340 = vmatpush2.msra.mxu0 0.0
    %4341 = vmatprep.subr.mxu0 0.0
    %4342 = vmatpush2.msra.mxu0 0.0
    %4343 = vmatprep.subr.mxu0 0.0
    %4344 = vmatpush2.msra.mxu0 0.0
    %4345 = vmatprep.subr.mxu0 0.0
    %4346 = vmatpush2.msra.mxu0 0.0
    %4347 = vmatprep.subr.mxu0 0.0
    %4348 = vmatpush2.msra.mxu0 0.0
    %4349 = vmatprep.subr.mxu0 0.0
    %4350 = vmatpush2.msra.mxu0 0.0
    %4351 = vmatprep.subr.mxu0 0.0
    %4352 = vmatpush2.msra.mxu0 0.0
    %4353 = vmatprep.subr.mxu0 0.0
    %4354 = vmatpush2.msra.mxu0 0.0
    %4355 = vmatprep.subr.mxu0 0.0
    %4356 = vmatpush2.msra.mxu0 0.0
    %4357 = vmatprep.subr.mxu0 0.0
    %4358 = vmatpush2.msra.mxu0 0.0
    %4359 = vmatprep.subr.mxu0 0.0
    %4360 = vmatpush2.msra.mxu0 0.0
    %4361 = vmatprep.subr.mxu0 0.0
    %4362 = vmatpush2.msra.mxu0 0.0
    %4363 = vmatprep.subr.mxu0 0.0
    %4364 = vmatpush2.msra.mxu0 0.0
    %4365 = vmatprep.subr.mxu0 0.0
    %4366 = vmatpush2.msra.mxu0 0.0
    %4367 = vmatprep.mubr.f32.mxu0 0.0
    %4368 = vmatmul.mubr.f32.gmra.mxu0 %v1010
    %v4369 = vpop.f32.mrf.mxu0
    %v4370 = vadd.f32 %v4297, %v4369
    %v4371 = vpop.f32.mrf.mxu0
    %4372 = vdwg.mxu0
    %v4373 = vsel %vm156, %v4370, %v3650
    %4374 = vst.msk [vmem:[#allocation10] sm:$0xff] %vm211, %v4373
    // Predicated region
    $region66: #{tpu_custom_call.1} parent=1 // pred_check
      _
    $region67: #{tpu_custom_call.1} parent=1 // pred_check_branch
      %4376 = sbr.rel (0) target = $region69
    $region68: #{tpu_custom_call.1} parent=1 // pred_region
      %s4378 = ssub.s32 128, 128
      %4379 = vsyncadd [#allocation4], %s4378
      %s4381 = sshll.u32 [#allocation10], 4
      %s4382 = int_to_ptr.vmem [resolvable:$true] %s4381
      %4384 = dma.vmem_to_hbm [thread:$0]  %s4382, 128, %s12, [#allocation4]
    $region69: #{tpu_custom_call.1} parent=1 // pred_fallthru
      _
    // Predicated region
    $region70: #{tpu_custom_call.1} parent=1 // pred_check
      _
    $region71: #{tpu_custom_call.1} parent=1 // pred_check_branch
      %4386 = sbr.rel (0) target = $region73
    $region72: #{tpu_custom_call.1} parent=1 // pred_region
      %4387 = dma.done [#allocation4], 128
    $region73: #{tpu_custom_call.1} parent=1 // pred_fallthru
      _
    %4388 = vsyncpa [#allocation3], 1
    %4389 = vsyncpa [#allocation6], 1
    %4390 = vsyncpa [#allocation9], 1
    %4391 = vsyncpa [#allocation4], 1

</llo_original>
